<compile_context>
chip_gen: v7x
topology: tpu7x:2x2x1
jax: 0.10.0
libtpu: 0.0.40
codegen_flags: <defaults>
</compile_context>

<pallas_src>
import functools
import math

import jax
import jax.numpy as jnp
from jax.experimental import pallas as pl
from jax.experimental.pallas import tpu as pltpu


# ----------------------------------------------------------------------------
# In-kernel helper
# ----------------------------------------------------------------------------
def _softmax_last(x):
    m = jnp.max(x, axis=-1, keepdims=True)
    e = jnp.exp(x - m)
    return e / jnp.sum(e, axis=-1, keepdims=True)


# ----------------------------------------------------------------------------
# Fused RKT forward kernel: one grid step == one batch element
# ----------------------------------------------------------------------------
def rkt_fused_kernel(l12_ref, bout_ref,                         # SMEM scalars
                     emb_ref, lab_ref, trow_ref, tcol_ref, rel_ref,   # per-batch
                     pe_ref, wina_ref, winb_ref, bin_ref,       # lin_in + pos emb
                     wq_ref, wk_ref, wv_ref, bq_ref, bk_ref, bv_ref,  # layer stacks
                     wout_ref,                                  # lin_out weight
                     o_ref, *, num_heads, num_layers):
    S, E = emb_ref.shape[1], emb_ref.shape[2]
    H = num_heads
    Dh = E // H
    scale = 1.0 / math.sqrt(Dh)

    emb = emb_ref[0]                                            # (S, E)  query
    lab = lab_ref[0]                                            # (S, 1)

    # ---- lin_in on the label-gated concat (w_in split -> no in-kernel concat)
    emb_c = emb * lab                                           # response == 1 half
    emb_w = emb - emb_c                                         # response == 0 half
    h = jnp.dot(emb_c, wina_ref[...], preferred_element_type=jnp.float32)
    h = h + jnp.dot(emb_w, winb_ref[...], preferred_element_type=jnp.float32)
    h = jnp.maximum(h + bin_ref[...], 0.0) + pe_ref[...]        # ReLU + pos emb

    # ---- masks + layer-invariant attention maps (computed ONCE, reused) ------
    row = jax.lax.broadcasted_iota(jnp.int32, (S, S), 0)
    col = jax.lax.broadcasted_iota(jnp.int32, (S, S), 1)
    mask = col >= row            # future mask incl. diagonal (np.triu, k=0)
    row0 = row == 0              # query position 0 -> zeroed attention row

    rel_attn = _softmax_last(jnp.where(mask, -100000.0, rel_ref[0]))
    rel_attn = jnp.where(row0, 0.0, rel_attn)

    tmat = jnp.abs(trow_ref[0] - tcol_ref[0])                   # (S, S)  |t_j - t_i|
    time_attn = _softmax_last(jnp.where(mask, -100000.0, jnp.exp(-tmat)))
    time_attn = jnp.where(row0, 0.0, time_attn)

    l1 = l12_ref[0]
    l2 = l12_ref[1]
    c_mix = (1.0 - l1) * (1.0 - l2)
    mix = ((1.0 - l2) * l1) * rel_attn + l2 * time_attn         # (S, S)

    mask3 = mask[None]                                          # (1, S, S)
    row03 = row0[None]
    q_b = jnp.broadcast_to(emb[None], (H, S, E))                # query, all layers

    def attn_layer(x_kv, lidx):
        wq = wq_ref[lidx]                                       # (H, E, Dh)
        wk = wk_ref[lidx]
        wv = wv_ref[lidx]
        bq = bq_ref[lidx]                                       # (H, 1, Dh)
        bk = bk_ref[lidx]
        bv = bv_ref[lidx]
        kv_b = jnp.broadcast_to(x_kv[None], (H, S, E))
        qh = jnp.einsum('hse,hed->hsd', q_b, wq,
                        preferred_element_type=jnp.float32) + bq
        kh = jnp.einsum('hse,hed->hsd', kv_b, wk,
                        preferred_element_type=jnp.float32) + bk
        vh = jnp.einsum('hse,hed->hsd', kv_b, wv,
                        preferred_element_type=jnp.float32) + bv
        s = jnp.einsum('hsd,htd->hst', qh, kh,
                       preferred_element_type=jnp.float32) * scale   # (H, S, S)
        prob = _softmax_last(jnp.where(mask3, -1e32, s))
        prob = jnp.where(row03, 0.0, prob)
        w = c_mix * prob + mix                                  # hoisted l1/l2 mix
        ctx = jnp.einsum('hst,htd->hsd', w, vh,
                         preferred_element_type=jnp.float32)    # (H, S, Dh)
        return jnp.concatenate([ctx[hh] for hh in range(H)], axis=-1)   # (S, E)

    outputs = attn_layer(h, 0)
    for lidx in range(1, num_layers):
        residual = attn_layer(outputs, lidx)
        outputs = outputs + jnp.maximum(residual, 0.0)          # dropout = identity

    # ---- lin_out + sigmoid ---------------------------------------------------
    logits = jnp.sum(outputs * wout_ref[...], axis=-1, keepdims=True) + bout_ref[0]
    o_ref[0] = (1.0 / (1.0 + jnp.exp(-logits))).astype(o_ref.dtype)   # (S, 1)


def rkt_fused_call(l12, b_out, emb, lab, trow, tcol, rel, pe,
                   w_in_a, w_in_b, b_in, wq, wk, wv, bq, bk, bv, w_out,
                   *, num_heads):
    B, S, E = emb.shape
    L, H, _, Dh = wq.shape
    kernel = functools.partial(rkt_fused_kernel, num_heads=num_heads, num_layers=L)
    batch3 = lambda b: (b, 0, 0)
    const2 = lambda b: (0, 0)
    const4 = lambda b: (0, 0, 0, 0)
    out = pl.pallas_call(
        kernel,
        out_shape=jax.ShapeDtypeStruct((B, S, 1), jnp.float32),
        grid=(B,),
        in_specs=[
            pl.BlockSpec(memory_space=pltpu.MemorySpace.SMEM),   # l12 (2,)
            pl.BlockSpec(memory_space=pltpu.MemorySpace.SMEM),   # b_out (1,)
            pl.BlockSpec((1, S, E), batch3),                     # item embeddings
            pl.BlockSpec((1, S, 1), batch3),                     # labels
            pl.BlockSpec((1, 1, S), batch3),                     # timestamps (row)
            pl.BlockSpec((1, S, 1), batch3),                     # timestamps (col)
            pl.BlockSpec((1, S, S), batch3),                     # relation matrix
            pl.BlockSpec((S, E), const2),                        # positional emb
            pl.BlockSpec((E, E), const2),                        # w_in (label half)
            pl.BlockSpec((E, E), const2),                        # w_in (1-label half)
            pl.BlockSpec((1, E), const2),                        # b_in
            pl.BlockSpec((L, H, E, Dh), const4),                 # Wq stack
            pl.BlockSpec((L, H, E, Dh), const4),                 # Wk stack
            pl.BlockSpec((L, H, E, Dh), const4),                 # Wv stack
            pl.BlockSpec((L, H, 1, Dh), const4),                 # bq stack
            pl.BlockSpec((L, H, 1, Dh), const4),                 # bk stack
            pl.BlockSpec((L, H, 1, Dh), const4),                 # bv stack
            pl.BlockSpec((1, E), const2),                        # w_out
        ],
        out_specs=pl.BlockSpec((1, S, 1), batch3),
        compiler_params=pltpu.CompilerParams(dimension_semantics=("parallel",)),
    )(l12, b_out, emb, lab, trow, tcol, rel, pe,
      w_in_a, w_in_b, b_in, wq, wk, wv, bq, bk, bv, w_out)
    return out[:, :, 0]                                          # (B, S)


# ----------------------------------------------------------------------------
# Parameter construction (deterministic, in-script)
# ----------------------------------------------------------------------------
def make_cosine_pos_emb(max_len, d_model):
    position = jnp.arange(max_len, dtype=jnp.float32)[:, None]
    div_term = jnp.exp(jnp.arange(0, d_model, 2, dtype=jnp.float32)
                       * (-math.log(10000.0) / d_model))
    sin = jnp.sin(position * div_term)                           # (L, E/2)
    cos = jnp.cos(position * div_term)                           # (L, E/2)
    pe = jnp.stack([sin, cos], axis=-1).reshape(max_len, d_model)  # interleave
    return pe.astype(jnp.float32)


def init_params(key, num_q, embed_size, num_layers, max_len):
    ks = jax.random.split(key, 9)
    E, L = embed_size, num_layers
    emb = 0.02 * jax.random.normal(ks[0], (num_q + 1, E), jnp.float32)
    emb = emb.at[0].set(0.0)                                     # padding_idx=0
    return {
        "item_embeds": emb,
        "pe": make_cosine_pos_emb(max_len, E),
        "w_in": 0.1 * jax.random.normal(ks[1], (2 * E, E), jnp.float32),
        "b_in": 0.01 * jax.random.normal(ks[2], (E,), jnp.float32),
        "w_out": 0.1 * jax.random.normal(ks[3], (E,), jnp.float32),
        "b_out": 0.01 * jax.random.normal(ks[4], (1,), jnp.float32),
        "l12": jax.random.uniform(ks[5], (2,), jnp.float32),     # (l1, l2)
        "wq": 0.1 * jax.random.normal(ks[6], (L, E, E), jnp.float32),
        "wk": 0.1 * jax.random.normal(ks[7], (L, E, E), jnp.float32),
        "wv": 0.1 * jax.random.normal(ks[8], (L, E, E), jnp.float32),
        "bq": 0.01 * jnp.ones((L, E), jnp.float32),
        "bk": 0.01 * jnp.ones((L, E), jnp.float32),
        "bv": 0.01 * jnp.ones((L, E), jnp.float32),
    }


# ----------------------------------------------------------------------------
# Full RKT forward: gathers / layout plumbing in JAX, everything else in Pallas
# ----------------------------------------------------------------------------
@functools.partial(jax.jit, static_argnames=("num_heads",))
def rkt_forward(params, dcur, rel_matrix, theta, *, num_heads):
    q, r, t = dcur["qseqs"], dcur["rseqs"], dcur["tseqs"]
    qshft, rshft, tshft = dcur["shft_qseqs"], dcur["shft_rseqs"], dcur["shft_tseqs"]

    pid_data = jnp.concatenate([q[:, :1], qshft], axis=1)        # (B, S)
    target = jnp.concatenate([r[:, :1], rshft], axis=1)          # (B, S)
    timestamp = jnp.concatenate([t[:, :1], tshft], axis=1)       # (B, S)
    B, S = pid_data.shape
    E = params["item_embeds"].shape[1]
    L = params["wq"].shape[0]
    H = num_heads
    Dh = E // H

    # embedding gather + label / timestamp prep (data-dependent gather -> XLA)
    emb = params["item_embeds"][pid_data]                        # (B, S, E)
    lab = target[..., None].astype(jnp.float32)                  # (B, S, 1)
    tf = timestamp.astype(jnp.float32)
    trow = tf[:, None, :]                                        # (B, 1, S)
    tcol = tf[:, :, None]                                        # (B, S, 1)

    # compute_corr_matrix + threshold
    rel = rel_matrix[pid_data[:, :, None], pid_data[:, None, :]]  # (B, S, S)
    rel = jnp.where(rel < theta, 0.0, rel).astype(jnp.float32)

    # trace-time parameter layout plumbing for the fused kernel
    w_in_a = params["w_in"][:E]                                  # (E, E)
    w_in_b = params["w_in"][E:]                                  # (E, E)
    b_in = params["b_in"].reshape(1, E)
    wq = params["wq"].reshape(L, E, H, Dh).transpose(0, 2, 1, 3)  # (L, H, E, Dh)
    wk = params["wk"].reshape(L, E, H, Dh).transpose(0, 2, 1, 3)
    wv = params["wv"].reshape(L, E, H, Dh).transpose(0, 2, 1, 3)
    bq = params["bq"].reshape(L, H, 1, Dh)
    bk = params["bk"].reshape(L, H, 1, Dh)
    bv = params["bv"].reshape(L, H, 1, Dh)
    w_out = params["w_out"].reshape(1, E)

    return rkt_fused_call(params["l12"], params["b_out"],
                          emb, lab, trow, tcol, rel, params["pe"][:S],
                          w_in_a, w_in_b, b_in, wq, wk, wv, bq, bk, bv, w_out,
                          num_heads=num_heads)


# ----------------------------------------------------------------------------
# Main
# ----------------------------------------------------------------------------
if __name__ == "__main__":
    B = 2              # batch
    L_SEQ = 7          # dcur sequence length (forward concatenates to S = L_SEQ + 1)
    S = L_SEQ + 1      # = 8
    E = 32             # embed_size
    NUM_HEADS = 4
    NUM_LAYERS = 2
    NUM_Q = 50
    THETA = 0.3
    MAX_LEN = 64

    key = jax.random.PRNGKey(0)
    kp, kq, kr, kt, krel = jax.random.split(key, 5)

    params = init_params(kp, NUM_Q, E, NUM_LAYERS, MAX_LEN)

    # deterministic synthetic dcur
    qfull = jax.random.randint(kq, (B, S), 1, NUM_Q + 1)
    rfull = jax.random.randint(kr, (B, S), 0, 2)
    tfull = jnp.cumsum(jax.random.randint(kt, (B, S), 1, 10), axis=1)
    dcur = {
        "qseqs": qfull[:, :-1], "shft_qseqs": qfull[:, 1:],
        "cseqs": qfull[:, :-1], "shft_cseqs": qfull[:, 1:],
        "rseqs": rfull[:, :-1], "shft_rseqs": rfull[:, 1:],
        "tseqs": tfull[:, :-1], "shft_tseqs": tfull[:, 1:],
    }
    rel_matrix = jax.random.uniform(krel, (NUM_Q + 1, NUM_Q + 1), jnp.float32)

    pred = rkt_forward(params, dcur, rel_matrix, THETA, num_heads=NUM_HEADS)
    pred = jax.block_until_ready(pred)
    assert pred.shape == (B, S)
    assert bool(jnp.all(jnp.isfinite(pred)))
    print("KERNEL_OK")
</pallas_src>

<mosaic_0001>
module attributes {stable_mosaic.version = 11 : i64} {
  func.func @rkt_fused_kernel(%arg0: i32, %arg1: memref<2xf32, #tpu.memory_space<smem>>, %arg2: memref<1xf32, #tpu.memory_space<smem>>, %arg3: memref<1x8x32xf32, #tpu.memory_space<vmem>>, %arg4: memref<1x8x1xf32, #tpu.memory_space<vmem>>, %arg5: memref<1x1x8xf32, #tpu.memory_space<vmem>>, %arg6: memref<1x8x1xf32, #tpu.memory_space<vmem>>, %arg7: memref<1x8x8xf32, #tpu.memory_space<vmem>>, %arg8: memref<8x32xf32, #tpu.memory_space<vmem>>, %arg9: memref<32x32xf32, #tpu.memory_space<vmem>>, %arg10: memref<32x32xf32, #tpu.memory_space<vmem>>, %arg11: memref<1x32xf32, #tpu.memory_space<vmem>>, %arg12: memref<2x4x32x8xf32, #tpu.memory_space<vmem>>, %arg13: memref<2x4x32x8xf32, #tpu.memory_space<vmem>>, %arg14: memref<2x4x32x8xf32, #tpu.memory_space<vmem>>, %arg15: memref<2x4x1x8xf32, #tpu.memory_space<vmem>>, %arg16: memref<2x4x1x8xf32, #tpu.memory_space<vmem>>, %arg17: memref<2x4x1x8xf32, #tpu.memory_space<vmem>>, %arg18: memref<1x32xf32, #tpu.memory_space<vmem>>, %arg19: memref<1x8x1xf32, #tpu.memory_space<vmem>>) attributes {dimension_semantics = [#tpu.dimension_semantics<parallel>], iteration_bounds = array<i64: 2>, scalar_prefetch = 0 : i64, scratch_operands = 0 : i64, tpu.core_type = #tpu.core_type<tc>, window_params = [{transform_indices = @transform_0, window_bounds = array<i64: 2>}, {transform_indices = @transform_1, window_bounds = array<i64: 1>}, {transform_indices = @transform_2, window_bounds = array<i64: 1, 8, 32>}, {transform_indices = @transform_3, window_bounds = array<i64: 1, 8, 1>}, {transform_indices = @transform_4, window_bounds = array<i64: 1, 1, 8>}, {transform_indices = @transform_5, window_bounds = array<i64: 1, 8, 1>}, {transform_indices = @transform_6, window_bounds = array<i64: 1, 8, 8>}, {pipeline_mode = #tpu.pipeline_mode<synchronous>, transform_indices = @transform_7, window_bounds = array<i64: 8, 32>}, {pipeline_mode = #tpu.pipeline_mode<synchronous>, transform_indices = @transform_8, window_bounds = array<i64: 32, 32>}, {pipeline_mode = #tpu.pipeline_mode<synchronous>, transform_indices = @transform_9, window_bounds = array<i64: 32, 32>}, {pipeline_mode = #tpu.pipeline_mode<synchronous>, transform_indices = @transform_10, window_bounds = array<i64: 1, 32>}, {pipeline_mode = #tpu.pipeline_mode<synchronous>, transform_indices = @transform_11, window_bounds = array<i64: 2, 4, 32, 8>}, {pipeline_mode = #tpu.pipeline_mode<synchronous>, transform_indices = @transform_12, window_bounds = array<i64: 2, 4, 32, 8>}, {pipeline_mode = #tpu.pipeline_mode<synchronous>, transform_indices = @transform_13, window_bounds = array<i64: 2, 4, 32, 8>}, {pipeline_mode = #tpu.pipeline_mode<synchronous>, transform_indices = @transform_14, window_bounds = array<i64: 2, 4, 1, 8>}, {pipeline_mode = #tpu.pipeline_mode<synchronous>, transform_indices = @transform_15, window_bounds = array<i64: 2, 4, 1, 8>}, {pipeline_mode = #tpu.pipeline_mode<synchronous>, transform_indices = @transform_16, window_bounds = array<i64: 2, 4, 1, 8>}, {pipeline_mode = #tpu.pipeline_mode<synchronous>, transform_indices = @transform_17, window_bounds = array<i64: 1, 32>}, {transform_indices = @transform_18, window_bounds = array<i64: 1, 8, 1>}]} {
    %c0 = arith.constant 0 : index
    %c0_0 = arith.constant 0 : index
    %c0_1 = arith.constant 0 : index
    %0 = vector.load %arg3[%c0, %c0_0, %c0_1] : memref<1x8x32xf32, #tpu.memory_space<vmem>>, vector<1x8x32xf32>
    %1 = vector.shape_cast %0 : vector<1x8x32xf32> to vector<8x32xf32>
    %c0_2 = arith.constant 0 : index
    %c0_3 = arith.constant 0 : index
    %c0_4 = arith.constant 0 : index
    %2 = vector.load %arg4[%c0_2, %c0_3, %c0_4] : memref<1x8x1xf32, #tpu.memory_space<vmem>>, vector<1x8x1xf32>
    %3 = vector.shape_cast %2 : vector<1x8x1xf32> to vector<8x1xf32>
    %4 = vector.broadcast %3 : vector<8x1xf32> to vector<8x32xf32>
    %5 = arith.mulf %1, %4 : vector<8x32xf32>
    %6 = arith.subf %1, %5 : vector<8x32xf32>
    %c0_5 = arith.constant 0 : index
    %c0_6 = arith.constant 0 : index
    %7 = vector.load %arg9[%c0_5, %c0_6] : memref<32x32xf32, #tpu.memory_space<vmem>>, vector<32x32xf32>
    %cst = arith.constant dense<0.000000e+00> : vector<8x32xf32>
    %8 = tpu.matmul %5, %7, %cst {dimension_numbers = #tpu.dot_dimension_numbers<[1], [0], [0], [1], [0, 0, 1, 1], [], []>} : vector<8x32xf32>, vector<32x32xf32>, vector<8x32xf32> -> vector<8x32xf32>
    %c0_7 = arith.constant 0 : index
    %c0_8 = arith.constant 0 : index
    %9 = vector.load %arg10[%c0_7, %c0_8] : memref<32x32xf32, #tpu.memory_space<vmem>>, vector<32x32xf32>
    %cst_9 = arith.constant dense<0.000000e+00> : vector<8x32xf32>
    %10 = tpu.matmul %6, %9, %cst_9 {dimension_numbers = #tpu.dot_dimension_numbers<[1], [0], [0], [1], [0, 0, 1, 1], [], []>} : vector<8x32xf32>, vector<32x32xf32>, vector<8x32xf32> -> vector<8x32xf32>
    %11 = arith.addf %8, %10 : vector<8x32xf32>
    %c0_10 = arith.constant 0 : index
    %c0_11 = arith.constant 0 : index
    %12 = vector.load %arg11[%c0_10, %c0_11] : memref<1x32xf32, #tpu.memory_space<vmem>>, vector<1x32xf32>
    %13 = vector.broadcast %12 : vector<1x32xf32> to vector<8x32xf32>
    %14 = arith.addf %11, %13 : vector<8x32xf32>
    %cst_12 = arith.constant 0.000000e+00 : f32
    %15 = vector.broadcast %cst_12 : f32 to vector<8x32xf32>
    %16 = arith.maximumf %14, %15 : vector<8x32xf32>
    %c0_13 = arith.constant 0 : index
    %c0_14 = arith.constant 0 : index
    %17 = vector.load %arg8[%c0_13, %c0_14] : memref<8x32xf32, #tpu.memory_space<vmem>>, vector<8x32xf32>
    %18 = arith.addf %16, %17 : vector<8x32xf32>
    %19 = tpu.iota {dimensions = array<i32: 0>} : vector<8x8xi32>
    %20 = tpu.iota {dimensions = array<i32: 1>} : vector<8x8xi32>
    %21 = arith.cmpi sge, %20, %19 : vector<8x8xi32>
    %c0_i32 = arith.constant 0 : i32
    %22 = vector.broadcast %c0_i32 : i32 to vector<8x8xi32>
    %23 = arith.cmpi eq, %19, %22 : vector<8x8xi32>
    %c0_15 = arith.constant 0 : index
    %c0_16 = arith.constant 0 : index
    %c0_17 = arith.constant 0 : index
    %24 = vector.load %arg7[%c0_15, %c0_16, %c0_17] : memref<1x8x8xf32, #tpu.memory_space<vmem>>, vector<1x8x8xf32>
    %25 = vector.shape_cast %24 : vector<1x8x8xf32> to vector<8x8xf32>
    %cst_18 = arith.constant -1.000000e+05 : f32
    %26 = vector.broadcast %cst_18 : f32 to vector<8x8xf32>
    %27 = arith.select %21, %26, %25 : vector<8x8xi1>, vector<8x8xf32>
    %cst_19 = arith.constant dense<0xFF800000> : vector<8xf32>
    %28 = vector.multi_reduction <maximumf>, %27, %cst_19 [1] : vector<8x8xf32> to vector<8xf32>
    %29 = vector.shape_cast %28 : vector<8xf32> to vector<8x1xf32>
    %30 = vector.broadcast %29 : vector<8x1xf32> to vector<8x8xf32>
    %31 = arith.subf %27, %30 : vector<8x8xf32>
    %32 = math.exp %31 : vector<8x8xf32>
    %cst_20 = arith.constant dense<0.000000e+00> : vector<8xf32>
    %33 = vector.multi_reduction <add>, %32, %cst_20 [1] : vector<8x8xf32> to vector<8xf32>
    %34 = vector.shape_cast %33 : vector<8xf32> to vector<8x1xf32>
    %35 = vector.broadcast %34 : vector<8x1xf32> to vector<8x8xf32>
    %36 = arith.divf %32, %35 : vector<8x8xf32>
    %cst_21 = arith.constant 0.000000e+00 : f32
    %37 = vector.broadcast %cst_21 : f32 to vector<8x8xf32>
    %38 = arith.select %23, %37, %36 : vector<8x8xi1>, vector<8x8xf32>
    %c0_22 = arith.constant 0 : index
    %c0_23 = arith.constant 0 : index
    %c0_24 = arith.constant 0 : index
    %39 = vector.load %arg5[%c0_22, %c0_23, %c0_24] : memref<1x1x8xf32, #tpu.memory_space<vmem>>, vector<1x1x8xf32>
    %40 = vector.shape_cast %39 : vector<1x1x8xf32> to vector<1x8xf32>
    %c0_25 = arith.constant 0 : index
    %c0_26 = arith.constant 0 : index
    %c0_27 = arith.constant 0 : index
    %41 = vector.load %arg6[%c0_25, %c0_26, %c0_27] : memref<1x8x1xf32, #tpu.memory_space<vmem>>, vector<1x8x1xf32>
    %42 = vector.shape_cast %41 : vector<1x8x1xf32> to vector<8x1xf32>
    %43 = vector.broadcast %40 : vector<1x8xf32> to vector<8x8xf32>
    %44 = vector.broadcast %42 : vector<8x1xf32> to vector<8x8xf32>
    %45 = arith.subf %43, %44 : vector<8x8xf32>
    %46 = math.absf %45 : vector<8x8xf32>
    %cst_28 = arith.constant 0.000000e+00 : f32
    %47 = vector.broadcast %cst_28 : f32 to vector<8x8xf32>
    %48 = arith.subf %47, %46 : vector<8x8xf32>
    %49 = math.exp %48 : vector<8x8xf32>
    %cst_29 = arith.constant -1.000000e+05 : f32
    %50 = vector.broadcast %cst_29 : f32 to vector<8x8xf32>
    %51 = arith.select %21, %50, %49 : vector<8x8xi1>, vector<8x8xf32>
    %cst_30 = arith.constant dense<0xFF800000> : vector<8xf32>
    %52 = vector.multi_reduction <maximumf>, %51, %cst_30 [1] : vector<8x8xf32> to vector<8xf32>
    %53 = vector.shape_cast %52 : vector<8xf32> to vector<8x1xf32>
    %54 = vector.broadcast %53 : vector<8x1xf32> to vector<8x8xf32>
    %55 = arith.subf %51, %54 : vector<8x8xf32>
    %56 = math.exp %55 : vector<8x8xf32>
    %cst_31 = arith.constant dense<0.000000e+00> : vector<8xf32>
    %57 = vector.multi_reduction <add>, %56, %cst_31 [1] : vector<8x8xf32> to vector<8xf32>
    %58 = vector.shape_cast %57 : vector<8xf32> to vector<8x1xf32>
    %59 = vector.broadcast %58 : vector<8x1xf32> to vector<8x8xf32>
    %60 = arith.divf %56, %59 : vector<8x8xf32>
    %cst_32 = arith.constant 0.000000e+00 : f32
    %61 = vector.broadcast %cst_32 : f32 to vector<8x8xf32>
    %62 = arith.select %23, %61, %60 : vector<8x8xi1>, vector<8x8xf32>
    %c0_33 = arith.constant 0 : index
    %63 = memref.load %arg1[%c0_33] : memref<2xf32, #tpu.memory_space<smem>>
    %c1 = arith.constant 1 : index
    %64 = memref.load %arg1[%c1] : memref<2xf32, #tpu.memory_space<smem>>
    %cst_34 = arith.constant 1.000000e+00 : f32
    %65 = arith.subf %cst_34, %63 : f32
    %cst_35 = arith.constant 1.000000e+00 : f32
    %66 = arith.subf %cst_35, %64 : f32
    %67 = arith.mulf %65, %66 : f32
    %cst_36 = arith.constant 1.000000e+00 : f32
    %68 = arith.subf %cst_36, %64 : f32
    %69 = arith.mulf %68, %63 : f32
    %70 = vector.broadcast %69 : f32 to vector<8x8xf32>
    %71 = arith.mulf %70, %38 : vector<8x8xf32>
    %72 = vector.broadcast %64 : f32 to vector<8x8xf32>
    %73 = arith.mulf %72, %62 : vector<8x8xf32>
    %74 = arith.addf %71, %73 : vector<8x8xf32>
    %75 = vector.shape_cast %21 : vector<8x8xi1> to vector<1x8x8xi1>
    %76 = vector.shape_cast %23 : vector<8x8xi1> to vector<1x8x8xi1>
    %77 = vector.shape_cast %1 : vector<8x32xf32> to vector<1x8x32xf32>
    %78 = vector.shape_cast %77 : vector<1x8x32xf32> to vector<1x8x32xf32>
    %79 = vector.broadcast %78 : vector<1x8x32xf32> to vector<4x8x32xf32>
    %c0_37 = arith.constant 0 : index
    %c0_38 = arith.constant 0 : index
    %c0_39 = arith.constant 0 : index
    %c0_40 = arith.constant 0 : index
    %80 = vector.load %arg12[%c0_37, %c0_38, %c0_39, %c0_40] : memref<2x4x32x8xf32, #tpu.memory_space<vmem>>, vector<1x4x32x8xf32>
    %81 = vector.shape_cast %80 : vector<1x4x32x8xf32> to vector<4x32x8xf32>
    %c0_41 = arith.constant 0 : index
    %c0_42 = arith.constant 0 : index
    %c0_43 = arith.constant 0 : index
    %c0_44 = arith.constant 0 : index
    %82 = vector.load %arg13[%c0_41, %c0_42, %c0_43, %c0_44] : memref<2x4x32x8xf32, #tpu.memory_space<vmem>>, vector<1x4x32x8xf32>
    %83 = vector.shape_cast %82 : vector<1x4x32x8xf32> to vector<4x32x8xf32>
    %c0_45 = arith.constant 0 : index
    %c0_46 = arith.constant 0 : index
    %c0_47 = arith.constant 0 : index
    %c0_48 = arith.constant 0 : index
    %84 = vector.load %arg14[%c0_45, %c0_46, %c0_47, %c0_48] : memref<2x4x32x8xf32, #tpu.memory_space<vmem>>, vector<1x4x32x8xf32>
    %85 = vector.shape_cast %84 : vector<1x4x32x8xf32> to vector<4x32x8xf32>
    %c0_49 = arith.constant 0 : index
    %c0_50 = arith.constant 0 : index
    %c0_51 = arith.constant 0 : index
    %c0_52 = arith.constant 0 : index
    %86 = vector.load %arg15[%c0_49, %c0_50, %c0_51, %c0_52] : memref<2x4x1x8xf32, #tpu.memory_space<vmem>>, vector<1x4x1x8xf32>
    %87 = vector.shape_cast %86 : vector<1x4x1x8xf32> to vector<4x1x8xf32>
    %c0_53 = arith.constant 0 : index
    %c0_54 = arith.constant 0 : index
    %c0_55 = arith.constant 0 : index
    %c0_56 = arith.constant 0 : index
    %88 = vector.load %arg16[%c0_53, %c0_54, %c0_55, %c0_56] : memref<2x4x1x8xf32, #tpu.memory_space<vmem>>, vector<1x4x1x8xf32>
    %89 = vector.shape_cast %88 : vector<1x4x1x8xf32> to vector<4x1x8xf32>
    %c0_57 = arith.constant 0 : index
    %c0_58 = arith.constant 0 : index
    %c0_59 = arith.constant 0 : index
    %c0_60 = arith.constant 0 : index
    %90 = vector.load %arg17[%c0_57, %c0_58, %c0_59, %c0_60] : memref<2x4x1x8xf32, #tpu.memory_space<vmem>>, vector<1x4x1x8xf32>
    %91 = vector.shape_cast %90 : vector<1x4x1x8xf32> to vector<4x1x8xf32>
    %92 = vector.shape_cast %18 : vector<8x32xf32> to vector<1x8x32xf32>
    %93 = vector.shape_cast %92 : vector<1x8x32xf32> to vector<1x8x32xf32>
    %94 = vector.broadcast %93 : vector<1x8x32xf32> to vector<4x8x32xf32>
    "tpu.trace_start"() <{level = 10 : i32, message = "hse,hed->hsd"}> : () -> ()
    %cst_61 = arith.constant dense<0.000000e+00> : vector<4x8x8xf32>
    %95 = tpu.matmul %79, %81, %cst_61 {dimension_numbers = #tpu.dot_dimension_numbers<[2], [1], [1], [2], [0, 0, 0, 1, 1, 2], [0], [0]>} : vector<4x8x32xf32>, vector<4x32x8xf32>, vector<4x8x8xf32> -> vector<4x8x8xf32>
    "tpu.trace_stop"() : () -> ()
    %96 = vector.broadcast %87 : vector<4x1x8xf32> to vector<4x8x8xf32>
    %97 = arith.addf %95, %96 : vector<4x8x8xf32>
    "tpu.trace_start"() <{level = 10 : i32, message = "hse,hed->hsd"}> : () -> ()
    %cst_62 = arith.constant dense<0.000000e+00> : vector<4x8x8xf32>
    %98 = tpu.matmul %94, %83, %cst_62 {dimension_numbers = #tpu.dot_dimension_numbers<[2], [1], [1], [2], [0, 0, 0, 1, 1, 2], [0], [0]>} : vector<4x8x32xf32>, vector<4x32x8xf32>, vector<4x8x8xf32> -> vector<4x8x8xf32>
    "tpu.trace_stop"() : () -> ()
    %99 = vector.broadcast %89 : vector<4x1x8xf32> to vector<4x8x8xf32>
    %100 = arith.addf %98, %99 : vector<4x8x8xf32>
    "tpu.trace_start"() <{level = 10 : i32, message = "hse,hed->hsd"}> : () -> ()
    %cst_63 = arith.constant dense<0.000000e+00> : vector<4x8x8xf32>
    %101 = tpu.matmul %94, %85, %cst_63 {dimension_numbers = #tpu.dot_dimension_numbers<[2], [1], [1], [2], [0, 0, 0, 1, 1, 2], [0], [0]>} : vector<4x8x32xf32>, vector<4x32x8xf32>, vector<4x8x8xf32> -> vector<4x8x8xf32>
    "tpu.trace_stop"() : () -> ()
    %102 = vector.broadcast %91 : vector<4x1x8xf32> to vector<4x8x8xf32>
    %103 = arith.addf %101, %102 : vector<4x8x8xf32>
    "tpu.trace_start"() <{level = 10 : i32, message = "hsd,htd->hst"}> : () -> ()
    %cst_64 = arith.constant dense<0.000000e+00> : vector<4x8x8xf32>
    %104 = tpu.matmul %97, %100, %cst_64 {dimension_numbers = #tpu.dot_dimension_numbers<[2], [2], [1], [1], [0, 0, 0, 1, 1, 1], [0], [0]>} : vector<4x8x8xf32>, vector<4x8x8xf32>, vector<4x8x8xf32> -> vector<4x8x8xf32>
    "tpu.trace_stop"() : () -> ()
    %cst_65 = arith.constant 0.353553385 : f32
    %105 = vector.broadcast %cst_65 : f32 to vector<4x8x8xf32>
    %106 = arith.mulf %104, %105 : vector<4x8x8xf32>
    %cst_66 = arith.constant -1.000000e+32 : f32
    %107 = vector.shape_cast %75 : vector<1x8x8xi1> to vector<1x8x8xi1>
    %108 = vector.broadcast %107 : vector<1x8x8xi1> to vector<4x8x8xi1>
    %109 = vector.broadcast %cst_66 : f32 to vector<4x8x8xf32>
    %110 = arith.select %108, %109, %106 : vector<4x8x8xi1>, vector<4x8x8xf32>
    %cst_67 = arith.constant dense<0xFF800000> : vector<4x8xf32>
    %111 = vector.multi_reduction <maximumf>, %110, %cst_67 [2] : vector<4x8x8xf32> to vector<4x8xf32>
    %112 = vector.shape_cast %111 : vector<4x8xf32> to vector<4x8x1xf32>
    %113 = vector.broadcast %112 : vector<4x8x1xf32> to vector<4x8x8xf32>
    %114 = arith.subf %110, %113 : vector<4x8x8xf32>
    %115 = math.exp %114 : vector<4x8x8xf32>
    %cst_68 = arith.constant dense<0.000000e+00> : vector<4x8xf32>
    %116 = vector.multi_reduction <add>, %115, %cst_68 [2] : vector<4x8x8xf32> to vector<4x8xf32>
    %117 = vector.shape_cast %116 : vector<4x8xf32> to vector<4x8x1xf32>
    %118 = vector.broadcast %117 : vector<4x8x1xf32> to vector<4x8x8xf32>
    %119 = arith.divf %115, %118 : vector<4x8x8xf32>
    %cst_69 = arith.constant 0.000000e+00 : f32
    %120 = vector.shape_cast %76 : vector<1x8x8xi1> to vector<1x8x8xi1>
    %121 = vector.broadcast %120 : vector<1x8x8xi1> to vector<4x8x8xi1>
    %122 = vector.broadcast %cst_69 : f32 to vector<4x8x8xf32>
    %123 = arith.select %121, %122, %119 : vector<4x8x8xi1>, vector<4x8x8xf32>
    %124 = vector.broadcast %67 : f32 to vector<4x8x8xf32>
    %125 = arith.mulf %124, %123 : vector<4x8x8xf32>
    %126 = vector.shape_cast %74 : vector<8x8xf32> to vector<1x8x8xf32>
    %127 = vector.broadcast %126 : vector<1x8x8xf32> to vector<4x8x8xf32>
    %128 = arith.addf %125, %127 : vector<4x8x8xf32>
    "tpu.trace_start"() <{level = 10 : i32, message = "hst,htd->hsd"}> : () -> ()
    %cst_70 = arith.constant dense<0.000000e+00> : vector<4x8x8xf32>
    %129 = tpu.matmul %128, %103, %cst_70 {dimension_numbers = #tpu.dot_dimension_numbers<[2], [1], [1], [2], [0, 0, 0, 1, 1, 2], [0], [0]>} : vector<4x8x8xf32>, vector<4x8x8xf32>, vector<4x8x8xf32> -> vector<4x8x8xf32>
    "tpu.trace_stop"() : () -> ()
    %130 = vector.extract_strided_slice %129 {offsets = [0, 0, 0], sizes = [1, 8, 8], strides = [1, 1, 1]} : vector<4x8x8xf32> to vector<1x8x8xf32>
    %131 = vector.shape_cast %130 : vector<1x8x8xf32> to vector<8x8xf32>
    %132 = vector.extract_strided_slice %129 {offsets = [1, 0, 0], sizes = [1, 8, 8], strides = [1, 1, 1]} : vector<4x8x8xf32> to vector<1x8x8xf32>
    %133 = vector.shape_cast %132 : vector<1x8x8xf32> to vector<8x8xf32>
    %134 = vector.extract_strided_slice %129 {offsets = [2, 0, 0], sizes = [1, 8, 8], strides = [1, 1, 1]} : vector<4x8x8xf32> to vector<1x8x8xf32>
    %135 = vector.shape_cast %134 : vector<1x8x8xf32> to vector<8x8xf32>
    %136 = vector.extract_strided_slice %129 {offsets = [3, 0, 0], sizes = [1, 8, 8], strides = [1, 1, 1]} : vector<4x8x8xf32> to vector<1x8x8xf32>
    %137 = vector.shape_cast %136 : vector<1x8x8xf32> to vector<8x8xf32>
    %138 = tpu.concatenate %131, %133, %135, %137 in 1 : vector<8x8xf32>, vector<8x8xf32>, vector<8x8xf32>, vector<8x8xf32> -> vector<8x32xf32>
    %c1_71 = arith.constant 1 : index
    %c0_72 = arith.constant 0 : index
    %c0_73 = arith.constant 0 : index
    %c0_74 = arith.constant 0 : index
    %139 = vector.load %arg12[%c1_71, %c0_72, %c0_73, %c0_74] : memref<2x4x32x8xf32, #tpu.memory_space<vmem>>, vector<1x4x32x8xf32>
    %140 = vector.shape_cast %139 : vector<1x4x32x8xf32> to vector<4x32x8xf32>
    %c1_75 = arith.constant 1 : index
    %c0_76 = arith.constant 0 : index
    %c0_77 = arith.constant 0 : index
    %c0_78 = arith.constant 0 : index
    %141 = vector.load %arg13[%c1_75, %c0_76, %c0_77, %c0_78] : memref<2x4x32x8xf32, #tpu.memory_space<vmem>>, vector<1x4x32x8xf32>
    %142 = vector.shape_cast %141 : vector<1x4x32x8xf32> to vector<4x32x8xf32>
    %c1_79 = arith.constant 1 : index
    %c0_80 = arith.constant 0 : index
    %c0_81 = arith.constant 0 : index
    %c0_82 = arith.constant 0 : index
    %143 = vector.load %arg14[%c1_79, %c0_80, %c0_81, %c0_82] : memref<2x4x32x8xf32, #tpu.memory_space<vmem>>, vector<1x4x32x8xf32>
    %144 = vector.shape_cast %143 : vector<1x4x32x8xf32> to vector<4x32x8xf32>
    %c1_83 = arith.constant 1 : index
    %c0_84 = arith.constant 0 : index
    %c0_85 = arith.constant 0 : index
    %c0_86 = arith.constant 0 : index
    %145 = vector.load %arg15[%c1_83, %c0_84, %c0_85, %c0_86] : memref<2x4x1x8xf32, #tpu.memory_space<vmem>>, vector<1x4x1x8xf32>
    %146 = vector.shape_cast %145 : vector<1x4x1x8xf32> to vector<4x1x8xf32>
    %c1_87 = arith.constant 1 : index
    %c0_88 = arith.constant 0 : index
    %c0_89 = arith.constant 0 : index
    %c0_90 = arith.constant 0 : index
    %147 = vector.load %arg16[%c1_87, %c0_88, %c0_89, %c0_90] : memref<2x4x1x8xf32, #tpu.memory_space<vmem>>, vector<1x4x1x8xf32>
    %148 = vector.shape_cast %147 : vector<1x4x1x8xf32> to vector<4x1x8xf32>
    %c1_91 = arith.constant 1 : index
    %c0_92 = arith.constant 0 : index
    %c0_93 = arith.constant 0 : index
    %c0_94 = arith.constant 0 : index
    %149 = vector.load %arg17[%c1_91, %c0_92, %c0_93, %c0_94] : memref<2x4x1x8xf32, #tpu.memory_space<vmem>>, vector<1x4x1x8xf32>
    %150 = vector.shape_cast %149 : vector<1x4x1x8xf32> to vector<4x1x8xf32>
    %151 = vector.shape_cast %138 : vector<8x32xf32> to vector<1x8x32xf32>
    %152 = vector.shape_cast %151 : vector<1x8x32xf32> to vector<1x8x32xf32>
    %153 = vector.broadcast %152 : vector<1x8x32xf32> to vector<4x8x32xf32>
    "tpu.trace_start"() <{level = 10 : i32, message = "hse,hed->hsd"}> : () -> ()
    %cst_95 = arith.constant dense<0.000000e+00> : vector<4x8x8xf32>
    %154 = tpu.matmul %79, %140, %cst_95 {dimension_numbers = #tpu.dot_dimension_numbers<[2], [1], [1], [2], [0, 0, 0, 1, 1, 2], [0], [0]>} : vector<4x8x32xf32>, vector<4x32x8xf32>, vector<4x8x8xf32> -> vector<4x8x8xf32>
    "tpu.trace_stop"() : () -> ()
    %155 = vector.broadcast %146 : vector<4x1x8xf32> to vector<4x8x8xf32>
    %156 = arith.addf %154, %155 : vector<4x8x8xf32>
    "tpu.trace_start"() <{level = 10 : i32, message = "hse,hed->hsd"}> : () -> ()
    %cst_96 = arith.constant dense<0.000000e+00> : vector<4x8x8xf32>
    %157 = tpu.matmul %153, %142, %cst_96 {dimension_numbers = #tpu.dot_dimension_numbers<[2], [1], [1], [2], [0, 0, 0, 1, 1, 2], [0], [0]>} : vector<4x8x32xf32>, vector<4x32x8xf32>, vector<4x8x8xf32> -> vector<4x8x8xf32>
    "tpu.trace_stop"() : () -> ()
    %158 = vector.broadcast %148 : vector<4x1x8xf32> to vector<4x8x8xf32>
    %159 = arith.addf %157, %158 : vector<4x8x8xf32>
    "tpu.trace_start"() <{level = 10 : i32, message = "hse,hed->hsd"}> : () -> ()
    %cst_97 = arith.constant dense<0.000000e+00> : vector<4x8x8xf32>
    %160 = tpu.matmul %153, %144, %cst_97 {dimension_numbers = #tpu.dot_dimension_numbers<[2], [1], [1], [2], [0, 0, 0, 1, 1, 2], [0], [0]>} : vector<4x8x32xf32>, vector<4x32x8xf32>, vector<4x8x8xf32> -> vector<4x8x8xf32>
    "tpu.trace_stop"() : () -> ()
    %161 = vector.broadcast %150 : vector<4x1x8xf32> to vector<4x8x8xf32>
    %162 = arith.addf %160, %161 : vector<4x8x8xf32>
    "tpu.trace_start"() <{level = 10 : i32, message = "hsd,htd->hst"}> : () -> ()
    %cst_98 = arith.constant dense<0.000000e+00> : vector<4x8x8xf32>
    %163 = tpu.matmul %156, %159, %cst_98 {dimension_numbers = #tpu.dot_dimension_numbers<[2], [2], [1], [1], [0, 0, 0, 1, 1, 1], [0], [0]>} : vector<4x8x8xf32>, vector<4x8x8xf32>, vector<4x8x8xf32> -> vector<4x8x8xf32>
    "tpu.trace_stop"() : () -> ()
    %cst_99 = arith.constant 0.353553385 : f32
    %164 = vector.broadcast %cst_99 : f32 to vector<4x8x8xf32>
    %165 = arith.mulf %163, %164 : vector<4x8x8xf32>
    %cst_100 = arith.constant -1.000000e+32 : f32
    %166 = vector.shape_cast %75 : vector<1x8x8xi1> to vector<1x8x8xi1>
    %167 = vector.broadcast %166 : vector<1x8x8xi1> to vector<4x8x8xi1>
    %168 = vector.broadcast %cst_100 : f32 to vector<4x8x8xf32>
    %169 = arith.select %167, %168, %165 : vector<4x8x8xi1>, vector<4x8x8xf32>
    %cst_101 = arith.constant dense<0xFF800000> : vector<4x8xf32>
    %170 = vector.multi_reduction <maximumf>, %169, %cst_101 [2] : vector<4x8x8xf32> to vector<4x8xf32>
    %171 = vector.shape_cast %170 : vector<4x8xf32> to vector<4x8x1xf32>
    %172 = vector.broadcast %171 : vector<4x8x1xf32> to vector<4x8x8xf32>
    %173 = arith.subf %169, %172 : vector<4x8x8xf32>
    %174 = math.exp %173 : vector<4x8x8xf32>
    %cst_102 = arith.constant dense<0.000000e+00> : vector<4x8xf32>
    %175 = vector.multi_reduction <add>, %174, %cst_102 [2] : vector<4x8x8xf32> to vector<4x8xf32>
    %176 = vector.shape_cast %175 : vector<4x8xf32> to vector<4x8x1xf32>
    %177 = vector.broadcast %176 : vector<4x8x1xf32> to vector<4x8x8xf32>
    %178 = arith.divf %174, %177 : vector<4x8x8xf32>
    %cst_103 = arith.constant 0.000000e+00 : f32
    %179 = vector.shape_cast %76 : vector<1x8x8xi1> to vector<1x8x8xi1>
    %180 = vector.broadcast %179 : vector<1x8x8xi1> to vector<4x8x8xi1>
    %181 = vector.broadcast %cst_103 : f32 to vector<4x8x8xf32>
    %182 = arith.select %180, %181, %178 : vector<4x8x8xi1>, vector<4x8x8xf32>
    %183 = vector.broadcast %67 : f32 to vector<4x8x8xf32>
    %184 = arith.mulf %183, %182 : vector<4x8x8xf32>
    %185 = vector.shape_cast %74 : vector<8x8xf32> to vector<1x8x8xf32>
    %186 = vector.broadcast %185 : vector<1x8x8xf32> to vector<4x8x8xf32>
    %187 = arith.addf %184, %186 : vector<4x8x8xf32>
    "tpu.trace_start"() <{level = 10 : i32, message = "hst,htd->hsd"}> : () -> ()
    %cst_104 = arith.constant dense<0.000000e+00> : vector<4x8x8xf32>
    %188 = tpu.matmul %187, %162, %cst_104 {dimension_numbers = #tpu.dot_dimension_numbers<[2], [1], [1], [2], [0, 0, 0, 1, 1, 2], [0], [0]>} : vector<4x8x8xf32>, vector<4x8x8xf32>, vector<4x8x8xf32> -> vector<4x8x8xf32>
    "tpu.trace_stop"() : () -> ()
    %189 = vector.extract_strided_slice %188 {offsets = [0, 0, 0], sizes = [1, 8, 8], strides = [1, 1, 1]} : vector<4x8x8xf32> to vector<1x8x8xf32>
    %190 = vector.shape_cast %189 : vector<1x8x8xf32> to vector<8x8xf32>
    %191 = vector.extract_strided_slice %188 {offsets = [1, 0, 0], sizes = [1, 8, 8], strides = [1, 1, 1]} : vector<4x8x8xf32> to vector<1x8x8xf32>
    %192 = vector.shape_cast %191 : vector<1x8x8xf32> to vector<8x8xf32>
    %193 = vector.extract_strided_slice %188 {offsets = [2, 0, 0], sizes = [1, 8, 8], strides = [1, 1, 1]} : vector<4x8x8xf32> to vector<1x8x8xf32>
    %194 = vector.shape_cast %193 : vector<1x8x8xf32> to vector<8x8xf32>
    %195 = vector.extract_strided_slice %188 {offsets = [3, 0, 0], sizes = [1, 8, 8], strides = [1, 1, 1]} : vector<4x8x8xf32> to vector<1x8x8xf32>
    %196 = vector.shape_cast %195 : vector<1x8x8xf32> to vector<8x8xf32>
    %197 = tpu.concatenate %190, %192, %194, %196 in 1 : vector<8x8xf32>, vector<8x8xf32>, vector<8x8xf32>, vector<8x8xf32> -> vector<8x32xf32>
    %cst_105 = arith.constant 0.000000e+00 : f32
    %198 = vector.broadcast %cst_105 : f32 to vector<8x32xf32>
    %199 = arith.maximumf %197, %198 : vector<8x32xf32>
    %200 = arith.addf %138, %199 : vector<8x32xf32>
    %c0_106 = arith.constant 0 : index
    %c0_107 = arith.constant 0 : index
    %201 = vector.load %arg18[%c0_106, %c0_107] : memref<1x32xf32, #tpu.memory_space<vmem>>, vector<1x32xf32>
    %202 = vector.broadcast %201 : vector<1x32xf32> to vector<8x32xf32>
    %203 = arith.mulf %200, %202 : vector<8x32xf32>
    %cst_108 = arith.constant dense<0.000000e+00> : vector<8xf32>
    %204 = vector.multi_reduction <add>, %203, %cst_108 [1] : vector<8x32xf32> to vector<8xf32>
    %205 = vector.shape_cast %204 : vector<8xf32> to vector<8x1xf32>
    %c0_109 = arith.constant 0 : index
    %206 = memref.load %arg2[%c0_109] : memref<1xf32, #tpu.memory_space<smem>>
    %207 = vector.broadcast %206 : f32 to vector<8x1xf32>
    %208 = arith.addf %205, %207 : vector<8x1xf32>
    %cst_110 = arith.constant 0.000000e+00 : f32
    %209 = vector.broadcast %cst_110 : f32 to vector<8x1xf32>
    %210 = arith.subf %209, %208 : vector<8x1xf32>
    %211 = math.exp %210 : vector<8x1xf32>
    %cst_111 = arith.constant 1.000000e+00 : f32
    %212 = vector.broadcast %cst_111 : f32 to vector<8x1xf32>
    %213 = arith.addf %212, %211 : vector<8x1xf32>
    %cst_112 = arith.constant 1.000000e+00 : f32
    %214 = vector.broadcast %cst_112 : f32 to vector<8x1xf32>
    %215 = arith.divf %214, %213 : vector<8x1xf32>
    %c0_113 = arith.constant 0 : index
    %c0_114 = arith.constant 0 : index
    %c0_115 = arith.constant 0 : index
    %216 = vector.load %arg19[%c0_113, %c0_114, %c0_115] : memref<1x8x1xf32, #tpu.memory_space<vmem>>, vector<1x8x1xf32>
    %217 = vector.shape_cast %216 : vector<1x8x1xf32> to vector<8x1xf32>
    %218 = vector.shape_cast %215 : vector<8x1xf32> to vector<1x8x1xf32>
    tpu.vector_store %arg19[%c0_113, %c0_114, %c0_115], %218 {strides = array<i32>} : memref<1x8x1xf32, #tpu.memory_space<vmem>>, vector<1x8x1xf32>,
    return
  }
  func.func @transform_0(%arg0: i32) -> i32 {
    %c0_i32 = arith.constant 0 : i32
    %c0_i32_0 = arith.constant 0 : i32
    return %c0_i32 : i32
  }
  func.func @transform_1(%arg0: i32) -> i32 {
    %c0_i32 = arith.constant 0 : i32
    %c0_i32_0 = arith.constant 0 : i32
    return %c0_i32 : i32
  }
  func.func @transform_2(%arg0: i32) -> (i32, i32, i32) {
    %c0_i32 = arith.constant 0 : i32
    %c0_i32_0 = arith.constant 0 : i32
    %c0_i32_1 = arith.constant 0 : i32
    return %arg0, %c0_i32, %c0_i32_0 : i32, i32, i32
  }
  func.func @transform_3(%arg0: i32) -> (i32, i32, i32) {
    %c0_i32 = arith.constant 0 : i32
    %c0_i32_0 = arith.constant 0 : i32
    %c0_i32_1 = arith.constant 0 : i32
    return %arg0, %c0_i32, %c0_i32_0 : i32, i32, i32
  }
  func.func @transform_4(%arg0: i32) -> (i32, i32, i32) {
    %c0_i32 = arith.constant 0 : i32
    %c0_i32_0 = arith.constant 0 : i32
    %c0_i32_1 = arith.constant 0 : i32
    return %arg0, %c0_i32, %c0_i32_0 : i32, i32, i32
  }
  func.func @transform_5(%arg0: i32) -> (i32, i32, i32) {
    %c0_i32 = arith.constant 0 : i32
    %c0_i32_0 = arith.constant 0 : i32
    %c0_i32_1 = arith.constant 0 : i32
    return %arg0, %c0_i32, %c0_i32_0 : i32, i32, i32
  }
  func.func @transform_6(%arg0: i32) -> (i32, i32, i32) {
    %c0_i32 = arith.constant 0 : i32
    %c0_i32_0 = arith.constant 0 : i32
    %c0_i32_1 = arith.constant 0 : i32
    return %arg0, %c0_i32, %c0_i32_0 : i32, i32, i32
  }
  func.func @transform_7(%arg0: i32) -> (i32, i32) {
    %c0_i32 = arith.constant 0 : i32
    %c0_i32_0 = arith.constant 0 : i32
    %c0_i32_1 = arith.constant 0 : i32
    return %c0_i32, %c0_i32_0 : i32, i32
  }
  func.func @transform_8(%arg0: i32) -> (i32, i32) {
    %c0_i32 = arith.constant 0 : i32
    %c0_i32_0 = arith.constant 0 : i32
    %c0_i32_1 = arith.constant 0 : i32
    return %c0_i32, %c0_i32_0 : i32, i32
  }
  func.func @transform_9(%arg0: i32) -> (i32, i32) {
    %c0_i32 = arith.constant 0 : i32
    %c0_i32_0 = arith.constant 0 : i32
    %c0_i32_1 = arith.constant 0 : i32
    return %c0_i32, %c0_i32_0 : i32, i32
  }
  func.func @transform_10(%arg0: i32) -> (i32, i32) {
    %c0_i32 = arith.constant 0 : i32
    %c0_i32_0 = arith.constant 0 : i32
    %c0_i32_1 = arith.constant 0 : i32
    return %c0_i32, %c0_i32_0 : i32, i32
  }
  func.func @transform_11(%arg0: i32) -> (i32, i32, i32, i32) {
    %c0_i32 = arith.constant 0 : i32
    %c0_i32_0 = arith.constant 0 : i32
    %c0_i32_1 = arith.constant 0 : i32
    %c0_i32_2 = arith.constant 0 : i32
    %c0_i32_3 = arith.constant 0 : i32
    return %c0_i32, %c0_i32_0, %c0_i32_1, %c0_i32_2 : i32, i32, i32, i32
  }
  func.func @transform_12(%arg0: i32) -> (i32, i32, i32, i32) {
    %c0_i32 = arith.constant 0 : i32
    %c0_i32_0 = arith.constant 0 : i32
    %c0_i32_1 = arith.constant 0 : i32
    %c0_i32_2 = arith.constant 0 : i32
    %c0_i32_3 = arith.constant 0 : i32
    return %c0_i32, %c0_i32_0, %c0_i32_1, %c0_i32_2 : i32, i32, i32, i32
  }
  func.func @transform_13(%arg0: i32) -> (i32, i32, i32, i32) {
    %c0_i32 = arith.constant 0 : i32
    %c0_i32_0 = arith.constant 0 : i32
    %c0_i32_1 = arith.constant 0 : i32
    %c0_i32_2 = arith.constant 0 : i32
    %c0_i32_3 = arith.constant 0 : i32
    return %c0_i32, %c0_i32_0, %c0_i32_1, %c0_i32_2 : i32, i32, i32, i32
  }
  func.func @transform_14(%arg0: i32) -> (i32, i32, i32, i32) {
    %c0_i32 = arith.constant 0 : i32
    %c0_i32_0 = arith.constant 0 : i32
    %c0_i32_1 = arith.constant 0 : i32
    %c0_i32_2 = arith.constant 0 : i32
    %c0_i32_3 = arith.constant 0 : i32
    return %c0_i32, %c0_i32_0, %c0_i32_1, %c0_i32_2 : i32, i32, i32, i32
  }
  func.func @transform_15(%arg0: i32) -> (i32, i32, i32, i32) {
    %c0_i32 = arith.constant 0 : i32
    %c0_i32_0 = arith.constant 0 : i32
    %c0_i32_1 = arith.constant 0 : i32
    %c0_i32_2 = arith.constant 0 : i32
    %c0_i32_3 = arith.constant 0 : i32
    return %c0_i32, %c0_i32_0, %c0_i32_1, %c0_i32_2 : i32, i32, i32, i32
  }
  func.func @transform_16(%arg0: i32) -> (i32, i32, i32, i32) {
    %c0_i32 = arith.constant 0 : i32
    %c0_i32_0 = arith.constant 0 : i32
    %c0_i32_1 = arith.constant 0 : i32
    %c0_i32_2 = arith.constant 0 : i32
    %c0_i32_3 = arith.constant 0 : i32
    return %c0_i32, %c0_i32_0, %c0_i32_1, %c0_i32_2 : i32, i32, i32, i32
  }
  func.func @transform_17(%arg0: i32) -> (i32, i32) {
    %c0_i32 = arith.constant 0 : i32
    %c0_i32_0 = arith.constant 0 : i32
    %c0_i32_1 = arith.constant 0 : i32
    return %c0_i32, %c0_i32_0 : i32, i32
  }
  func.func @transform_18(%arg0: i32) -> (i32, i32, i32) {
    %c0_i32 = arith.constant 0 : i32
    %c0_i32_0 = arith.constant 0 : i32
    %c0_i32_1 = arith.constant 0 : i32
    return %arg0, %c0_i32, %c0_i32_0 : i32, i32, i32
  }
}

</mosaic_0001>

<llo_original>
// kernel: rkt_forward.1
$region0: #{rkt_forward.1}
  #allocation0 [shape = 'u32[]', space=smem, size = 0x4, offset = 0x4, fixed_abs, tag = 'smem constant byte address 0x4 - core index']
  #allocation1 [shape = 'u32[144,128]{1,0:T(1,128)}', space=vmem, size = 0x12000, scoped, tag = 'internal scratch']
  #allocation2 [shape = 'f32[1]{0:T(128)S(6)}', space=smem, size = 0x200, scoped, tag = 'scoped memory for rkt_forward.1']
  %s0 = inlined_call_operand.vmem [shape: f32[2], index: 0, kind: input, shape index: {}]
  %s1 = inlined_call_operand.<no memory space> [shape: f32[1], index: 1, kind: input, shape index: {}]
  %s2 = inlined_call_operand.vmem [shape: f32[2,8,32], index: 2, kind: input, shape index: {}]
  %s3 = inlined_call_operand.vmem [shape: f32[2,8,1], index: 3, kind: input, shape index: {}]
  %s4 = inlined_call_operand.vmem [shape: f32[2,1,8], index: 4, kind: input, shape index: {}]
  %s5 = inlined_call_operand.vmem [shape: f32[2,8,1], index: 5, kind: input, shape index: {}]
  %s6 = inlined_call_operand.vmem [shape: f32[2,8,8], index: 6, kind: input, shape index: {}]
  %s7 = inlined_call_operand.vmem [shape: f32[8,32], index: 7, kind: input, shape index: {}]
  %s8 = inlined_call_operand.vmem [shape: f32[32,32], index: 8, kind: input, shape index: {}]
  %s9 = inlined_call_operand.vmem [shape: f32[32,32], index: 9, kind: input, shape index: {}]
  %s10 = inlined_call_operand.vmem [shape: f32[1,32], index: 10, kind: input, shape index: {}]
  %s11 = inlined_call_operand.vmem [shape: f32[2,4,32,8], index: 11, kind: input, shape index: {}]
  %s12 = inlined_call_operand.vmem [shape: f32[2,4,32,8], index: 12, kind: input, shape index: {}]
  %s13 = inlined_call_operand.vmem [shape: f32[2,4,32,8], index: 13, kind: input, shape index: {}]
  %s14 = inlined_call_operand.vmem [shape: f32[2,4,1,8], index: 14, kind: input, shape index: {}]
  %s15 = inlined_call_operand.vmem [shape: f32[2,4,1,8], index: 15, kind: input, shape index: {}]
  %s16 = inlined_call_operand.vmem [shape: f32[2,4,1,8], index: 16, kind: input, shape index: {}]
  %s17 = inlined_call_operand.vmem [shape: f32[1,32], index: 17, kind: input, shape index: {}]
  %s18 = inlined_call_operand.vmem [shape: f32[2,8,1], index: 18, kind: output, shape index: {}]
  %s19 = sld [smem:[#allocation0]]
  $region109: #{rkt_forward.1} parent=0
    _
  %s21 = ssub.s32 1, %s19
  %s22 = scalar_select 0, %s21, %s19
  %23 = sst [smem:[#allocation2]] %s1
  $region1: #{rkt_forward.1} parent=0
    #allocation3 [shape = 'u8[512]{0}', space=smem, size = 0x200, scoped, tag = 'input window, operand 0, single buffered']
    #allocation4 [shape = 's32[2]{0}', space=sflag, size = 0x8, scoped, tag = 'scoped memory for rkt_forward.1']
    %24 = vsyncpa [#allocation4], 0
    loop: start=0, step=1, limit=4
    $region2: #{rkt_forward.1} parent=1 // loop_pre_header
      _
    $region3: #{rkt_forward.1} parent=1 // loop_header
      %s26 = sphi 0, %s30
      %p27 = scmp.ge.s32.totalorder %s26, 4
      %s34 = sphi 0, %s34
      %s36 = sphi 0, %s34
      %s37 = sphi 0, %s36
      %s51 = sphi 0, %s37
      %s55 = sphi 0, %s55
      %s57 = sphi 0, %s55
      %s58 = sphi 0, %s57
      %s72 = sphi 0, %s58
      %s78 = sphi 0, %s80
      %s81 = sphi 0, %s78
      %s82 = sphi 0, %s81
      %s98 = sphi 0, %s82
      %s104 = sphi 0, %s106
      %s107 = sphi 0, %s104
      %s108 = sphi 0, %s107
      %s124 = sphi 0, %s108
      %s130 = sphi 0, %s132
      %s133 = sphi 0, %s130
      %s134 = sphi 0, %s133
      %s150 = sphi 0, %s134
      %s156 = sphi 0, %s158
      %s159 = sphi 0, %s156
      %s160 = sphi 0, %s159
      %s176 = sphi 0, %s160
      %s182 = sphi 0, %s184
      %s185 = sphi 0, %s182
      %s186 = sphi 0, %s185
      %s202 = sphi 0, %s186
      %s206 = sphi 0, %s206
      %s208 = sphi 0, %s206
      %s209 = sphi 0, %s208
      %s223 = sphi 0, %s209
      %s227 = sphi 0, %s227
      %s229 = sphi 0, %s227
      %s230 = sphi 0, %s229
      %s244 = sphi 0, %s230
      %s248 = sphi 0, %s248
      %s250 = sphi 0, %s248
      %s251 = sphi 0, %s250
      %s265 = sphi 0, %s251
      %s269 = sphi 0, %s269
      %s271 = sphi 0, %s269
      %s272 = sphi 0, %s271
      %s286 = sphi 0, %s272
      %s290 = sphi 0, %s290
      %s292 = sphi 0, %s290
      %s293 = sphi 0, %s292
      %s307 = sphi 0, %s293
      %s311 = sphi 0, %s311
      %s313 = sphi 0, %s311
      %s314 = sphi 0, %s313
      %s328 = sphi 0, %s314
      %s332 = sphi 0, %s332
      %s334 = sphi 0, %s332
      %s335 = sphi 0, %s334
      %s349 = sphi 0, %s335
      %s353 = sphi 0, %s353
      %s355 = sphi 0, %s353
      %s356 = sphi 0, %s355
      %s370 = sphi 0, %s356
      %s374 = sphi 0, %s374
      %s376 = sphi 0, %s374
      %s377 = sphi 0, %s376
      %s391 = sphi 0, %s377
      %s395 = sphi 0, %s395
      %s397 = sphi 0, %s395
      %s398 = sphi 0, %s397
      %s412 = sphi 0, %s398
      %s416 = sphi 0, %s416
      %s418 = sphi 0, %s416
      %s419 = sphi 0, %s418
      %s433 = sphi 0, %s419
      %s439 = sphi 0, %s441
      %s442 = sphi 0, %s439
      %s443 = sphi 0, %s442
      %s459 = sphi 0, %s443
    $region4: #{rkt_forward.1} parent=1 // loop_header_branch
      %29 = sbr.rel (%p27) target = $region8
    $region5: #{rkt_forward.1} parent=1 // loop_body
      %s31 = ssub.s32 %s26, 1
      %s32 = ssub.s32 %s26, 2
      %s33 = sadd.s32 %s26, 1
      %s35 = sadd.s32 %s34, 1
      %p38 = scmp.eq.s32.totalorder %s26, 1
      %p39 = scmp.ne.s32.totalorder %s34, %s36
      %p40 = scmp.eq.s32.totalorder %s26, 0
      %p41 = por %p39, %p40
      %p42 = scmp.ne.s32.totalorder %s34, %s36
      %p43 = scmp.eq.s32.totalorder %s31, 1
      %p44 = por %p42, %p43
      %p45 = scmp.ne.s32.totalorder %s36, %s37
      %p46 = scmp.eq.s32.totalorder %s31, 0
      %p47 = por %p45, %p46
      %p48 = scmp.ne.s32.totalorder %s36, %s37
      %p49 = scmp.eq.s32.totalorder %s32, 1
      %p50 = por %p48, %p49
      %p52 = scmp.ne.s32.totalorder %s37, %s51
      %p53 = scmp.eq.s32.totalorder %s32, 0
      %p54 = por %p52, %p53
      %s56 = sadd.s32 %s55, 1
      %p59 = scmp.eq.s32.totalorder %s26, 1
      %p60 = scmp.ne.s32.totalorder %s55, %s57
      %p61 = scmp.eq.s32.totalorder %s26, 0
      %p62 = por %p60, %p61
      %p63 = scmp.ne.s32.totalorder %s55, %s57
      %p64 = scmp.eq.s32.totalorder %s31, 1
      %p65 = por %p63, %p64
      %p66 = scmp.ne.s32.totalorder %s57, %s58
      %p67 = scmp.eq.s32.totalorder %s31, 0
      %p68 = por %p66, %p67
      %p69 = scmp.ne.s32.totalorder %s57, %s58
      %p70 = scmp.eq.s32.totalorder %s32, 1
      %p71 = por %p69, %p70
      %p73 = scmp.ne.s32.totalorder %s58, %s72
      %p74 = scmp.eq.s32.totalorder %s32, 0
      %p75 = por %p73, %p74
      %s76 = ssub.s32 %s26, %s33
      %p77 = scmp.eq.s32.totalorder %s76, 0
      %s79 = sadd.s32 %s78, 1
      %s80 = scalar_select %p77, %s78, %s79
      %p83 = pneg %p77
      %p84 = scmp.eq.s32.totalorder %s26, 1
      %p85 = por %p83, %p84
      %p86 = scmp.ne.s32.totalorder %s78, %s81
      %p87 = scmp.eq.s32.totalorder %s26, 0
      %p88 = por %p86, %p87
      %p89 = scmp.ne.s32.totalorder %s78, %s81
      %p90 = scmp.eq.s32.totalorder %s31, 1
      %p91 = por %p89, %p90
      %p92 = scmp.ne.s32.totalorder %s81, %s82
      %p93 = scmp.eq.s32.totalorder %s31, 0
      %p94 = por %p92, %p93
      %p95 = scmp.ne.s32.totalorder %s81, %s82
      %p96 = scmp.eq.s32.totalorder %s32, 1
      %p97 = por %p95, %p96
      %p99 = scmp.ne.s32.totalorder %s82, %s98
      %p100 = scmp.eq.s32.totalorder %s32, 0
      %p101 = por %p99, %p100
      %s102 = ssub.s32 %s26, %s33
      %p103 = scmp.eq.s32.totalorder %s102, 0
      %s105 = sadd.s32 %s104, 1
      %s106 = scalar_select %p103, %s104, %s105
      %p109 = pneg %p103
      %p110 = scmp.eq.s32.totalorder %s26, 1
      %p111 = por %p109, %p110
      %p112 = scmp.ne.s32.totalorder %s104, %s107
      %p113 = scmp.eq.s32.totalorder %s26, 0
      %p114 = por %p112, %p113
      %p115 = scmp.ne.s32.totalorder %s104, %s107
      %p116 = scmp.eq.s32.totalorder %s31, 1
      %p117 = por %p115, %p116
      %p118 = scmp.ne.s32.totalorder %s107, %s108
      %p119 = scmp.eq.s32.totalorder %s31, 0
      %p120 = por %p118, %p119
      %p121 = scmp.ne.s32.totalorder %s107, %s108
      %p122 = scmp.eq.s32.totalorder %s32, 1
      %p123 = por %p121, %p122
      %p125 = scmp.ne.s32.totalorder %s108, %s124
      %p126 = scmp.eq.s32.totalorder %s32, 0
      %p127 = por %p125, %p126
      %s128 = ssub.s32 %s26, %s33
      %p129 = scmp.eq.s32.totalorder %s128, 0
      %s131 = sadd.s32 %s130, 1
      %s132 = scalar_select %p129, %s130, %s131
      %p135 = pneg %p129
      %p136 = scmp.eq.s32.totalorder %s26, 1
      %p137 = por %p135, %p136
      %p138 = scmp.ne.s32.totalorder %s130, %s133
      %p139 = scmp.eq.s32.totalorder %s26, 0
      %p140 = por %p138, %p139
      %p141 = scmp.ne.s32.totalorder %s130, %s133
      %p142 = scmp.eq.s32.totalorder %s31, 1
      %p143 = por %p141, %p142
      %p144 = scmp.ne.s32.totalorder %s133, %s134
      %p145 = scmp.eq.s32.totalorder %s31, 0
      %p146 = por %p144, %p145
      %p147 = scmp.ne.s32.totalorder %s133, %s134
      %p148 = scmp.eq.s32.totalorder %s32, 1
      %p149 = por %p147, %p148
      %p151 = scmp.ne.s32.totalorder %s134, %s150
      %p152 = scmp.eq.s32.totalorder %s32, 0
      %p153 = por %p151, %p152
      %s154 = ssub.s32 %s26, %s33
      %p155 = scmp.eq.s32.totalorder %s154, 0
      %s157 = sadd.s32 %s156, 1
      %s158 = scalar_select %p155, %s156, %s157
      %p161 = pneg %p155
      %p162 = scmp.eq.s32.totalorder %s26, 1
      %p163 = por %p161, %p162
      %p164 = scmp.ne.s32.totalorder %s156, %s159
      %p165 = scmp.eq.s32.totalorder %s26, 0
      %p166 = por %p164, %p165
      %p167 = scmp.ne.s32.totalorder %s156, %s159
      %p168 = scmp.eq.s32.totalorder %s31, 1
      %p169 = por %p167, %p168
      %p170 = scmp.ne.s32.totalorder %s159, %s160
      %p171 = scmp.eq.s32.totalorder %s31, 0
      %p172 = por %p170, %p171
      %p173 = scmp.ne.s32.totalorder %s159, %s160
      %p174 = scmp.eq.s32.totalorder %s32, 1
      %p175 = por %p173, %p174
      %p177 = scmp.ne.s32.totalorder %s160, %s176
      %p178 = scmp.eq.s32.totalorder %s32, 0
      %p179 = por %p177, %p178
      %s180 = ssub.s32 %s26, %s33
      %p181 = scmp.eq.s32.totalorder %s180, 0
      %s183 = sadd.s32 %s182, 1
      %s184 = scalar_select %p181, %s182, %s183
      %p187 = pneg %p181
      %p188 = scmp.eq.s32.totalorder %s26, 1
      %p189 = por %p187, %p188
      %p190 = scmp.ne.s32.totalorder %s182, %s185
      %p191 = scmp.eq.s32.totalorder %s26, 0
      %p192 = por %p190, %p191
      %p193 = scmp.ne.s32.totalorder %s182, %s185
      %p194 = scmp.eq.s32.totalorder %s31, 1
      %p195 = por %p193, %p194
      %p196 = scmp.ne.s32.totalorder %s185, %s186
      %p197 = scmp.eq.s32.totalorder %s31, 0
      %p198 = por %p196, %p197
      %p199 = scmp.ne.s32.totalorder %s185, %s186
      %p200 = scmp.eq.s32.totalorder %s32, 1
      %p201 = por %p199, %p200
      %p203 = scmp.ne.s32.totalorder %s186, %s202
      %p204 = scmp.eq.s32.totalorder %s32, 0
      %p205 = por %p203, %p204
      %s207 = sadd.s32 %s206, 1
      %p210 = scmp.eq.s32.totalorder %s26, 1
      %p211 = scmp.ne.s32.totalorder %s206, %s208
      %p212 = scmp.eq.s32.totalorder %s26, 0
      %p213 = por %p211, %p212
      %p214 = scmp.ne.s32.totalorder %s206, %s208
      %p215 = scmp.eq.s32.totalorder %s31, 1
      %p216 = por %p214, %p215
      %p217 = scmp.ne.s32.totalorder %s208, %s209
      %p218 = scmp.eq.s32.totalorder %s31, 0
      %p219 = por %p217, %p218
      %p220 = scmp.ne.s32.totalorder %s208, %s209
      %p221 = scmp.eq.s32.totalorder %s32, 1
      %p222 = por %p220, %p221
      %p224 = scmp.ne.s32.totalorder %s209, %s223
      %p225 = scmp.eq.s32.totalorder %s32, 0
      %p226 = por %p224, %p225
      %s228 = sadd.s32 %s227, 1
      %p231 = scmp.eq.s32.totalorder %s26, 1
      %p232 = scmp.ne.s32.totalorder %s227, %s229
      %p233 = scmp.eq.s32.totalorder %s26, 0
      %p234 = por %p232, %p233
      %p235 = scmp.ne.s32.totalorder %s227, %s229
      %p236 = scmp.eq.s32.totalorder %s31, 1
      %p237 = por %p235, %p236
      %p238 = scmp.ne.s32.totalorder %s229, %s230
      %p239 = scmp.eq.s32.totalorder %s31, 0
      %p240 = por %p238, %p239
      %p241 = scmp.ne.s32.totalorder %s229, %s230
      %p242 = scmp.eq.s32.totalorder %s32, 1
      %p243 = por %p241, %p242
      %p245 = scmp.ne.s32.totalorder %s230, %s244
      %p246 = scmp.eq.s32.totalorder %s32, 0
      %p247 = por %p245, %p246
      %s249 = sadd.s32 %s248, 1
      %p252 = scmp.eq.s32.totalorder %s26, 1
      %p253 = scmp.ne.s32.totalorder %s248, %s250
      %p254 = scmp.eq.s32.totalorder %s26, 0
      %p255 = por %p253, %p254
      %p256 = scmp.ne.s32.totalorder %s248, %s250
      %p257 = scmp.eq.s32.totalorder %s31, 1
      %p258 = por %p256, %p257
      %p259 = scmp.ne.s32.totalorder %s250, %s251
      %p260 = scmp.eq.s32.totalorder %s31, 0
      %p261 = por %p259, %p260
      %p262 = scmp.ne.s32.totalorder %s250, %s251
      %p263 = scmp.eq.s32.totalorder %s32, 1
      %p264 = por %p262, %p263
      %p266 = scmp.ne.s32.totalorder %s251, %s265
      %p267 = scmp.eq.s32.totalorder %s32, 0
      %p268 = por %p266, %p267
      %s270 = sadd.s32 %s269, 1
      %p273 = scmp.eq.s32.totalorder %s26, 1
      %p274 = scmp.ne.s32.totalorder %s269, %s271
      %p275 = scmp.eq.s32.totalorder %s26, 0
      %p276 = por %p274, %p275
      %p277 = scmp.ne.s32.totalorder %s269, %s271
      %p278 = scmp.eq.s32.totalorder %s31, 1
      %p279 = por %p277, %p278
      %p280 = scmp.ne.s32.totalorder %s271, %s272
      %p281 = scmp.eq.s32.totalorder %s31, 0
      %p282 = por %p280, %p281
      %p283 = scmp.ne.s32.totalorder %s271, %s272
      %p284 = scmp.eq.s32.totalorder %s32, 1
      %p285 = por %p283, %p284
      %p287 = scmp.ne.s32.totalorder %s272, %s286
      %p288 = scmp.eq.s32.totalorder %s32, 0
      %p289 = por %p287, %p288
      %s291 = sadd.s32 %s290, 1
      %p294 = scmp.eq.s32.totalorder %s26, 1
      %p295 = scmp.ne.s32.totalorder %s290, %s292
      %p296 = scmp.eq.s32.totalorder %s26, 0
      %p297 = por %p295, %p296
      %p298 = scmp.ne.s32.totalorder %s290, %s292
      %p299 = scmp.eq.s32.totalorder %s31, 1
      %p300 = por %p298, %p299
      %p301 = scmp.ne.s32.totalorder %s292, %s293
      %p302 = scmp.eq.s32.totalorder %s31, 0
      %p303 = por %p301, %p302
      %p304 = scmp.ne.s32.totalorder %s292, %s293
      %p305 = scmp.eq.s32.totalorder %s32, 1
      %p306 = por %p304, %p305
      %p308 = scmp.ne.s32.totalorder %s293, %s307
      %p309 = scmp.eq.s32.totalorder %s32, 0
      %p310 = por %p308, %p309
      %s312 = sadd.s32 %s311, 1
      %p315 = scmp.eq.s32.totalorder %s26, 1
      %p316 = scmp.ne.s32.totalorder %s311, %s313
      %p317 = scmp.eq.s32.totalorder %s26, 0
      %p318 = por %p316, %p317
      %p319 = scmp.ne.s32.totalorder %s311, %s313
      %p320 = scmp.eq.s32.totalorder %s31, 1
      %p321 = por %p319, %p320
      %p322 = scmp.ne.s32.totalorder %s313, %s314
      %p323 = scmp.eq.s32.totalorder %s31, 0
      %p324 = por %p322, %p323
      %p325 = scmp.ne.s32.totalorder %s313, %s314
      %p326 = scmp.eq.s32.totalorder %s32, 1
      %p327 = por %p325, %p326
      %p329 = scmp.ne.s32.totalorder %s314, %s328
      %p330 = scmp.eq.s32.totalorder %s32, 0
      %p331 = por %p329, %p330
      %s333 = sadd.s32 %s332, 1
      %p336 = scmp.eq.s32.totalorder %s26, 1
      %p337 = scmp.ne.s32.totalorder %s332, %s334
      %p338 = scmp.eq.s32.totalorder %s26, 0
      %p339 = por %p337, %p338
      %p340 = scmp.ne.s32.totalorder %s332, %s334
      %p341 = scmp.eq.s32.totalorder %s31, 1
      %p342 = por %p340, %p341
      %p343 = scmp.ne.s32.totalorder %s334, %s335
      %p344 = scmp.eq.s32.totalorder %s31, 0
      %p345 = por %p343, %p344
      %p346 = scmp.ne.s32.totalorder %s334, %s335
      %p347 = scmp.eq.s32.totalorder %s32, 1
      %p348 = por %p346, %p347
      %p350 = scmp.ne.s32.totalorder %s335, %s349
      %p351 = scmp.eq.s32.totalorder %s32, 0
      %p352 = por %p350, %p351
      %s354 = sadd.s32 %s353, 1
      %p357 = scmp.eq.s32.totalorder %s26, 1
      %p358 = scmp.ne.s32.totalorder %s353, %s355
      %p359 = scmp.eq.s32.totalorder %s26, 0
      %p360 = por %p358, %p359
      %p361 = scmp.ne.s32.totalorder %s353, %s355
      %p362 = scmp.eq.s32.totalorder %s31, 1
      %p363 = por %p361, %p362
      %p364 = scmp.ne.s32.totalorder %s355, %s356
      %p365 = scmp.eq.s32.totalorder %s31, 0
      %p366 = por %p364, %p365
      %p367 = scmp.ne.s32.totalorder %s355, %s356
      %p368 = scmp.eq.s32.totalorder %s32, 1
      %p369 = por %p367, %p368
      %p371 = scmp.ne.s32.totalorder %s356, %s370
      %p372 = scmp.eq.s32.totalorder %s32, 0
      %p373 = por %p371, %p372
      %s375 = sadd.s32 %s374, 1
      %p378 = scmp.eq.s32.totalorder %s26, 1
      %p379 = scmp.ne.s32.totalorder %s374, %s376
      %p380 = scmp.eq.s32.totalorder %s26, 0
      %p381 = por %p379, %p380
      %p382 = scmp.ne.s32.totalorder %s374, %s376
      %p383 = scmp.eq.s32.totalorder %s31, 1
      %p384 = por %p382, %p383
      %p385 = scmp.ne.s32.totalorder %s376, %s377
      %p386 = scmp.eq.s32.totalorder %s31, 0
      %p387 = por %p385, %p386
      %p388 = scmp.ne.s32.totalorder %s376, %s377
      %p389 = scmp.eq.s32.totalorder %s32, 1
      %p390 = por %p388, %p389
      %p392 = scmp.ne.s32.totalorder %s377, %s391
      %p393 = scmp.eq.s32.totalorder %s32, 0
      %p394 = por %p392, %p393
      %s396 = sadd.s32 %s395, 1
      %p399 = scmp.eq.s32.totalorder %s26, 1
      %p400 = scmp.ne.s32.totalorder %s395, %s397
      %p401 = scmp.eq.s32.totalorder %s26, 0
      %p402 = por %p400, %p401
      %p403 = scmp.ne.s32.totalorder %s395, %s397
      %p404 = scmp.eq.s32.totalorder %s31, 1
      %p405 = por %p403, %p404
      %p406 = scmp.ne.s32.totalorder %s397, %s398
      %p407 = scmp.eq.s32.totalorder %s31, 0
      %p408 = por %p406, %p407
      %p409 = scmp.ne.s32.totalorder %s397, %s398
      %p410 = scmp.eq.s32.totalorder %s32, 1
      %p411 = por %p409, %p410
      %p413 = scmp.ne.s32.totalorder %s398, %s412
      %p414 = scmp.eq.s32.totalorder %s32, 0
      %p415 = por %p413, %p414
      %s417 = sadd.s32 %s416, 1
      %p420 = scmp.eq.s32.totalorder %s26, 1
      %p421 = scmp.ne.s32.totalorder %s416, %s418
      %p422 = scmp.eq.s32.totalorder %s26, 0
      %p423 = por %p421, %p422
      %p424 = scmp.ne.s32.totalorder %s416, %s418
      %p425 = scmp.eq.s32.totalorder %s31, 1
      %p426 = por %p424, %p425
      %p427 = scmp.ne.s32.totalorder %s418, %s419
      %p428 = scmp.eq.s32.totalorder %s31, 0
      %p429 = por %p427, %p428
      %p430 = scmp.ne.s32.totalorder %s418, %s419
      %p431 = scmp.eq.s32.totalorder %s32, 1
      %p432 = por %p430, %p431
      %p434 = scmp.ne.s32.totalorder %s419, %s433
      %p435 = scmp.eq.s32.totalorder %s32, 0
      %p436 = por %p434, %p435
      %s437 = ssub.s32 %s26, %s33
      %p438 = scmp.eq.s32.totalorder %s437, 0
      %s440 = sadd.s32 %s439, 1
      %s441 = scalar_select %p438, %s439, %s440
      %p444 = pneg %p438
      %p445 = scmp.eq.s32.totalorder %s26, 1
      %p446 = por %p444, %p445
      %p447 = scmp.ne.s32.totalorder %s439, %s442
      %p448 = scmp.eq.s32.totalorder %s26, 0
      %p449 = por %p447, %p448
      %p450 = scmp.ne.s32.totalorder %s439, %s442
      %p451 = scmp.eq.s32.totalorder %s31, 1
      %p452 = por %p450, %p451
      %p453 = scmp.ne.s32.totalorder %s442, %s443
      %p454 = scmp.eq.s32.totalorder %s31, 0
      %p455 = por %p453, %p454
      %p456 = scmp.ne.s32.totalorder %s442, %s443
      %p457 = scmp.eq.s32.totalorder %s32, 1
      %p458 = por %p456, %p457
      %p460 = scmp.ne.s32.totalorder %s443, %s459
      %p461 = scmp.eq.s32.totalorder %s32, 0
      %p462 = por %p460, %p461
      %p463 = scmp.le.s32.totalorder 1, %s26
      %p464 = scmp.lt.s32.totalorder %s26, 3
      %p465 = pnand %p463, %p464
      %p466 = pneg %p465
      // Predicated region
      $region9: #{rkt_forward.1} parent=5 // pred_check
        _
      $region10: #{rkt_forward.1} parent=5 // pred_check_branch
        %468 = sbr.rel (%p465) target = $region12
      $region11: #{rkt_forward.1} parent=5 // pred_region
        %s469 = ssub.s32 %s26, 1
        // Predicated region
        $region13: #{rkt_forward.1} parent=11 // pred_check
          %p470 = pneg %p47
        $region14: #{rkt_forward.1} parent=11 // pred_check_branch
          %472 = sbr.rel (%p470) target = $region16
        $region15: #{rkt_forward.1} parent=11 // pred_region
          %s474 = ssub.s32 16, 16
          %475 = vsyncadd [#allocation4], %s474
          %s477 = sshll.u32 %s0, 4
          %s478 = int_to_ptr.vmem [resolvable:$true] %s477
          %480 = dma.vmem_to_smem %s478, 16, [#allocation3], [#allocation4]
        $region16: #{rkt_forward.1} parent=11 // pred_fallthru
          _
        // Predicated region
        $region17: #{rkt_forward.1} parent=11 // pred_check
          %p481 = pneg %p68
        $region18: #{rkt_forward.1} parent=11 // pred_check_branch
          %483 = sbr.rel (%p481) target = $region20
        $region19: #{rkt_forward.1} parent=11 // pred_region
          _
        $region20: #{rkt_forward.1} parent=11 // pred_fallthru
          _
        // Predicated region
        $region21: #{rkt_forward.1} parent=11 // pred_check
          %p484 = pneg %p219
        $region22: #{rkt_forward.1} parent=11 // pred_check_branch
          %486 = sbr.rel (%p484) target = $region24
        $region23: #{rkt_forward.1} parent=11 // pred_region
          _
        $region24: #{rkt_forward.1} parent=11 // pred_fallthru
          _
        // Predicated region
        $region25: #{rkt_forward.1} parent=11 // pred_check
          %p487 = pneg %p240
        $region26: #{rkt_forward.1} parent=11 // pred_check_branch
          %489 = sbr.rel (%p487) target = $region28
        $region27: #{rkt_forward.1} parent=11 // pred_region
          _
        $region28: #{rkt_forward.1} parent=11 // pred_fallthru
          _
        // Predicated region
        $region29: #{rkt_forward.1} parent=11 // pred_check
          %p490 = pneg %p261
        $region30: #{rkt_forward.1} parent=11 // pred_check_branch
          %492 = sbr.rel (%p490) target = $region32
        $region31: #{rkt_forward.1} parent=11 // pred_region
          _
        $region32: #{rkt_forward.1} parent=11 // pred_fallthru
          _
        // Predicated region
        $region33: #{rkt_forward.1} parent=11 // pred_check
          %p493 = pneg %p282
        $region34: #{rkt_forward.1} parent=11 // pred_check_branch
          %495 = sbr.rel (%p493) target = $region36
        $region35: #{rkt_forward.1} parent=11 // pred_region
          _
        $region36: #{rkt_forward.1} parent=11 // pred_fallthru
          _
        // Predicated region
        $region37: #{rkt_forward.1} parent=11 // pred_check
          %p496 = pneg %p303
        $region38: #{rkt_forward.1} parent=11 // pred_check_branch
          %498 = sbr.rel (%p496) target = $region40
        $region39: #{rkt_forward.1} parent=11 // pred_region
          _
        $region40: #{rkt_forward.1} parent=11 // pred_fallthru
          _
        // Predicated region
        $region41: #{rkt_forward.1} parent=11 // pred_check
          %p499 = pneg %p324
        $region42: #{rkt_forward.1} parent=11 // pred_check_branch
          %501 = sbr.rel (%p499) target = $region44
        $region43: #{rkt_forward.1} parent=11 // pred_region
          _
        $region44: #{rkt_forward.1} parent=11 // pred_fallthru
          _
        // Predicated region
        $region45: #{rkt_forward.1} parent=11 // pred_check
          %p502 = pneg %p345
        $region46: #{rkt_forward.1} parent=11 // pred_check_branch
          %504 = sbr.rel (%p502) target = $region48
        $region47: #{rkt_forward.1} parent=11 // pred_region
          _
        $region48: #{rkt_forward.1} parent=11 // pred_fallthru
          _
        // Predicated region
        $region49: #{rkt_forward.1} parent=11 // pred_check
          %p505 = pneg %p366
        $region50: #{rkt_forward.1} parent=11 // pred_check_branch
          %507 = sbr.rel (%p505) target = $region52
        $region51: #{rkt_forward.1} parent=11 // pred_region
          _
        $region52: #{rkt_forward.1} parent=11 // pred_fallthru
          _
        // Predicated region
        $region53: #{rkt_forward.1} parent=11 // pred_check
          %p508 = pneg %p387
        $region54: #{rkt_forward.1} parent=11 // pred_check_branch
          %510 = sbr.rel (%p508) target = $region56
        $region55: #{rkt_forward.1} parent=11 // pred_region
          _
        $region56: #{rkt_forward.1} parent=11 // pred_fallthru
          _
        // Predicated region
        $region57: #{rkt_forward.1} parent=11 // pred_check
          %p511 = pneg %p408
        $region58: #{rkt_forward.1} parent=11 // pred_check_branch
          %513 = sbr.rel (%p511) target = $region60
        $region59: #{rkt_forward.1} parent=11 // pred_region
          _
        $region60: #{rkt_forward.1} parent=11 // pred_fallthru
          _
        // Predicated region
        $region61: #{rkt_forward.1} parent=11 // pred_check
          %p514 = pneg %p429
        $region62: #{rkt_forward.1} parent=11 // pred_check_branch
          %516 = sbr.rel (%p514) target = $region64
        $region63: #{rkt_forward.1} parent=11 // pred_region
          _
        $region64: #{rkt_forward.1} parent=11 // pred_fallthru
          _
      $region12: #{rkt_forward.1} parent=5 // pred_fallthru
        _
      %p517 = scmp.lt.s32.totalorder %s26, 2
      // Predicated region
      $region65: #{rkt_forward.1} parent=5 // pred_check
        %p518 = pneg %p517
      $region66: #{rkt_forward.1} parent=5 // pred_check_branch
        %520 = sbr.rel (%p518) target = $region68
      $region67: #{rkt_forward.1} parent=5 // pred_region
        // Predicated region
        $region69: #{rkt_forward.1} parent=67 // pred_check
          %p521 = pneg %p88
        $region70: #{rkt_forward.1} parent=67 // pred_check_branch
          %523 = sbr.rel (%p521) target = $region72
        $region71: #{rkt_forward.1} parent=67 // pred_region
          %p524 = scmp.lt.s32.totalorder %s26, 1
          %s525 = scalar_select %p524, %s26, 1
          %s526 = smul.addr %s525, 8
          %s527 = scalar_lea.vmem %s2, %s526
        $region72: #{rkt_forward.1} parent=67 // pred_fallthru
          _
        // Predicated region
        $region73: #{rkt_forward.1} parent=67 // pred_check
          %p528 = pneg %p114
        $region74: #{rkt_forward.1} parent=67 // pred_check_branch
          %530 = sbr.rel (%p528) target = $region76
        $region75: #{rkt_forward.1} parent=67 // pred_region
          %p531 = scmp.lt.s32.totalorder %s26, 1
          %s532 = scalar_select %p531, %s26, 1
          %s533 = smul.addr %s532, 8
          %s534 = scalar_lea.vmem %s3, %s533
        $region76: #{rkt_forward.1} parent=67 // pred_fallthru
          _
        // Predicated region
        $region77: #{rkt_forward.1} parent=67 // pred_check
          %p535 = pneg %p140
        $region78: #{rkt_forward.1} parent=67 // pred_check_branch
          %537 = sbr.rel (%p535) target = $region80
        $region79: #{rkt_forward.1} parent=67 // pred_region
          %p538 = scmp.lt.s32.totalorder %s26, 1
          %s539 = scalar_select %p538, %s26, 1
          %s540 = scalar_lea.vmem %s4, %s539
        $region80: #{rkt_forward.1} parent=67 // pred_fallthru
          _
        // Predicated region
        $region81: #{rkt_forward.1} parent=67 // pred_check
          %p541 = pneg %p166
        $region82: #{rkt_forward.1} parent=67 // pred_check_branch
          %543 = sbr.rel (%p541) target = $region84
        $region83: #{rkt_forward.1} parent=67 // pred_region
          %p544 = scmp.lt.s32.totalorder %s26, 1
          %s545 = scalar_select %p544, %s26, 1
          %s546 = smul.addr %s545, 8
          %s547 = scalar_lea.vmem %s5, %s546
        $region84: #{rkt_forward.1} parent=67 // pred_fallthru
          _
        // Predicated region
        $region85: #{rkt_forward.1} parent=67 // pred_check
          %p548 = pneg %p192
        $region86: #{rkt_forward.1} parent=67 // pred_check_branch
          %550 = sbr.rel (%p548) target = $region88
        $region87: #{rkt_forward.1} parent=67 // pred_region
          %p551 = scmp.lt.s32.totalorder %s26, 1
          %s552 = scalar_select %p551, %s26, 1
          %s553 = smul.addr %s552, 8
          %s554 = scalar_lea.vmem %s6, %s553
        $region88: #{rkt_forward.1} parent=67 // pred_fallthru
          _
      $region68: #{rkt_forward.1} parent=5 // pred_fallthru
        _
      %p555 = scmp.le.s32.totalorder 1, %s26
      %p556 = scmp.lt.s32.totalorder %s26, 3
      %p557 = pnand %p555, %p556
      %p558 = pneg %p557
      // Predicated region
      $region89: #{rkt_forward.1} parent=5 // pred_check
        _
      $region90: #{rkt_forward.1} parent=5 // pred_check_branch
        %560 = sbr.rel (%p557) target = $region92
      $region91: #{rkt_forward.1} parent=5 // pred_region
        %s561 = ssub.s32 %s26, 1
        // Predicated region
        $region93: #{rkt_forward.1} parent=91 // pred_check
          %p562 = pneg %p47
        $region94: #{rkt_forward.1} parent=91 // pred_check_branch
          %564 = sbr.rel (%p562) target = $region96
        $region95: #{rkt_forward.1} parent=91 // pred_region
          %565 = dma.done [#allocation4], 16
        $region96: #{rkt_forward.1} parent=91 // pred_fallthru
          _
        %566 = sfence
        %p567 = pneg %p47
        %p568 = pneg %p44
        %p569 = pneg %p68
        %p570 = pneg %p65
        %p571 = scmp.lt.s32.totalorder %s31, 1
        %s572 = scalar_select %p571, %s31, 1
        %s573 = smul.addr %s572, 8
        %s574 = scalar_lea.vmem %s2, %s573
        %p575 = pneg %p94
        %p576 = pneg %p91
        %p577 = scmp.lt.s32.totalorder %s31, 1
        %s578 = scalar_select %p577, %s31, 1
        %s579 = smul.addr %s578, 8
        %s580 = scalar_lea.vmem %s3, %s579
        %p581 = pneg %p120
        %p582 = pneg %p117
        %p583 = scmp.lt.s32.totalorder %s31, 1
        %s584 = scalar_select %p583, %s31, 1
        %s585 = scalar_lea.vmem %s4, %s584
        %p586 = pneg %p146
        %p587 = pneg %p143
        %p588 = scmp.lt.s32.totalorder %s31, 1
        %s589 = scalar_select %p588, %s31, 1
        %s590 = smul.addr %s589, 8
        %s591 = scalar_lea.vmem %s5, %s590
        %p592 = pneg %p172
        %p593 = pneg %p169
        %p594 = scmp.lt.s32.totalorder %s31, 1
        %s595 = scalar_select %p594, %s31, 1
        %s596 = smul.addr %s595, 8
        %s597 = scalar_lea.vmem %s6, %s596
        %p598 = pneg %p198
        %p599 = pneg %p195
        %p600 = pneg %p219
        %p601 = pneg %p216
        %p602 = pneg %p240
        %p603 = pneg %p237
        %p604 = pneg %p261
        %p605 = pneg %p258
        %p606 = pneg %p282
        %p607 = pneg %p279
        %p608 = pneg %p303
        %p609 = pneg %p300
        %p610 = pneg %p324
        %p611 = pneg %p321
        %p612 = pneg %p345
        %p613 = pneg %p342
        %p614 = pneg %p366
        %p615 = pneg %p363
        %p616 = pneg %p387
        %p617 = pneg %p384
        %p618 = pneg %p408
        %p619 = pneg %p405
        %p620 = pneg %p429
        %p621 = pneg %p426
        %p622 = pneg %p455
        %p623 = pneg %p452
        %p624 = scmp.lt.s32.totalorder %s31, 1
        %s625 = scalar_select %p624, %s31, 1
        %s626 = smul.addr %s625, 8
        %s627 = scalar_lea.vmem %s18, %s626
        %p628 = scmp.lt.s32.totalorder %s31, 1
        %s629 = scalar_select %p628, %s31, 1
        %s630 = smul.addr %s629, 8
        %s631 = scalar_lea.vmem %s2, %s630
        %p632 = scmp.lt.s32.totalorder %s31, 1
        %s633 = scalar_select %p632, %s31, 1
        %s634 = smul.addr %s633, 8
        %s635 = scalar_lea.vmem %s3, %s634
        %p636 = scmp.lt.s32.totalorder %s31, 1
        %s637 = scalar_select %p636, %s31, 1
        %s638 = scalar_lea.vmem %s4, %s637
        %p639 = scmp.lt.s32.totalorder %s31, 1
        %s640 = scalar_select %p639, %s31, 1
        %s641 = smul.addr %s640, 8
        %s642 = scalar_lea.vmem %s5, %s641
        %p643 = scmp.lt.s32.totalorder %s31, 1
        %s644 = scalar_select %p643, %s31, 1
        %s645 = smul.addr %s644, 8
        %s646 = scalar_lea.vmem %s6, %s645
        %p647 = scmp.lt.s32.totalorder %s31, 1
        %s648 = scalar_select %p647, %s31, 1
        %s649 = smul.addr %s648, 8
        %s650 = scalar_lea.vmem %s18, %s649
        %v651 = vld [vmem:[%s631] sm:$0xff]
        %v652 = vld [vmem:[%s635] sm:$0xff]
        %654 = vset.pattern.permute.xlu0 0
        %655 = vperm.xlu0 %654, %v652
        %v656 = vpop.permute.xlu0 %655
        %v658 = vmul.f32 %v651, %v656
        %v659 = vsub.f32 %v651, %v658
        %v660 = vld [vmem:[%s8] sm:$0xff]
        %v661 = vld [vmem:[%s8 + $0x8] sm:$0xff]
        %v662 = vld [vmem:[%s8 + $0x10] sm:$0xff]
        %v663 = vld [vmem:[%s8 + $0x18] sm:$0xff]
        %v664 = vld [vmem:[%s9] sm:$0xff]
        %v665 = vld [vmem:[%s9 + $0x8] sm:$0xff]
        %v666 = vld [vmem:[%s9 + $0x10] sm:$0xff]
        %v667 = vld [vmem:[%s9 + $0x18] sm:$0xff]
        %vm668 = vcmask 261120
        %v670 = vsel %vm668, %v659, 0
        %672 = vmatprep.subr.mxu0 0.0
        %673 = vmatpush1.msra.mxu0 %v664
        %674 = vmatprep.subr.mxu0 0.0
        %675 = vmatpush1.msra.mxu0 %v665
        %676 = vmatprep.subr.mxu0 0.0
        %677 = vmatpush1.msra.mxu0 %v666
        %678 = vmatprep.subr.mxu0 0.0
        %679 = vmatpush1.msra.mxu0 %v667
        %680 = vmatprep.subr.mxu0 0.0
        %681 = vmatpush1.msra.mxu0 0.0
        %682 = vmatprep.subr.mxu0 0.0
        %683 = vmatpush1.msra.mxu0 0.0
        %684 = vmatprep.subr.mxu0 0.0
        %685 = vmatpush1.msra.mxu0 0.0
        %686 = vmatprep.subr.mxu0 0.0
        %687 = vmatpush1.msra.mxu0 0.0
        %688 = vmatprep.subr.mxu0 0.0
        %689 = vmatpush1.msra.mxu0 0.0
        %690 = vmatprep.subr.mxu0 0.0
        %691 = vmatpush1.msra.mxu0 0.0
        %692 = vmatprep.subr.mxu0 0.0
        %693 = vmatpush1.msra.mxu0 0.0
        %694 = vmatprep.subr.mxu0 0.0
        %695 = vmatpush1.msra.mxu0 0.0
        %696 = vmatprep.subr.mxu0 0.0
        %697 = vmatpush1.msra.mxu0 0.0
        %698 = vmatprep.subr.mxu0 0.0
        %699 = vmatpush1.msra.mxu0 0.0
        %700 = vmatprep.subr.mxu0 0.0
        %701 = vmatpush1.msra.mxu0 0.0
        %702 = vmatprep.subr.mxu0 0.0
        %703 = vmatpush1.msra.mxu0 0.0
        %704 = vmatprep.subr.mxu0 0.0
        %705 = vmatpush1.msra.mxu0 0.0
        %706 = vmatprep.subr.mxu0 0.0
        %707 = vmatpush1.msra.mxu0 0.0
        %708 = vmatprep.subr.mxu0 0.0
        %709 = vmatpush1.msra.mxu0 0.0
        %710 = vmatprep.subr.mxu0 0.0
        %711 = vmatpush1.msra.mxu0 0.0
        %712 = vmatprep.subr.mxu0 0.0
        %713 = vmatpush1.msra.mxu0 0.0
        %714 = vmatprep.subr.mxu0 0.0
        %715 = vmatpush1.msra.mxu0 0.0
        %716 = vmatprep.subr.mxu0 0.0
        %717 = vmatpush1.msra.mxu0 0.0
        %718 = vmatprep.subr.mxu0 0.0
        %719 = vmatpush1.msra.mxu0 0.0
        %720 = vmatprep.subr.mxu0 0.0
        %721 = vmatpush1.msra.mxu0 0.0
        %722 = vmatprep.subr.mxu0 0.0
        %723 = vmatpush1.msra.mxu0 0.0
        %724 = vmatprep.subr.mxu0 0.0
        %725 = vmatpush1.msra.mxu0 0.0
        %726 = vmatprep.subr.mxu0 0.0
        %727 = vmatpush1.msra.mxu0 0.0
        %728 = vmatprep.subr.mxu0 0.0
        %729 = vmatpush1.msra.mxu0 0.0
        %730 = vmatprep.subr.mxu0 0.0
        %731 = vmatpush1.msra.mxu0 0.0
        %732 = vmatprep.subr.mxu0 0.0
        %733 = vmatpush1.msra.mxu0 0.0
        %734 = vmatprep.subr.mxu0 0.0
        %735 = vmatpush1.msra.mxu0 0.0
        %736 = vmatprep.mubr.f32.mxu0 0.0
        %737 = vmatmul.mubr.f32.gmra.mrb[0].mxu0 %v670
        %v738 = vpop.f32.mrb[0].mxu0
        %v739 = vadd.f32 0.0, %v738
        %v740 = vpop.f32.mrb[0].mxu0
        %741 = vdwg.mxu0
        %v743 = vsel %vm668, %v658, 0
        %745 = vmatprep.subr.mxu0 0.0
        %746 = vmatpush1.msra.mxu0 %v660
        %747 = vmatprep.subr.mxu0 0.0
        %748 = vmatpush1.msra.mxu0 %v661
        %749 = vmatprep.subr.mxu0 0.0
        %750 = vmatpush1.msra.mxu0 %v662
        %751 = vmatprep.subr.mxu0 0.0
        %752 = vmatpush1.msra.mxu0 %v663
        %753 = vmatprep.subr.mxu0 0.0
        %754 = vmatpush1.msra.mxu0 0.0
        %755 = vmatprep.subr.mxu0 0.0
        %756 = vmatpush1.msra.mxu0 0.0
        %757 = vmatprep.subr.mxu0 0.0
        %758 = vmatpush1.msra.mxu0 0.0
        %759 = vmatprep.subr.mxu0 0.0
        %760 = vmatpush1.msra.mxu0 0.0
        %761 = vmatprep.subr.mxu0 0.0
        %762 = vmatpush1.msra.mxu0 0.0
        %763 = vmatprep.subr.mxu0 0.0
        %764 = vmatpush1.msra.mxu0 0.0
        %765 = vmatprep.subr.mxu0 0.0
        %766 = vmatpush1.msra.mxu0 0.0
        %767 = vmatprep.subr.mxu0 0.0
        %768 = vmatpush1.msra.mxu0 0.0
        %769 = vmatprep.subr.mxu0 0.0
        %770 = vmatpush1.msra.mxu0 0.0
        %771 = vmatprep.subr.mxu0 0.0
        %772 = vmatpush1.msra.mxu0 0.0
        %773 = vmatprep.subr.mxu0 0.0
        %774 = vmatpush1.msra.mxu0 0.0
        %775 = vmatprep.subr.mxu0 0.0
        %776 = vmatpush1.msra.mxu0 0.0
        %777 = vmatprep.subr.mxu0 0.0
        %778 = vmatpush1.msra.mxu0 0.0
        %779 = vmatprep.subr.mxu0 0.0
        %780 = vmatpush1.msra.mxu0 0.0
        %781 = vmatprep.subr.mxu0 0.0
        %782 = vmatpush1.msra.mxu0 0.0
        %783 = vmatprep.subr.mxu0 0.0
        %784 = vmatpush1.msra.mxu0 0.0
        %785 = vmatprep.subr.mxu0 0.0
        %786 = vmatpush1.msra.mxu0 0.0
        %787 = vmatprep.subr.mxu0 0.0
        %788 = vmatpush1.msra.mxu0 0.0
        %789 = vmatprep.subr.mxu0 0.0
        %790 = vmatpush1.msra.mxu0 0.0
        %791 = vmatprep.subr.mxu0 0.0
        %792 = vmatpush1.msra.mxu0 0.0
        %793 = vmatprep.subr.mxu0 0.0
        %794 = vmatpush1.msra.mxu0 0.0
        %795 = vmatprep.subr.mxu0 0.0
        %796 = vmatpush1.msra.mxu0 0.0
        %797 = vmatprep.subr.mxu0 0.0
        %798 = vmatpush1.msra.mxu0 0.0
        %799 = vmatprep.subr.mxu0 0.0
        %800 = vmatpush1.msra.mxu0 0.0
        %801 = vmatprep.subr.mxu0 0.0
        %802 = vmatpush1.msra.mxu0 0.0
        %803 = vmatprep.subr.mxu0 0.0
        %804 = vmatpush1.msra.mxu0 0.0
        %805 = vmatprep.subr.mxu0 0.0
        %806 = vmatpush1.msra.mxu0 0.0
        %807 = vmatprep.subr.mxu0 0.0
        %808 = vmatpush1.msra.mxu0 0.0
        %809 = vmatprep.mubr.f32.mxu0 0.0
        %810 = vmatmul.mubr.f32.gmra.mrb[0].mxu0 %v743
        %v811 = vpop.f32.mrb[0].mxu0
        %v812 = vadd.f32 %v739, %v811
        %v813 = vpop.f32.mrb[0].mxu0
        %814 = vdwg.mxu0
        %v815 = vld [vmem:[%s10] sm:$0x1]
        %v817 = vlaneseq
        %v818 = vshrl.u32 %v817, 7
        %v819 = vsub.s32 0, %v818
        %v820 = vrot.slane %v815, %v819
        %v822 = vadd.f32 %v812, %v820
        %v823 = vmax.f32 %v822, 0.0
        %v824 = vld [vmem:[%s7] sm:$0xff]
        %v825 = vadd.f32 %v823, %v824
        %v826 = vlaneseq
        %v827 = vshrl.u32 %v826, 7
        %v828 = vlaneseq
        %v829 = vand.u32 %v828, 127
        %vm830 = vcmp.ge.s32.totalorder %v829, %v827
        %vm831 = vcmp.eq.s32.totalorder %v827, 0
        %v832 = vld [vmem:[%s646] sm:$0xff]
        %v833 = vsel %vm830, -100000.0, %v832
        %vm834 = vcmask 64512
        %v835 = vsel %vm834, %v833, -inf
        %836 = vmax.xlane.f32.xlu0 %v835
        %v837 = vpop.xlane.xlu0 %836
        %v838 = vsub.f32 %v833, %v837
        %v839 = vmul.f32 %v838, 1.442695
        %v840 = vpow.pop %v839
        %v841 = vsel %vm834, %v840, 0.0
        %842 = vadd.xlane.f32.xlu0 %v841
        %v843 = vpop.xlane.xlu0 %842
        %v844 = vrcp.pop %v843
        %v845 = vmul.f32 %v840, %v844
        %v846 = vsel %vm831, 0.0, %v845
        %v847 = vld [vmem:[%s638] sm:$0x1]
        %v848 = vld [vmem:[%s642] sm:$0xff]
        %v850 = vlaneseq
        %v851 = vshrl.u32 %v850, 7
        %v852 = vsub.s32 0, %v851
        %v853 = vrot.slane %v847, %v852
        %856 = vset.pattern.permute.xlu0 0
        %857 = vperm.xlu0 %856, %v848
        %v858 = vpop.permute.xlu0 %857
        %v860 = vsub.f32 %v853, %v858
        %v861 = vand.u32 2147483647, %v860
        %v862 = vsub.f32 0.0, %v861
        %v863 = vmul.f32 %v862, 1.442695
        %v864 = vpow.pop %v863
        %v865 = vsel %vm830, -100000.0, %v864
        %v866 = vsel %vm834, %v865, -inf
        %867 = vmax.xlane.f32.xlu0 %v866
        %v868 = vpop.xlane.xlu0 %867
        %v869 = vsub.f32 %v865, %v868
        %v870 = vmul.f32 %v869, 1.442695
        %v871 = vpow.pop %v870
        %v872 = vsel %vm834, %v871, 0.0
        %873 = vadd.xlane.f32.xlu0 %v872
        %v874 = vpop.xlane.xlu0 %873
        %v875 = vrcp.pop %v874
        %v876 = vmul.f32 %v871, %v875
        %v877 = vsel %vm831, 0.0, %v876
        %s878 = sld [smem:[#allocation3]]
        %s879 = sld [smem:[#allocation3 + $0x1]]
        %s880 = ssub.f32 1.0, %s878
        %s881 = ssub.f32 1.0, %s879
        %s882 = smul.f32 %s880, %s881
        %s883 = smul.f32 %s881, %s878
        %v884 = vstv %s883
        %v885 = vmul.f32 %v884, %v846
        %v886 = vstv %s879
        %v887 = vmul.f32 %v886, %v877
        %v888 = vadd.f32 %v885, %v887
        %v889 = vld [vmem:[%s11] sm:$0xff]
        %v890 = vld [vmem:[%s11 + $0x8] sm:$0xff]
        %v891 = vld [vmem:[%s11 + $0x10] sm:$0xff]
        %v892 = vld [vmem:[%s11 + $0x18] sm:$0xff]
        %v893 = vld [vmem:[%s11 + $0x20] sm:$0xff]
        %v894 = vld [vmem:[%s11 + $0x28] sm:$0xff]
        %v895 = vld [vmem:[%s11 + $0x30] sm:$0xff]
        %v896 = vld [vmem:[%s11 + $0x38] sm:$0xff]
        %v897 = vld [vmem:[%s11 + $0x40] sm:$0xff]
        %v898 = vld [vmem:[%s11 + $0x48] sm:$0xff]
        %v899 = vld [vmem:[%s11 + $0x50] sm:$0xff]
        %v900 = vld [vmem:[%s11 + $0x58] sm:$0xff]
        %v901 = vld [vmem:[%s11 + $0x60] sm:$0xff]
        %v902 = vld [vmem:[%s11 + $0x68] sm:$0xff]
        %v903 = vld [vmem:[%s11 + $0x70] sm:$0xff]
        %v904 = vld [vmem:[%s11 + $0x78] sm:$0xff]
        %v905 = vld [vmem:[%s12] sm:$0xff]
        %v906 = vld [vmem:[%s12 + $0x8] sm:$0xff]
        %v907 = vld [vmem:[%s12 + $0x10] sm:$0xff]
        %v908 = vld [vmem:[%s12 + $0x18] sm:$0xff]
        %v909 = vld [vmem:[%s12 + $0x20] sm:$0xff]
        %v910 = vld [vmem:[%s12 + $0x28] sm:$0xff]
        %v911 = vld [vmem:[%s12 + $0x30] sm:$0xff]
        %v912 = vld [vmem:[%s12 + $0x38] sm:$0xff]
        %v913 = vld [vmem:[%s12 + $0x40] sm:$0xff]
        %v914 = vld [vmem:[%s12 + $0x48] sm:$0xff]
        %v915 = vld [vmem:[%s12 + $0x50] sm:$0xff]
        %v916 = vld [vmem:[%s12 + $0x58] sm:$0xff]
        %v917 = vld [vmem:[%s12 + $0x60] sm:$0xff]
        %v918 = vld [vmem:[%s12 + $0x68] sm:$0xff]
        %v919 = vld [vmem:[%s12 + $0x70] sm:$0xff]
        %v920 = vld [vmem:[%s12 + $0x78] sm:$0xff]
        %v921 = vld [vmem:[%s13] sm:$0xff]
        %v922 = vld [vmem:[%s13 + $0x8] sm:$0xff]
        %v923 = vld [vmem:[%s13 + $0x10] sm:$0xff]
        %v924 = vld [vmem:[%s13 + $0x18] sm:$0xff]
        %v925 = vld [vmem:[%s13 + $0x20] sm:$0xff]
        %v926 = vld [vmem:[%s13 + $0x28] sm:$0xff]
        %v927 = vld [vmem:[%s13 + $0x30] sm:$0xff]
        %v928 = vld [vmem:[%s13 + $0x38] sm:$0xff]
        %v929 = vld [vmem:[%s13 + $0x40] sm:$0xff]
        %v930 = vld [vmem:[%s13 + $0x48] sm:$0xff]
        %v931 = vld [vmem:[%s13 + $0x50] sm:$0xff]
        %v932 = vld [vmem:[%s13 + $0x58] sm:$0xff]
        %v933 = vld [vmem:[%s13 + $0x60] sm:$0xff]
        %v934 = vld [vmem:[%s13 + $0x68] sm:$0xff]
        %v935 = vld [vmem:[%s13 + $0x70] sm:$0xff]
        %v936 = vld [vmem:[%s13 + $0x78] sm:$0xff]
        %v937 = vld [vmem:[%s14] sm:$0x1]
        %v938 = vld [vmem:[%s14 + $0x1] sm:$0x1]
        %v939 = vld [vmem:[%s14 + $0x2] sm:$0x1]
        %v940 = vld [vmem:[%s14 + $0x3] sm:$0x1]
        %v941 = vld [vmem:[%s15] sm:$0x1]
        %v942 = vld [vmem:[%s15 + $0x1] sm:$0x1]
        %v943 = vld [vmem:[%s15 + $0x2] sm:$0x1]
        %v944 = vld [vmem:[%s15 + $0x3] sm:$0x1]
        %v945 = vld [vmem:[%s16] sm:$0x1]
        %v946 = vld [vmem:[%s16 + $0x1] sm:$0x1]
        %v947 = vld [vmem:[%s16 + $0x2] sm:$0x1]
        %v948 = vld [vmem:[%s16 + $0x3] sm:$0x1]
        %v953 = vlaneseq
        %v954 = vshrl.u32 %v953, 7
        %v955 = vsub.s32 0, %v954
        %v956 = vrot.slane %v937, %v955
        %v957 = vlaneseq
        %v958 = vshrl.u32 %v957, 7
        %v959 = vsub.s32 0, %v958
        %v960 = vrot.slane %v938, %v959
        %v961 = vlaneseq
        %v962 = vshrl.u32 %v961, 7
        %v963 = vsub.s32 0, %v962
        %v964 = vrot.slane %v939, %v963
        %v965 = vlaneseq
        %v966 = vshrl.u32 %v965, 7
        %v967 = vsub.s32 0, %v966
        %v968 = vrot.slane %v940, %v967
        %v974 = vsel %vm668, %v651, 0
        %976 = vmatprep.subr.mxu0 0.0
        %977 = vmatpush1.msra.mxu0 %v889
        %978 = vmatprep.subr.mxu0 0.0
        %979 = vmatpush1.msra.mxu0 %v890
        %980 = vmatprep.subr.mxu0 0.0
        %981 = vmatpush1.msra.mxu0 %v891
        %982 = vmatprep.subr.mxu0 0.0
        %983 = vmatpush1.msra.mxu0 %v892
        %984 = vmatprep.subr.mxu0 0.0
        %985 = vmatpush1.msra.mxu0 0.0
        %986 = vmatprep.subr.mxu0 0.0
        %987 = vmatpush1.msra.mxu0 0.0
        %988 = vmatprep.subr.mxu0 0.0
        %989 = vmatpush1.msra.mxu0 0.0
        %990 = vmatprep.subr.mxu0 0.0
        %991 = vmatpush1.msra.mxu0 0.0
        %992 = vmatprep.subr.mxu0 0.0
        %993 = vmatpush1.msra.mxu0 0.0
        %994 = vmatprep.subr.mxu0 0.0
        %995 = vmatpush1.msra.mxu0 0.0
        %996 = vmatprep.subr.mxu0 0.0
        %997 = vmatpush1.msra.mxu0 0.0
        %998 = vmatprep.subr.mxu0 0.0
        %999 = vmatpush1.msra.mxu0 0.0
        %1000 = vmatprep.subr.mxu0 0.0
        %1001 = vmatpush1.msra.mxu0 0.0
        %1002 = vmatprep.subr.mxu0 0.0
        %1003 = vmatpush1.msra.mxu0 0.0
        %1004 = vmatprep.subr.mxu0 0.0
        %1005 = vmatpush1.msra.mxu0 0.0
        %1006 = vmatprep.subr.mxu0 0.0
        %1007 = vmatpush1.msra.mxu0 0.0
        %1008 = vmatprep.subr.mxu0 0.0
        %1009 = vmatpush1.msra.mxu0 0.0
        %1010 = vmatprep.subr.mxu0 0.0
        %1011 = vmatpush1.msra.mxu0 0.0
        %1012 = vmatprep.subr.mxu0 0.0
        %1013 = vmatpush1.msra.mxu0 0.0
        %1014 = vmatprep.subr.mxu0 0.0
        %1015 = vmatpush1.msra.mxu0 0.0
        %1016 = vmatprep.subr.mxu0 0.0
        %1017 = vmatpush1.msra.mxu0 0.0
        %1018 = vmatprep.subr.mxu0 0.0
        %1019 = vmatpush1.msra.mxu0 0.0
        %1020 = vmatprep.subr.mxu0 0.0
        %1021 = vmatpush1.msra.mxu0 0.0
        %1022 = vmatprep.subr.mxu0 0.0
        %1023 = vmatpush1.msra.mxu0 0.0
        %1024 = vmatprep.subr.mxu0 0.0
        %1025 = vmatpush1.msra.mxu0 0.0
        %1026 = vmatprep.subr.mxu0 0.0
        %1027 = vmatpush1.msra.mxu0 0.0
        %1028 = vmatprep.subr.mxu0 0.0
        %1029 = vmatpush1.msra.mxu0 0.0
        %1030 = vmatprep.subr.mxu0 0.0
        %1031 = vmatpush1.msra.mxu0 0.0
        %1032 = vmatprep.subr.mxu0 0.0
        %1033 = vmatpush1.msra.mxu0 0.0
        %1034 = vmatprep.subr.mxu0 0.0
        %1035 = vmatpush1.msra.mxu0 0.0
        %1036 = vmatprep.subr.mxu0 0.0
        %1037 = vmatpush1.msra.mxu0 0.0
        %1038 = vmatprep.subr.mxu0 0.0
        %1039 = vmatpush1.msra.mxu0 0.0
        %1040 = vmatprep.mubr.f32.mxu0 0.0
        %1041 = vmatmul.mubr.f32.gmra.mrb[0].mxu0 %v974
        %v1042 = vpop.f32.mrb[0].mxu0
        %v1043 = vadd.f32 %v956, %v1042
        %v1044 = vpop.f32.mrb[0].mxu0
        %1045 = vdwg.mxu0
        %1046 = vmatprep.subr.mxu0 0.0
        %1047 = vmatpush1.msra.mxu0 %v893
        %1048 = vmatprep.subr.mxu0 0.0
        %1049 = vmatpush1.msra.mxu0 %v894
        %1050 = vmatprep.subr.mxu0 0.0
        %1051 = vmatpush1.msra.mxu0 %v895
        %1052 = vmatprep.subr.mxu0 0.0
        %1053 = vmatpush1.msra.mxu0 %v896
        %1054 = vmatprep.subr.mxu0 0.0
        %1055 = vmatpush1.msra.mxu0 0.0
        %1056 = vmatprep.subr.mxu0 0.0
        %1057 = vmatpush1.msra.mxu0 0.0
        %1058 = vmatprep.subr.mxu0 0.0
        %1059 = vmatpush1.msra.mxu0 0.0
        %1060 = vmatprep.subr.mxu0 0.0
        %1061 = vmatpush1.msra.mxu0 0.0
        %1062 = vmatprep.subr.mxu0 0.0
        %1063 = vmatpush1.msra.mxu0 0.0
        %1064 = vmatprep.subr.mxu0 0.0
        %1065 = vmatpush1.msra.mxu0 0.0
        %1066 = vmatprep.subr.mxu0 0.0
        %1067 = vmatpush1.msra.mxu0 0.0
        %1068 = vmatprep.subr.mxu0 0.0
        %1069 = vmatpush1.msra.mxu0 0.0
        %1070 = vmatprep.subr.mxu0 0.0
        %1071 = vmatpush1.msra.mxu0 0.0
        %1072 = vmatprep.subr.mxu0 0.0
        %1073 = vmatpush1.msra.mxu0 0.0
        %1074 = vmatprep.subr.mxu0 0.0
        %1075 = vmatpush1.msra.mxu0 0.0
        %1076 = vmatprep.subr.mxu0 0.0
        %1077 = vmatpush1.msra.mxu0 0.0
        %1078 = vmatprep.subr.mxu0 0.0
        %1079 = vmatpush1.msra.mxu0 0.0
        %1080 = vmatprep.subr.mxu0 0.0
        %1081 = vmatpush1.msra.mxu0 0.0
        %1082 = vmatprep.subr.mxu0 0.0
        %1083 = vmatpush1.msra.mxu0 0.0
        %1084 = vmatprep.subr.mxu0 0.0
        %1085 = vmatpush1.msra.mxu0 0.0
        %1086 = vmatprep.subr.mxu0 0.0
        %1087 = vmatpush1.msra.mxu0 0.0
        %1088 = vmatprep.subr.mxu0 0.0
        %1089 = vmatpush1.msra.mxu0 0.0
        %1090 = vmatprep.subr.mxu0 0.0
        %1091 = vmatpush1.msra.mxu0 0.0
        %1092 = vmatprep.subr.mxu0 0.0
        %1093 = vmatpush1.msra.mxu0 0.0
        %1094 = vmatprep.subr.mxu0 0.0
        %1095 = vmatpush1.msra.mxu0 0.0
        %1096 = vmatprep.subr.mxu0 0.0
        %1097 = vmatpush1.msra.mxu0 0.0
        %1098 = vmatprep.subr.mxu0 0.0
        %1099 = vmatpush1.msra.mxu0 0.0
        %1100 = vmatprep.subr.mxu0 0.0
        %1101 = vmatpush1.msra.mxu0 0.0
        %1102 = vmatprep.subr.mxu0 0.0
        %1103 = vmatpush1.msra.mxu0 0.0
        %1104 = vmatprep.subr.mxu0 0.0
        %1105 = vmatpush1.msra.mxu0 0.0
        %1106 = vmatprep.subr.mxu0 0.0
        %1107 = vmatpush1.msra.mxu0 0.0
        %1108 = vmatprep.subr.mxu0 0.0
        %1109 = vmatpush1.msra.mxu0 0.0
        %1110 = vmatprep.mubr.f32.mxu0 0.0
        %1111 = vmatmul.mubr.f32.gmra.mrb[0].mxu0 %v974
        %v1112 = vpop.f32.mrb[0].mxu0
        %v1113 = vadd.f32 %v960, %v1112
        %v1114 = vpop.f32.mrb[0].mxu0
        %1115 = vdwg.mxu0
        %1116 = vmatprep.subr.mxu0 0.0
        %1117 = vmatpush1.msra.mxu0 %v897
        %1118 = vmatprep.subr.mxu0 0.0
        %1119 = vmatpush1.msra.mxu0 %v898
        %1120 = vmatprep.subr.mxu0 0.0
        %1121 = vmatpush1.msra.mxu0 %v899
        %1122 = vmatprep.subr.mxu0 0.0
        %1123 = vmatpush1.msra.mxu0 %v900
        %1124 = vmatprep.subr.mxu0 0.0
        %1125 = vmatpush1.msra.mxu0 0.0
        %1126 = vmatprep.subr.mxu0 0.0
        %1127 = vmatpush1.msra.mxu0 0.0
        %1128 = vmatprep.subr.mxu0 0.0
        %1129 = vmatpush1.msra.mxu0 0.0
        %1130 = vmatprep.subr.mxu0 0.0
        %1131 = vmatpush1.msra.mxu0 0.0
        %1132 = vmatprep.subr.mxu0 0.0
        %1133 = vmatpush1.msra.mxu0 0.0
        %1134 = vmatprep.subr.mxu0 0.0
        %1135 = vmatpush1.msra.mxu0 0.0
        %1136 = vmatprep.subr.mxu0 0.0
        %1137 = vmatpush1.msra.mxu0 0.0
        %1138 = vmatprep.subr.mxu0 0.0
        %1139 = vmatpush1.msra.mxu0 0.0
        %1140 = vmatprep.subr.mxu0 0.0
        %1141 = vmatpush1.msra.mxu0 0.0
        %1142 = vmatprep.subr.mxu0 0.0
        %1143 = vmatpush1.msra.mxu0 0.0
        %1144 = vmatprep.subr.mxu0 0.0
        %1145 = vmatpush1.msra.mxu0 0.0
        %1146 = vmatprep.subr.mxu0 0.0
        %1147 = vmatpush1.msra.mxu0 0.0
        %1148 = vmatprep.subr.mxu0 0.0
        %1149 = vmatpush1.msra.mxu0 0.0
        %1150 = vmatprep.subr.mxu0 0.0
        %1151 = vmatpush1.msra.mxu0 0.0
        %1152 = vmatprep.subr.mxu0 0.0
        %1153 = vmatpush1.msra.mxu0 0.0
        %1154 = vmatprep.subr.mxu0 0.0
        %1155 = vmatpush1.msra.mxu0 0.0
        %1156 = vmatprep.subr.mxu0 0.0
        %1157 = vmatpush1.msra.mxu0 0.0
        %1158 = vmatprep.subr.mxu0 0.0
        %1159 = vmatpush1.msra.mxu0 0.0
        %1160 = vmatprep.subr.mxu0 0.0
        %1161 = vmatpush1.msra.mxu0 0.0
        %1162 = vmatprep.subr.mxu0 0.0
        %1163 = vmatpush1.msra.mxu0 0.0
        %1164 = vmatprep.subr.mxu0 0.0
        %1165 = vmatpush1.msra.mxu0 0.0
        %1166 = vmatprep.subr.mxu0 0.0
        %1167 = vmatpush1.msra.mxu0 0.0
        %1168 = vmatprep.subr.mxu0 0.0
        %1169 = vmatpush1.msra.mxu0 0.0
        %1170 = vmatprep.subr.mxu0 0.0
        %1171 = vmatpush1.msra.mxu0 0.0
        %1172 = vmatprep.subr.mxu0 0.0
        %1173 = vmatpush1.msra.mxu0 0.0
        %1174 = vmatprep.subr.mxu0 0.0
        %1175 = vmatpush1.msra.mxu0 0.0
        %1176 = vmatprep.subr.mxu0 0.0
        %1177 = vmatpush1.msra.mxu0 0.0
        %1178 = vmatprep.subr.mxu0 0.0
        %1179 = vmatpush1.msra.mxu0 0.0
        %1180 = vmatprep.mubr.f32.mxu0 0.0
        %1181 = vmatmul.mubr.f32.gmra.mrb[0].mxu0 %v974
        %v1182 = vpop.f32.mrb[0].mxu0
        %v1183 = vadd.f32 %v964, %v1182
        %v1184 = vpop.f32.mrb[0].mxu0
        %1185 = vdwg.mxu0
        %1186 = vmatprep.subr.mxu0 0.0
        %1187 = vmatpush1.msra.mxu0 %v901
        %1188 = vmatprep.subr.mxu0 0.0
        %1189 = vmatpush1.msra.mxu0 %v902
        %1190 = vmatprep.subr.mxu0 0.0
        %1191 = vmatpush1.msra.mxu0 %v903
        %1192 = vmatprep.subr.mxu0 0.0
        %1193 = vmatpush1.msra.mxu0 %v904
        %1194 = vmatprep.subr.mxu0 0.0
        %1195 = vmatpush1.msra.mxu0 0.0
        %1196 = vmatprep.subr.mxu0 0.0
        %1197 = vmatpush1.msra.mxu0 0.0
        %1198 = vmatprep.subr.mxu0 0.0
        %1199 = vmatpush1.msra.mxu0 0.0
        %1200 = vmatprep.subr.mxu0 0.0
        %1201 = vmatpush1.msra.mxu0 0.0
        %1202 = vmatprep.subr.mxu0 0.0
        %1203 = vmatpush1.msra.mxu0 0.0
        %1204 = vmatprep.subr.mxu0 0.0
        %1205 = vmatpush1.msra.mxu0 0.0
        %1206 = vmatprep.subr.mxu0 0.0
        %1207 = vmatpush1.msra.mxu0 0.0
        %1208 = vmatprep.subr.mxu0 0.0
        %1209 = vmatpush1.msra.mxu0 0.0
        %1210 = vmatprep.subr.mxu0 0.0
        %1211 = vmatpush1.msra.mxu0 0.0
        %1212 = vmatprep.subr.mxu0 0.0
        %1213 = vmatpush1.msra.mxu0 0.0
        %1214 = vmatprep.subr.mxu0 0.0
        %1215 = vmatpush1.msra.mxu0 0.0
        %1216 = vmatprep.subr.mxu0 0.0
        %1217 = vmatpush1.msra.mxu0 0.0
        %1218 = vmatprep.subr.mxu0 0.0
        %1219 = vmatpush1.msra.mxu0 0.0
        %1220 = vmatprep.subr.mxu0 0.0
        %1221 = vmatpush1.msra.mxu0 0.0
        %1222 = vmatprep.subr.mxu0 0.0
        %1223 = vmatpush1.msra.mxu0 0.0
        %1224 = vmatprep.subr.mxu0 0.0
        %1225 = vmatpush1.msra.mxu0 0.0
        %1226 = vmatprep.subr.mxu0 0.0
        %1227 = vmatpush1.msra.mxu0 0.0
        %1228 = vmatprep.subr.mxu0 0.0
        %1229 = vmatpush1.msra.mxu0 0.0
        %1230 = vmatprep.subr.mxu0 0.0
        %1231 = vmatpush1.msra.mxu0 0.0
        %1232 = vmatprep.subr.mxu0 0.0
        %1233 = vmatpush1.msra.mxu0 0.0
        %1234 = vmatprep.subr.mxu0 0.0
        %1235 = vmatpush1.msra.mxu0 0.0
        %1236 = vmatprep.subr.mxu0 0.0
        %1237 = vmatpush1.msra.mxu0 0.0
        %1238 = vmatprep.subr.mxu0 0.0
        %1239 = vmatpush1.msra.mxu0 0.0
        %1240 = vmatprep.subr.mxu0 0.0
        %1241 = vmatpush1.msra.mxu0 0.0
        %1242 = vmatprep.subr.mxu0 0.0
        %1243 = vmatpush1.msra.mxu0 0.0
        %1244 = vmatprep.subr.mxu0 0.0
        %1245 = vmatpush1.msra.mxu0 0.0
        %1246 = vmatprep.subr.mxu0 0.0
        %1247 = vmatpush1.msra.mxu0 0.0
        %1248 = vmatprep.subr.mxu0 0.0
        %1249 = vmatpush1.msra.mxu0 0.0
        %1250 = vmatprep.mubr.f32.mxu0 0.0
        %1251 = vmatmul.mubr.f32.gmra.mrb[0].mxu0 %v974
        %v1252 = vpop.f32.mrb[0].mxu0
        %v1253 = vadd.f32 %v968, %v1252
        %v1254 = vpop.f32.mrb[0].mxu0
        %1255 = vdwg.mxu0
        %v1260 = vlaneseq
        %v1261 = vshrl.u32 %v1260, 7
        %v1262 = vsub.s32 0, %v1261
        %v1263 = vrot.slane %v941, %v1262
        %v1264 = vlaneseq
        %v1265 = vshrl.u32 %v1264, 7
        %v1266 = vsub.s32 0, %v1265
        %v1267 = vrot.slane %v942, %v1266
        %v1268 = vlaneseq
        %v1269 = vshrl.u32 %v1268, 7
        %v1270 = vsub.s32 0, %v1269
        %v1271 = vrot.slane %v943, %v1270
        %v1272 = vlaneseq
        %v1273 = vshrl.u32 %v1272, 7
        %v1274 = vsub.s32 0, %v1273
        %v1275 = vrot.slane %v944, %v1274
        %v1281 = vsel %vm668, %v825, 0
        %1283 = vmatprep.subr.mxu0 0.0
        %1284 = vmatpush1.msra.mxu0 %v905
        %1285 = vmatprep.subr.mxu0 0.0
        %1286 = vmatpush1.msra.mxu0 %v906
        %1287 = vmatprep.subr.mxu0 0.0
        %1288 = vmatpush1.msra.mxu0 %v907
        %1289 = vmatprep.subr.mxu0 0.0
        %1290 = vmatpush1.msra.mxu0 %v908
        %1291 = vmatprep.subr.mxu0 0.0
        %1292 = vmatpush1.msra.mxu0 0.0
        %1293 = vmatprep.subr.mxu0 0.0
        %1294 = vmatpush1.msra.mxu0 0.0
        %1295 = vmatprep.subr.mxu0 0.0
        %1296 = vmatpush1.msra.mxu0 0.0
        %1297 = vmatprep.subr.mxu0 0.0
        %1298 = vmatpush1.msra.mxu0 0.0
        %1299 = vmatprep.subr.mxu0 0.0
        %1300 = vmatpush1.msra.mxu0 0.0
        %1301 = vmatprep.subr.mxu0 0.0
        %1302 = vmatpush1.msra.mxu0 0.0
        %1303 = vmatprep.subr.mxu0 0.0
        %1304 = vmatpush1.msra.mxu0 0.0
        %1305 = vmatprep.subr.mxu0 0.0
        %1306 = vmatpush1.msra.mxu0 0.0
        %1307 = vmatprep.subr.mxu0 0.0
        %1308 = vmatpush1.msra.mxu0 0.0
        %1309 = vmatprep.subr.mxu0 0.0
        %1310 = vmatpush1.msra.mxu0 0.0
        %1311 = vmatprep.subr.mxu0 0.0
        %1312 = vmatpush1.msra.mxu0 0.0
        %1313 = vmatprep.subr.mxu0 0.0
        %1314 = vmatpush1.msra.mxu0 0.0
        %1315 = vmatprep.subr.mxu0 0.0
        %1316 = vmatpush1.msra.mxu0 0.0
        %1317 = vmatprep.subr.mxu0 0.0
        %1318 = vmatpush1.msra.mxu0 0.0
        %1319 = vmatprep.subr.mxu0 0.0
        %1320 = vmatpush1.msra.mxu0 0.0
        %1321 = vmatprep.subr.mxu0 0.0
        %1322 = vmatpush1.msra.mxu0 0.0
        %1323 = vmatprep.subr.mxu0 0.0
        %1324 = vmatpush1.msra.mxu0 0.0
        %1325 = vmatprep.subr.mxu0 0.0
        %1326 = vmatpush1.msra.mxu0 0.0
        %1327 = vmatprep.subr.mxu0 0.0
        %1328 = vmatpush1.msra.mxu0 0.0
        %1329 = vmatprep.subr.mxu0 0.0
        %1330 = vmatpush1.msra.mxu0 0.0
        %1331 = vmatprep.subr.mxu0 0.0
        %1332 = vmatpush1.msra.mxu0 0.0
        %1333 = vmatprep.subr.mxu0 0.0
        %1334 = vmatpush1.msra.mxu0 0.0
        %1335 = vmatprep.subr.mxu0 0.0
        %1336 = vmatpush1.msra.mxu0 0.0
        %1337 = vmatprep.subr.mxu0 0.0
        %1338 = vmatpush1.msra.mxu0 0.0
        %1339 = vmatprep.subr.mxu0 0.0
        %1340 = vmatpush1.msra.mxu0 0.0
        %1341 = vmatprep.subr.mxu0 0.0
        %1342 = vmatpush1.msra.mxu0 0.0
        %1343 = vmatprep.subr.mxu0 0.0
        %1344 = vmatpush1.msra.mxu0 0.0
        %1345 = vmatprep.subr.mxu0 0.0
        %1346 = vmatpush1.msra.mxu0 0.0
        %1347 = vmatprep.mubr.f32.mxu0 0.0
        %1348 = vmatmul.mubr.f32.gmra.mrb[0].mxu0 %v1281
        %v1349 = vpop.f32.mrb[0].mxu0
        %v1350 = vadd.f32 %v1263, %v1349
        %v1351 = vpop.f32.mrb[0].mxu0
        %1352 = vdwg.mxu0
        %1353 = vmatprep.subr.mxu0 0.0
        %1354 = vmatpush1.msra.mxu0 %v909
        %1355 = vmatprep.subr.mxu0 0.0
        %1356 = vmatpush1.msra.mxu0 %v910
        %1357 = vmatprep.subr.mxu0 0.0
        %1358 = vmatpush1.msra.mxu0 %v911
        %1359 = vmatprep.subr.mxu0 0.0
        %1360 = vmatpush1.msra.mxu0 %v912
        %1361 = vmatprep.subr.mxu0 0.0
        %1362 = vmatpush1.msra.mxu0 0.0
        %1363 = vmatprep.subr.mxu0 0.0
        %1364 = vmatpush1.msra.mxu0 0.0
        %1365 = vmatprep.subr.mxu0 0.0
        %1366 = vmatpush1.msra.mxu0 0.0
        %1367 = vmatprep.subr.mxu0 0.0
        %1368 = vmatpush1.msra.mxu0 0.0
        %1369 = vmatprep.subr.mxu0 0.0
        %1370 = vmatpush1.msra.mxu0 0.0
        %1371 = vmatprep.subr.mxu0 0.0
        %1372 = vmatpush1.msra.mxu0 0.0
        %1373 = vmatprep.subr.mxu0 0.0
        %1374 = vmatpush1.msra.mxu0 0.0
        %1375 = vmatprep.subr.mxu0 0.0
        %1376 = vmatpush1.msra.mxu0 0.0
        %1377 = vmatprep.subr.mxu0 0.0
        %1378 = vmatpush1.msra.mxu0 0.0
        %1379 = vmatprep.subr.mxu0 0.0
        %1380 = vmatpush1.msra.mxu0 0.0
        %1381 = vmatprep.subr.mxu0 0.0
        %1382 = vmatpush1.msra.mxu0 0.0
        %1383 = vmatprep.subr.mxu0 0.0
        %1384 = vmatpush1.msra.mxu0 0.0
        %1385 = vmatprep.subr.mxu0 0.0
        %1386 = vmatpush1.msra.mxu0 0.0
        %1387 = vmatprep.subr.mxu0 0.0
        %1388 = vmatpush1.msra.mxu0 0.0
        %1389 = vmatprep.subr.mxu0 0.0
        %1390 = vmatpush1.msra.mxu0 0.0
        %1391 = vmatprep.subr.mxu0 0.0
        %1392 = vmatpush1.msra.mxu0 0.0
        %1393 = vmatprep.subr.mxu0 0.0
        %1394 = vmatpush1.msra.mxu0 0.0
        %1395 = vmatprep.subr.mxu0 0.0
        %1396 = vmatpush1.msra.mxu0 0.0
        %1397 = vmatprep.subr.mxu0 0.0
        %1398 = vmatpush1.msra.mxu0 0.0
        %1399 = vmatprep.subr.mxu0 0.0
        %1400 = vmatpush1.msra.mxu0 0.0
        %1401 = vmatprep.subr.mxu0 0.0
        %1402 = vmatpush1.msra.mxu0 0.0
        %1403 = vmatprep.subr.mxu0 0.0
        %1404 = vmatpush1.msra.mxu0 0.0
        %1405 = vmatprep.subr.mxu0 0.0
        %1406 = vmatpush1.msra.mxu0 0.0
        %1407 = vmatprep.subr.mxu0 0.0
        %1408 = vmatpush1.msra.mxu0 0.0
        %1409 = vmatprep.subr.mxu0 0.0
        %1410 = vmatpush1.msra.mxu0 0.0
        %1411 = vmatprep.subr.mxu0 0.0
        %1412 = vmatpush1.msra.mxu0 0.0
        %1413 = vmatprep.subr.mxu0 0.0
        %1414 = vmatpush1.msra.mxu0 0.0
        %1415 = vmatprep.subr.mxu0 0.0
        %1416 = vmatpush1.msra.mxu0 0.0
        %1417 = vmatprep.mubr.f32.mxu0 0.0
        %1418 = vmatmul.mubr.f32.gmra.mrb[0].mxu0 %v1281
        %v1419 = vpop.f32.mrb[0].mxu0
        %v1420 = vadd.f32 %v1267, %v1419
        %v1421 = vpop.f32.mrb[0].mxu0
        %1422 = vdwg.mxu0
        %1423 = vmatprep.subr.mxu0 0.0
        %1424 = vmatpush1.msra.mxu0 %v913
        %1425 = vmatprep.subr.mxu0 0.0
        %1426 = vmatpush1.msra.mxu0 %v914
        %1427 = vmatprep.subr.mxu0 0.0
        %1428 = vmatpush1.msra.mxu0 %v915
        %1429 = vmatprep.subr.mxu0 0.0
        %1430 = vmatpush1.msra.mxu0 %v916
        %1431 = vmatprep.subr.mxu0 0.0
        %1432 = vmatpush1.msra.mxu0 0.0
        %1433 = vmatprep.subr.mxu0 0.0
        %1434 = vmatpush1.msra.mxu0 0.0
        %1435 = vmatprep.subr.mxu0 0.0
        %1436 = vmatpush1.msra.mxu0 0.0
        %1437 = vmatprep.subr.mxu0 0.0
        %1438 = vmatpush1.msra.mxu0 0.0
        %1439 = vmatprep.subr.mxu0 0.0
        %1440 = vmatpush1.msra.mxu0 0.0
        %1441 = vmatprep.subr.mxu0 0.0
        %1442 = vmatpush1.msra.mxu0 0.0
        %1443 = vmatprep.subr.mxu0 0.0
        %1444 = vmatpush1.msra.mxu0 0.0
        %1445 = vmatprep.subr.mxu0 0.0
        %1446 = vmatpush1.msra.mxu0 0.0
        %1447 = vmatprep.subr.mxu0 0.0
        %1448 = vmatpush1.msra.mxu0 0.0
        %1449 = vmatprep.subr.mxu0 0.0
        %1450 = vmatpush1.msra.mxu0 0.0
        %1451 = vmatprep.subr.mxu0 0.0
        %1452 = vmatpush1.msra.mxu0 0.0
        %1453 = vmatprep.subr.mxu0 0.0
        %1454 = vmatpush1.msra.mxu0 0.0
        %1455 = vmatprep.subr.mxu0 0.0
        %1456 = vmatpush1.msra.mxu0 0.0
        %1457 = vmatprep.subr.mxu0 0.0
        %1458 = vmatpush1.msra.mxu0 0.0
        %1459 = vmatprep.subr.mxu0 0.0
        %1460 = vmatpush1.msra.mxu0 0.0
        %1461 = vmatprep.subr.mxu0 0.0
        %1462 = vmatpush1.msra.mxu0 0.0
        %1463 = vmatprep.subr.mxu0 0.0
        %1464 = vmatpush1.msra.mxu0 0.0
        %1465 = vmatprep.subr.mxu0 0.0
        %1466 = vmatpush1.msra.mxu0 0.0
        %1467 = vmatprep.subr.mxu0 0.0
        %1468 = vmatpush1.msra.mxu0 0.0
        %1469 = vmatprep.subr.mxu0 0.0
        %1470 = vmatpush1.msra.mxu0 0.0
        %1471 = vmatprep.subr.mxu0 0.0
        %1472 = vmatpush1.msra.mxu0 0.0
        %1473 = vmatprep.subr.mxu0 0.0
        %1474 = vmatpush1.msra.mxu0 0.0
        %1475 = vmatprep.subr.mxu0 0.0
        %1476 = vmatpush1.msra.mxu0 0.0
        %1477 = vmatprep.subr.mxu0 0.0
        %1478 = vmatpush1.msra.mxu0 0.0
        %1479 = vmatprep.subr.mxu0 0.0
        %1480 = vmatpush1.msra.mxu0 0.0
        %1481 = vmatprep.subr.mxu0 0.0
        %1482 = vmatpush1.msra.mxu0 0.0
        %1483 = vmatprep.subr.mxu0 0.0
        %1484 = vmatpush1.msra.mxu0 0.0
        %1485 = vmatprep.subr.mxu0 0.0
        %1486 = vmatpush1.msra.mxu0 0.0
        %1487 = vmatprep.mubr.f32.mxu0 0.0
        %1488 = vmatmul.mubr.f32.gmra.mrb[0].mxu0 %v1281
        %v1489 = vpop.f32.mrb[0].mxu0
        %v1490 = vadd.f32 %v1271, %v1489
        %v1491 = vpop.f32.mrb[0].mxu0
        %1492 = vdwg.mxu0
        %1493 = vmatprep.subr.mxu0 0.0
        %1494 = vmatpush1.msra.mxu0 %v917
        %1495 = vmatprep.subr.mxu0 0.0
        %1496 = vmatpush1.msra.mxu0 %v918
        %1497 = vmatprep.subr.mxu0 0.0
        %1498 = vmatpush1.msra.mxu0 %v919
        %1499 = vmatprep.subr.mxu0 0.0
        %1500 = vmatpush1.msra.mxu0 %v920
        %1501 = vmatprep.subr.mxu0 0.0
        %1502 = vmatpush1.msra.mxu0 0.0
        %1503 = vmatprep.subr.mxu0 0.0
        %1504 = vmatpush1.msra.mxu0 0.0
        %1505 = vmatprep.subr.mxu0 0.0
        %1506 = vmatpush1.msra.mxu0 0.0
        %1507 = vmatprep.subr.mxu0 0.0
        %1508 = vmatpush1.msra.mxu0 0.0
        %1509 = vmatprep.subr.mxu0 0.0
        %1510 = vmatpush1.msra.mxu0 0.0
        %1511 = vmatprep.subr.mxu0 0.0
        %1512 = vmatpush1.msra.mxu0 0.0
        %1513 = vmatprep.subr.mxu0 0.0
        %1514 = vmatpush1.msra.mxu0 0.0
        %1515 = vmatprep.subr.mxu0 0.0
        %1516 = vmatpush1.msra.mxu0 0.0
        %1517 = vmatprep.subr.mxu0 0.0
        %1518 = vmatpush1.msra.mxu0 0.0
        %1519 = vmatprep.subr.mxu0 0.0
        %1520 = vmatpush1.msra.mxu0 0.0
        %1521 = vmatprep.subr.mxu0 0.0
        %1522 = vmatpush1.msra.mxu0 0.0
        %1523 = vmatprep.subr.mxu0 0.0
        %1524 = vmatpush1.msra.mxu0 0.0
        %1525 = vmatprep.subr.mxu0 0.0
        %1526 = vmatpush1.msra.mxu0 0.0
        %1527 = vmatprep.subr.mxu0 0.0
        %1528 = vmatpush1.msra.mxu0 0.0
        %1529 = vmatprep.subr.mxu0 0.0
        %1530 = vmatpush1.msra.mxu0 0.0
        %1531 = vmatprep.subr.mxu0 0.0
        %1532 = vmatpush1.msra.mxu0 0.0
        %1533 = vmatprep.subr.mxu0 0.0
        %1534 = vmatpush1.msra.mxu0 0.0
        %1535 = vmatprep.subr.mxu0 0.0
        %1536 = vmatpush1.msra.mxu0 0.0
        %1537 = vmatprep.subr.mxu0 0.0
        %1538 = vmatpush1.msra.mxu0 0.0
        %1539 = vmatprep.subr.mxu0 0.0
        %1540 = vmatpush1.msra.mxu0 0.0
        %1541 = vmatprep.subr.mxu0 0.0
        %1542 = vmatpush1.msra.mxu0 0.0
        %1543 = vmatprep.subr.mxu0 0.0
        %1544 = vmatpush1.msra.mxu0 0.0
        %1545 = vmatprep.subr.mxu0 0.0
        %1546 = vmatpush1.msra.mxu0 0.0
        %1547 = vmatprep.subr.mxu0 0.0
        %1548 = vmatpush1.msra.mxu0 0.0
        %1549 = vmatprep.subr.mxu0 0.0
        %1550 = vmatpush1.msra.mxu0 0.0
        %1551 = vmatprep.subr.mxu0 0.0
        %1552 = vmatpush1.msra.mxu0 0.0
        %1553 = vmatprep.subr.mxu0 0.0
        %1554 = vmatpush1.msra.mxu0 0.0
        %1555 = vmatprep.subr.mxu0 0.0
        %1556 = vmatpush1.msra.mxu0 0.0
        %1557 = vmatprep.mubr.f32.mxu0 0.0
        %1558 = vmatmul.mubr.f32.gmra.mrb[0].mxu0 %v1281
        %v1559 = vpop.f32.mrb[0].mxu0
        %v1560 = vadd.f32 %v1275, %v1559
        %v1561 = vpop.f32.mrb[0].mxu0
        %1562 = vdwg.mxu0
        %v1567 = vlaneseq
        %v1568 = vshrl.u32 %v1567, 7
        %v1569 = vsub.s32 0, %v1568
        %v1570 = vrot.slane %v945, %v1569
        %v1571 = vlaneseq
        %v1572 = vshrl.u32 %v1571, 7
        %v1573 = vsub.s32 0, %v1572
        %v1574 = vrot.slane %v946, %v1573
        %v1575 = vlaneseq
        %v1576 = vshrl.u32 %v1575, 7
        %v1577 = vsub.s32 0, %v1576
        %v1578 = vrot.slane %v947, %v1577
        %v1579 = vlaneseq
        %v1580 = vshrl.u32 %v1579, 7
        %v1581 = vsub.s32 0, %v1580
        %v1582 = vrot.slane %v948, %v1581
        %1587 = vmatprep.subr.mxu0 0.0
        %1588 = vmatpush1.msra.mxu0 %v921
        %1589 = vmatprep.subr.mxu0 0.0
        %1590 = vmatpush1.msra.mxu0 %v922
        %1591 = vmatprep.subr.mxu0 0.0
        %1592 = vmatpush1.msra.mxu0 %v923
        %1593 = vmatprep.subr.mxu0 0.0
        %1594 = vmatpush1.msra.mxu0 %v924
        %1595 = vmatprep.subr.mxu0 0.0
        %1596 = vmatpush1.msra.mxu0 0.0
        %1597 = vmatprep.subr.mxu0 0.0
        %1598 = vmatpush1.msra.mxu0 0.0
        %1599 = vmatprep.subr.mxu0 0.0
        %1600 = vmatpush1.msra.mxu0 0.0
        %1601 = vmatprep.subr.mxu0 0.0
        %1602 = vmatpush1.msra.mxu0 0.0
        %1603 = vmatprep.subr.mxu0 0.0
        %1604 = vmatpush1.msra.mxu0 0.0
        %1605 = vmatprep.subr.mxu0 0.0
        %1606 = vmatpush1.msra.mxu0 0.0
        %1607 = vmatprep.subr.mxu0 0.0
        %1608 = vmatpush1.msra.mxu0 0.0
        %1609 = vmatprep.subr.mxu0 0.0
        %1610 = vmatpush1.msra.mxu0 0.0
        %1611 = vmatprep.subr.mxu0 0.0
        %1612 = vmatpush1.msra.mxu0 0.0
        %1613 = vmatprep.subr.mxu0 0.0
        %1614 = vmatpush1.msra.mxu0 0.0
        %1615 = vmatprep.subr.mxu0 0.0
        %1616 = vmatpush1.msra.mxu0 0.0
        %1617 = vmatprep.subr.mxu0 0.0
        %1618 = vmatpush1.msra.mxu0 0.0
        %1619 = vmatprep.subr.mxu0 0.0
        %1620 = vmatpush1.msra.mxu0 0.0
        %1621 = vmatprep.subr.mxu0 0.0
        %1622 = vmatpush1.msra.mxu0 0.0
        %1623 = vmatprep.subr.mxu0 0.0
        %1624 = vmatpush1.msra.mxu0 0.0
        %1625 = vmatprep.subr.mxu0 0.0
        %1626 = vmatpush1.msra.mxu0 0.0
        %1627 = vmatprep.subr.mxu0 0.0
        %1628 = vmatpush1.msra.mxu0 0.0
        %1629 = vmatprep.subr.mxu0 0.0
        %1630 = vmatpush1.msra.mxu0 0.0
        %1631 = vmatprep.subr.mxu0 0.0
        %1632 = vmatpush1.msra.mxu0 0.0
        %1633 = vmatprep.subr.mxu0 0.0
        %1634 = vmatpush1.msra.mxu0 0.0
        %1635 = vmatprep.subr.mxu0 0.0
        %1636 = vmatpush1.msra.mxu0 0.0
        %1637 = vmatprep.subr.mxu0 0.0
        %1638 = vmatpush1.msra.mxu0 0.0
        %1639 = vmatprep.subr.mxu0 0.0
        %1640 = vmatpush1.msra.mxu0 0.0
        %1641 = vmatprep.subr.mxu0 0.0
        %1642 = vmatpush1.msra.mxu0 0.0
        %1643 = vmatprep.subr.mxu0 0.0
        %1644 = vmatpush1.msra.mxu0 0.0
        %1645 = vmatprep.subr.mxu0 0.0
        %1646 = vmatpush1.msra.mxu0 0.0
        %1647 = vmatprep.subr.mxu0 0.0
        %1648 = vmatpush1.msra.mxu0 0.0
        %1649 = vmatprep.subr.mxu0 0.0
        %1650 = vmatpush1.msra.mxu0 0.0
        %1651 = vmatprep.mubr.f32.mxu0 0.0
        %1652 = vmatmul.mubr.f32.gmra.mrb[0].mxu0 %v1281
        %v1653 = vpop.f32.mrb[0].mxu0
        %v1654 = vadd.f32 %v1570, %v1653
        %v1655 = vpop.f32.mrb[0].mxu0
        %1656 = vdwg.mxu0
        %1657 = vmatprep.subr.mxu0 0.0
        %1658 = vmatpush1.msra.mxu0 %v925
        %1659 = vmatprep.subr.mxu0 0.0
        %1660 = vmatpush1.msra.mxu0 %v926
        %1661 = vmatprep.subr.mxu0 0.0
        %1662 = vmatpush1.msra.mxu0 %v927
        %1663 = vmatprep.subr.mxu0 0.0
        %1664 = vmatpush1.msra.mxu0 %v928
        %1665 = vmatprep.subr.mxu0 0.0
        %1666 = vmatpush1.msra.mxu0 0.0
        %1667 = vmatprep.subr.mxu0 0.0
        %1668 = vmatpush1.msra.mxu0 0.0
        %1669 = vmatprep.subr.mxu0 0.0
        %1670 = vmatpush1.msra.mxu0 0.0
        %1671 = vmatprep.subr.mxu0 0.0
        %1672 = vmatpush1.msra.mxu0 0.0
        %1673 = vmatprep.subr.mxu0 0.0
        %1674 = vmatpush1.msra.mxu0 0.0
        %1675 = vmatprep.subr.mxu0 0.0
        %1676 = vmatpush1.msra.mxu0 0.0
        %1677 = vmatprep.subr.mxu0 0.0
        %1678 = vmatpush1.msra.mxu0 0.0
        %1679 = vmatprep.subr.mxu0 0.0
        %1680 = vmatpush1.msra.mxu0 0.0
        %1681 = vmatprep.subr.mxu0 0.0
        %1682 = vmatpush1.msra.mxu0 0.0
        %1683 = vmatprep.subr.mxu0 0.0
        %1684 = vmatpush1.msra.mxu0 0.0
        %1685 = vmatprep.subr.mxu0 0.0
        %1686 = vmatpush1.msra.mxu0 0.0
        %1687 = vmatprep.subr.mxu0 0.0
        %1688 = vmatpush1.msra.mxu0 0.0
        %1689 = vmatprep.subr.mxu0 0.0
        %1690 = vmatpush1.msra.mxu0 0.0
        %1691 = vmatprep.subr.mxu0 0.0
        %1692 = vmatpush1.msra.mxu0 0.0
        %1693 = vmatprep.subr.mxu0 0.0
        %1694 = vmatpush1.msra.mxu0 0.0
        %1695 = vmatprep.subr.mxu0 0.0
        %1696 = vmatpush1.msra.mxu0 0.0
        %1697 = vmatprep.subr.mxu0 0.0
        %1698 = vmatpush1.msra.mxu0 0.0
        %1699 = vmatprep.subr.mxu0 0.0
        %1700 = vmatpush1.msra.mxu0 0.0
        %1701 = vmatprep.subr.mxu0 0.0
        %1702 = vmatpush1.msra.mxu0 0.0
        %1703 = vmatprep.subr.mxu0 0.0
        %1704 = vmatpush1.msra.mxu0 0.0
        %1705 = vmatprep.subr.mxu0 0.0
        %1706 = vmatpush1.msra.mxu0 0.0
        %1707 = vmatprep.subr.mxu0 0.0
        %1708 = vmatpush1.msra.mxu0 0.0
        %1709 = vmatprep.subr.mxu0 0.0
        %1710 = vmatpush1.msra.mxu0 0.0
        %1711 = vmatprep.subr.mxu0 0.0
        %1712 = vmatpush1.msra.mxu0 0.0
        %1713 = vmatprep.subr.mxu0 0.0
        %1714 = vmatpush1.msra.mxu0 0.0
        %1715 = vmatprep.subr.mxu0 0.0
        %1716 = vmatpush1.msra.mxu0 0.0
        %1717 = vmatprep.subr.mxu0 0.0
        %1718 = vmatpush1.msra.mxu0 0.0
        %1719 = vmatprep.subr.mxu0 0.0
        %1720 = vmatpush1.msra.mxu0 0.0
        %1721 = vmatprep.mubr.f32.mxu0 0.0
        %1722 = vmatmul.mubr.f32.gmra.mrb[0].mxu0 %v1281
        %v1723 = vpop.f32.mrb[0].mxu0
        %v1724 = vadd.f32 %v1574, %v1723
        %v1725 = vpop.f32.mrb[0].mxu0
        %1726 = vdwg.mxu0
        %1727 = vmatprep.subr.mxu0 0.0
        %1728 = vmatpush1.msra.mxu0 %v929
        %1729 = vmatprep.subr.mxu0 0.0
        %1730 = vmatpush1.msra.mxu0 %v930
        %1731 = vmatprep.subr.mxu0 0.0
        %1732 = vmatpush1.msra.mxu0 %v931
        %1733 = vmatprep.subr.mxu0 0.0
        %1734 = vmatpush1.msra.mxu0 %v932
        %1735 = vmatprep.subr.mxu0 0.0
        %1736 = vmatpush1.msra.mxu0 0.0
        %1737 = vmatprep.subr.mxu0 0.0
        %1738 = vmatpush1.msra.mxu0 0.0
        %1739 = vmatprep.subr.mxu0 0.0
        %1740 = vmatpush1.msra.mxu0 0.0
        %1741 = vmatprep.subr.mxu0 0.0
        %1742 = vmatpush1.msra.mxu0 0.0
        %1743 = vmatprep.subr.mxu0 0.0
        %1744 = vmatpush1.msra.mxu0 0.0
        %1745 = vmatprep.subr.mxu0 0.0
        %1746 = vmatpush1.msra.mxu0 0.0
        %1747 = vmatprep.subr.mxu0 0.0
        %1748 = vmatpush1.msra.mxu0 0.0
        %1749 = vmatprep.subr.mxu0 0.0
        %1750 = vmatpush1.msra.mxu0 0.0
        %1751 = vmatprep.subr.mxu0 0.0
        %1752 = vmatpush1.msra.mxu0 0.0
        %1753 = vmatprep.subr.mxu0 0.0
        %1754 = vmatpush1.msra.mxu0 0.0
        %1755 = vmatprep.subr.mxu0 0.0
        %1756 = vmatpush1.msra.mxu0 0.0
        %1757 = vmatprep.subr.mxu0 0.0
        %1758 = vmatpush1.msra.mxu0 0.0
        %1759 = vmatprep.subr.mxu0 0.0
        %1760 = vmatpush1.msra.mxu0 0.0
        %1761 = vmatprep.subr.mxu0 0.0
        %1762 = vmatpush1.msra.mxu0 0.0
        %1763 = vmatprep.subr.mxu0 0.0
        %1764 = vmatpush1.msra.mxu0 0.0
        %1765 = vmatprep.subr.mxu0 0.0
        %1766 = vmatpush1.msra.mxu0 0.0
        %1767 = vmatprep.subr.mxu0 0.0
        %1768 = vmatpush1.msra.mxu0 0.0
        %1769 = vmatprep.subr.mxu0 0.0
        %1770 = vmatpush1.msra.mxu0 0.0
        %1771 = vmatprep.subr.mxu0 0.0
        %1772 = vmatpush1.msra.mxu0 0.0
        %1773 = vmatprep.subr.mxu0 0.0
        %1774 = vmatpush1.msra.mxu0 0.0
        %1775 = vmatprep.subr.mxu0 0.0
        %1776 = vmatpush1.msra.mxu0 0.0
        %1777 = vmatprep.subr.mxu0 0.0
        %1778 = vmatpush1.msra.mxu0 0.0
        %1779 = vmatprep.subr.mxu0 0.0
        %1780 = vmatpush1.msra.mxu0 0.0
        %1781 = vmatprep.subr.mxu0 0.0
        %1782 = vmatpush1.msra.mxu0 0.0
        %1783 = vmatprep.subr.mxu0 0.0
        %1784 = vmatpush1.msra.mxu0 0.0
        %1785 = vmatprep.subr.mxu0 0.0
        %1786 = vmatpush1.msra.mxu0 0.0
        %1787 = vmatprep.subr.mxu0 0.0
        %1788 = vmatpush1.msra.mxu0 0.0
        %1789 = vmatprep.subr.mxu0 0.0
        %1790 = vmatpush1.msra.mxu0 0.0
        %1791 = vmatprep.mubr.f32.mxu0 0.0
        %1792 = vmatmul.mubr.f32.gmra.mrb[0].mxu0 %v1281
        %v1793 = vpop.f32.mrb[0].mxu0
        %v1794 = vadd.f32 %v1578, %v1793
        %v1795 = vpop.f32.mrb[0].mxu0
        %1796 = vdwg.mxu0
        %1797 = vmatprep.subr.mxu0 0.0
        %1798 = vmatpush1.msra.mxu0 %v933
        %1799 = vmatprep.subr.mxu0 0.0
        %1800 = vmatpush1.msra.mxu0 %v934
        %1801 = vmatprep.subr.mxu0 0.0
        %1802 = vmatpush1.msra.mxu0 %v935
        %1803 = vmatprep.subr.mxu0 0.0
        %1804 = vmatpush1.msra.mxu0 %v936
        %1805 = vmatprep.subr.mxu0 0.0
        %1806 = vmatpush1.msra.mxu0 0.0
        %1807 = vmatprep.subr.mxu0 0.0
        %1808 = vmatpush1.msra.mxu0 0.0
        %1809 = vmatprep.subr.mxu0 0.0
        %1810 = vmatpush1.msra.mxu0 0.0
        %1811 = vmatprep.subr.mxu0 0.0
        %1812 = vmatpush1.msra.mxu0 0.0
        %1813 = vmatprep.subr.mxu0 0.0
        %1814 = vmatpush1.msra.mxu0 0.0
        %1815 = vmatprep.subr.mxu0 0.0
        %1816 = vmatpush1.msra.mxu0 0.0
        %1817 = vmatprep.subr.mxu0 0.0
        %1818 = vmatpush1.msra.mxu0 0.0
        %1819 = vmatprep.subr.mxu0 0.0
        %1820 = vmatpush1.msra.mxu0 0.0
        %1821 = vmatprep.subr.mxu0 0.0
        %1822 = vmatpush1.msra.mxu0 0.0
        %1823 = vmatprep.subr.mxu0 0.0
        %1824 = vmatpush1.msra.mxu0 0.0
        %1825 = vmatprep.subr.mxu0 0.0
        %1826 = vmatpush1.msra.mxu0 0.0
        %1827 = vmatprep.subr.mxu0 0.0
        %1828 = vmatpush1.msra.mxu0 0.0
        %1829 = vmatprep.subr.mxu0 0.0
        %1830 = vmatpush1.msra.mxu0 0.0
        %1831 = vmatprep.subr.mxu0 0.0
        %1832 = vmatpush1.msra.mxu0 0.0
        %1833 = vmatprep.subr.mxu0 0.0
        %1834 = vmatpush1.msra.mxu0 0.0
        %1835 = vmatprep.subr.mxu0 0.0
        %1836 = vmatpush1.msra.mxu0 0.0
        %1837 = vmatprep.subr.mxu0 0.0
        %1838 = vmatpush1.msra.mxu0 0.0
        %1839 = vmatprep.subr.mxu0 0.0
        %1840 = vmatpush1.msra.mxu0 0.0
        %1841 = vmatprep.subr.mxu0 0.0
        %1842 = vmatpush1.msra.mxu0 0.0
        %1843 = vmatprep.subr.mxu0 0.0
        %1844 = vmatpush1.msra.mxu0 0.0
        %1845 = vmatprep.subr.mxu0 0.0
        %1846 = vmatpush1.msra.mxu0 0.0
        %1847 = vmatprep.subr.mxu0 0.0
        %1848 = vmatpush1.msra.mxu0 0.0
        %1849 = vmatprep.subr.mxu0 0.0
        %1850 = vmatpush1.msra.mxu0 0.0
        %1851 = vmatprep.subr.mxu0 0.0
        %1852 = vmatpush1.msra.mxu0 0.0
        %1853 = vmatprep.subr.mxu0 0.0
        %1854 = vmatpush1.msra.mxu0 0.0
        %1855 = vmatprep.subr.mxu0 0.0
        %1856 = vmatpush1.msra.mxu0 0.0
        %1857 = vmatprep.subr.mxu0 0.0
        %1858 = vmatpush1.msra.mxu0 0.0
        %1859 = vmatprep.subr.mxu0 0.0
        %1860 = vmatpush1.msra.mxu0 0.0
        %1861 = vmatprep.mubr.f32.mxu0 0.0
        %1862 = vmatmul.mubr.f32.gmra.mrb[0].mxu0 %v1281
        %v1863 = vpop.f32.mrb[0].mxu0
        %v1864 = vadd.f32 %v1582, %v1863
        %v1865 = vpop.f32.mrb[0].mxu0
        %1866 = vdwg.mxu0
        %v1868 = vsel %vm834, %v1043, 0
        %v1871 = vsel %vm834, %v1350, 0
        %1873 = vmatprep.subr.mxu0 0.0
        %1874 = vmatpush1.xpose.msra.mxu0 %v1871
        %1875 = vmatprep.subr.mxu0 0.0
        %1876 = vmatpush1.xpose.msra.mxu0 0.0
        %1877 = vmatprep.subr.mxu0 0.0
        %1878 = vmatpush1.xpose.msra.mxu0 0.0
        %1879 = vmatprep.subr.mxu0 0.0
        %1880 = vmatpush1.xpose.msra.mxu0 0.0
        %1881 = vmatprep.subr.mxu0 0.0
        %1882 = vmatpush1.xpose.msra.mxu0 0.0
        %1883 = vmatprep.subr.mxu0 0.0
        %1884 = vmatpush1.xpose.msra.mxu0 0.0
        %1885 = vmatprep.subr.mxu0 0.0
        %1886 = vmatpush1.xpose.msra.mxu0 0.0
        %1887 = vmatprep.subr.mxu0 0.0
        %1888 = vmatpush1.xpose.msra.mxu0 0.0
        %1889 = vmatprep.subr.mxu0 0.0
        %1890 = vmatpush1.xpose.msra.mxu0 0.0
        %1891 = vmatprep.subr.mxu0 0.0
        %1892 = vmatpush1.xpose.msra.mxu0 0.0
        %1893 = vmatprep.subr.mxu0 0.0
        %1894 = vmatpush1.xpose.msra.mxu0 0.0
        %1895 = vmatprep.subr.mxu0 0.0
        %1896 = vmatpush1.xpose.msra.mxu0 0.0
        %1897 = vmatprep.subr.mxu0 0.0
        %1898 = vmatpush1.xpose.msra.mxu0 0.0
        %1899 = vmatprep.subr.mxu0 0.0
        %1900 = vmatpush1.xpose.msra.mxu0 0.0
        %1901 = vmatprep.subr.mxu0 0.0
        %1902 = vmatpush1.xpose.msra.mxu0 0.0
        %1903 = vmatprep.subr.mxu0 0.0
        %1904 = vmatpush1.xpose.msra.mxu0 0.0
        %1905 = vmatprep.subr.mxu0 0.0
        %1906 = vmatpush1.xpose.msra.mxu0 0.0
        %1907 = vmatprep.subr.mxu0 0.0
        %1908 = vmatpush1.xpose.msra.mxu0 0.0
        %1909 = vmatprep.subr.mxu0 0.0
        %1910 = vmatpush1.xpose.msra.mxu0 0.0
        %1911 = vmatprep.subr.mxu0 0.0
        %1912 = vmatpush1.xpose.msra.mxu0 0.0
        %1913 = vmatprep.subr.mxu0 0.0
        %1914 = vmatpush1.xpose.msra.mxu0 0.0
        %1915 = vmatprep.subr.mxu0 0.0
        %1916 = vmatpush1.xpose.msra.mxu0 0.0
        %1917 = vmatprep.subr.mxu0 0.0
        %1918 = vmatpush1.xpose.msra.mxu0 0.0
        %1919 = vmatprep.subr.mxu0 0.0
        %1920 = vmatpush1.xpose.msra.mxu0 0.0
        %1921 = vmatprep.subr.mxu0 0.0
        %1922 = vmatpush1.xpose.msra.mxu0 0.0
        %1923 = vmatprep.subr.mxu0 0.0
        %1924 = vmatpush1.xpose.msra.mxu0 0.0
        %1925 = vmatprep.subr.mxu0 0.0
        %1926 = vmatpush1.xpose.msra.mxu0 0.0
        %1927 = vmatprep.subr.mxu0 0.0
        %1928 = vmatpush1.xpose.msra.mxu0 0.0
        %1929 = vmatprep.subr.mxu0 0.0
        %1930 = vmatpush1.xpose.msra.mxu0 0.0
        %1931 = vmatprep.subr.mxu0 0.0
        %1932 = vmatpush1.xpose.msra.mxu0 0.0
        %1933 = vmatprep.subr.mxu0 0.0
        %1934 = vmatpush1.xpose.msra.mxu0 0.0
        %1935 = vmatprep.subr.mxu0 0.0
        %1936 = vmatpush1.xpose.msra.mxu0 0.0
        %1937 = vmatprep.mubr.f32.mxu0 0.0
        %1938 = vmatmul.mubr.f32.gmra.mrb[0].mxu0 %v1868
        %v1939 = vpop.f32.mrb[0].mxu0
        %v1940 = vadd.f32 0.0, %v1939
        %v1941 = vpop.f32.mrb[0].mxu0
        %1942 = vdwg.mxu0
        %v1944 = vsel %vm834, %v1113, 0
        %v1947 = vsel %vm834, %v1420, 0
        %1949 = vmatprep.subr.mxu0 0.0
        %1950 = vmatpush1.xpose.msra.mxu0 %v1947
        %1951 = vmatprep.subr.mxu0 0.0
        %1952 = vmatpush1.xpose.msra.mxu0 0.0
        %1953 = vmatprep.subr.mxu0 0.0
        %1954 = vmatpush1.xpose.msra.mxu0 0.0
        %1955 = vmatprep.subr.mxu0 0.0
        %1956 = vmatpush1.xpose.msra.mxu0 0.0
        %1957 = vmatprep.subr.mxu0 0.0
        %1958 = vmatpush1.xpose.msra.mxu0 0.0
        %1959 = vmatprep.subr.mxu0 0.0
        %1960 = vmatpush1.xpose.msra.mxu0 0.0
        %1961 = vmatprep.subr.mxu0 0.0
        %1962 = vmatpush1.xpose.msra.mxu0 0.0
        %1963 = vmatprep.subr.mxu0 0.0
        %1964 = vmatpush1.xpose.msra.mxu0 0.0
        %1965 = vmatprep.subr.mxu0 0.0
        %1966 = vmatpush1.xpose.msra.mxu0 0.0
        %1967 = vmatprep.subr.mxu0 0.0
        %1968 = vmatpush1.xpose.msra.mxu0 0.0
        %1969 = vmatprep.subr.mxu0 0.0
        %1970 = vmatpush1.xpose.msra.mxu0 0.0
        %1971 = vmatprep.subr.mxu0 0.0
        %1972 = vmatpush1.xpose.msra.mxu0 0.0
        %1973 = vmatprep.subr.mxu0 0.0
        %1974 = vmatpush1.xpose.msra.mxu0 0.0
        %1975 = vmatprep.subr.mxu0 0.0
        %1976 = vmatpush1.xpose.msra.mxu0 0.0
        %1977 = vmatprep.subr.mxu0 0.0
        %1978 = vmatpush1.xpose.msra.mxu0 0.0
        %1979 = vmatprep.subr.mxu0 0.0
        %1980 = vmatpush1.xpose.msra.mxu0 0.0
        %1981 = vmatprep.subr.mxu0 0.0
        %1982 = vmatpush1.xpose.msra.mxu0 0.0
        %1983 = vmatprep.subr.mxu0 0.0
        %1984 = vmatpush1.xpose.msra.mxu0 0.0
        %1985 = vmatprep.subr.mxu0 0.0
        %1986 = vmatpush1.xpose.msra.mxu0 0.0
        %1987 = vmatprep.subr.mxu0 0.0
        %1988 = vmatpush1.xpose.msra.mxu0 0.0
        %1989 = vmatprep.subr.mxu0 0.0
        %1990 = vmatpush1.xpose.msra.mxu0 0.0
        %1991 = vmatprep.subr.mxu0 0.0
        %1992 = vmatpush1.xpose.msra.mxu0 0.0
        %1993 = vmatprep.subr.mxu0 0.0
        %1994 = vmatpush1.xpose.msra.mxu0 0.0
        %1995 = vmatprep.subr.mxu0 0.0
        %1996 = vmatpush1.xpose.msra.mxu0 0.0
        %1997 = vmatprep.subr.mxu0 0.0
        %1998 = vmatpush1.xpose.msra.mxu0 0.0
        %1999 = vmatprep.subr.mxu0 0.0
        %2000 = vmatpush1.xpose.msra.mxu0 0.0
        %2001 = vmatprep.subr.mxu0 0.0
        %2002 = vmatpush1.xpose.msra.mxu0 0.0
        %2003 = vmatprep.subr.mxu0 0.0
        %2004 = vmatpush1.xpose.msra.mxu0 0.0
        %2005 = vmatprep.subr.mxu0 0.0
        %2006 = vmatpush1.xpose.msra.mxu0 0.0
        %2007 = vmatprep.subr.mxu0 0.0
        %2008 = vmatpush1.xpose.msra.mxu0 0.0
        %2009 = vmatprep.subr.mxu0 0.0
        %2010 = vmatpush1.xpose.msra.mxu0 0.0
        %2011 = vmatprep.subr.mxu0 0.0
        %2012 = vmatpush1.xpose.msra.mxu0 0.0
        %2013 = vmatprep.mubr.f32.mxu0 0.0
        %2014 = vmatmul.mubr.f32.gmra.mrb[0].mxu0 %v1944
        %v2015 = vpop.f32.mrb[0].mxu0
        %v2016 = vadd.f32 0.0, %v2015
        %v2017 = vpop.f32.mrb[0].mxu0
        %2018 = vdwg.mxu0
        %v2020 = vsel %vm834, %v1183, 0
        %v2023 = vsel %vm834, %v1490, 0
        %2025 = vmatprep.subr.mxu0 0.0
        %2026 = vmatpush1.xpose.msra.mxu0 %v2023
        %2027 = vmatprep.subr.mxu0 0.0
        %2028 = vmatpush1.xpose.msra.mxu0 0.0
        %2029 = vmatprep.subr.mxu0 0.0
        %2030 = vmatpush1.xpose.msra.mxu0 0.0
        %2031 = vmatprep.subr.mxu0 0.0
        %2032 = vmatpush1.xpose.msra.mxu0 0.0
        %2033 = vmatprep.subr.mxu0 0.0
        %2034 = vmatpush1.xpose.msra.mxu0 0.0
        %2035 = vmatprep.subr.mxu0 0.0
        %2036 = vmatpush1.xpose.msra.mxu0 0.0
        %2037 = vmatprep.subr.mxu0 0.0
        %2038 = vmatpush1.xpose.msra.mxu0 0.0
        %2039 = vmatprep.subr.mxu0 0.0
        %2040 = vmatpush1.xpose.msra.mxu0 0.0
        %2041 = vmatprep.subr.mxu0 0.0
        %2042 = vmatpush1.xpose.msra.mxu0 0.0
        %2043 = vmatprep.subr.mxu0 0.0
        %2044 = vmatpush1.xpose.msra.mxu0 0.0
        %2045 = vmatprep.subr.mxu0 0.0
        %2046 = vmatpush1.xpose.msra.mxu0 0.0
        %2047 = vmatprep.subr.mxu0 0.0
        %2048 = vmatpush1.xpose.msra.mxu0 0.0
        %2049 = vmatprep.subr.mxu0 0.0
        %2050 = vmatpush1.xpose.msra.mxu0 0.0
        %2051 = vmatprep.subr.mxu0 0.0
        %2052 = vmatpush1.xpose.msra.mxu0 0.0
        %2053 = vmatprep.subr.mxu0 0.0
        %2054 = vmatpush1.xpose.msra.mxu0 0.0
        %2055 = vmatprep.subr.mxu0 0.0
        %2056 = vmatpush1.xpose.msra.mxu0 0.0
        %2057 = vmatprep.subr.mxu0 0.0
        %2058 = vmatpush1.xpose.msra.mxu0 0.0
        %2059 = vmatprep.subr.mxu0 0.0
        %2060 = vmatpush1.xpose.msra.mxu0 0.0
        %2061 = vmatprep.subr.mxu0 0.0
        %2062 = vmatpush1.xpose.msra.mxu0 0.0
        %2063 = vmatprep.subr.mxu0 0.0
        %2064 = vmatpush1.xpose.msra.mxu0 0.0
        %2065 = vmatprep.subr.mxu0 0.0
        %2066 = vmatpush1.xpose.msra.mxu0 0.0
        %2067 = vmatprep.subr.mxu0 0.0
        %2068 = vmatpush1.xpose.msra.mxu0 0.0
        %2069 = vmatprep.subr.mxu0 0.0
        %2070 = vmatpush1.xpose.msra.mxu0 0.0
        %2071 = vmatprep.subr.mxu0 0.0
        %2072 = vmatpush1.xpose.msra.mxu0 0.0
        %2073 = vmatprep.subr.mxu0 0.0
        %2074 = vmatpush1.xpose.msra.mxu0 0.0
        %2075 = vmatprep.subr.mxu0 0.0
        %2076 = vmatpush1.xpose.msra.mxu0 0.0
        %2077 = vmatprep.subr.mxu0 0.0
        %2078 = vmatpush1.xpose.msra.mxu0 0.0
        %2079 = vmatprep.subr.mxu0 0.0
        %2080 = vmatpush1.xpose.msra.mxu0 0.0
        %2081 = vmatprep.subr.mxu0 0.0
        %2082 = vmatpush1.xpose.msra.mxu0 0.0
        %2083 = vmatprep.subr.mxu0 0.0
        %2084 = vmatpush1.xpose.msra.mxu0 0.0
        %2085 = vmatprep.subr.mxu0 0.0
        %2086 = vmatpush1.xpose.msra.mxu0 0.0
        %2087 = vmatprep.subr.mxu0 0.0
        %2088 = vmatpush1.xpose.msra.mxu0 0.0
        %2089 = vmatprep.mubr.f32.mxu0 0.0
        %2090 = vmatmul.mubr.f32.gmra.mrb[0].mxu0 %v2020
        %v2091 = vpop.f32.mrb[0].mxu0
        %v2092 = vadd.f32 0.0, %v2091
        %v2093 = vpop.f32.mrb[0].mxu0
        %2094 = vdwg.mxu0
        %v2096 = vsel %vm834, %v1253, 0
        %v2099 = vsel %vm834, %v1560, 0
        %2101 = vmatprep.subr.mxu0 0.0
        %2102 = vmatpush1.xpose.msra.mxu0 %v2099
        %2103 = vmatprep.subr.mxu0 0.0
        %2104 = vmatpush1.xpose.msra.mxu0 0.0
        %2105 = vmatprep.subr.mxu0 0.0
        %2106 = vmatpush1.xpose.msra.mxu0 0.0
        %2107 = vmatprep.subr.mxu0 0.0
        %2108 = vmatpush1.xpose.msra.mxu0 0.0
        %2109 = vmatprep.subr.mxu0 0.0
        %2110 = vmatpush1.xpose.msra.mxu0 0.0
        %2111 = vmatprep.subr.mxu0 0.0
        %2112 = vmatpush1.xpose.msra.mxu0 0.0
        %2113 = vmatprep.subr.mxu0 0.0
        %2114 = vmatpush1.xpose.msra.mxu0 0.0
        %2115 = vmatprep.subr.mxu0 0.0
        %2116 = vmatpush1.xpose.msra.mxu0 0.0
        %2117 = vmatprep.subr.mxu0 0.0
        %2118 = vmatpush1.xpose.msra.mxu0 0.0
        %2119 = vmatprep.subr.mxu0 0.0
        %2120 = vmatpush1.xpose.msra.mxu0 0.0
        %2121 = vmatprep.subr.mxu0 0.0
        %2122 = vmatpush1.xpose.msra.mxu0 0.0
        %2123 = vmatprep.subr.mxu0 0.0
        %2124 = vmatpush1.xpose.msra.mxu0 0.0
        %2125 = vmatprep.subr.mxu0 0.0
        %2126 = vmatpush1.xpose.msra.mxu0 0.0
        %2127 = vmatprep.subr.mxu0 0.0
        %2128 = vmatpush1.xpose.msra.mxu0 0.0
        %2129 = vmatprep.subr.mxu0 0.0
        %2130 = vmatpush1.xpose.msra.mxu0 0.0
        %2131 = vmatprep.subr.mxu0 0.0
        %2132 = vmatpush1.xpose.msra.mxu0 0.0
        %2133 = vmatprep.subr.mxu0 0.0
        %2134 = vmatpush1.xpose.msra.mxu0 0.0
        %2135 = vmatprep.subr.mxu0 0.0
        %2136 = vmatpush1.xpose.msra.mxu0 0.0
        %2137 = vmatprep.subr.mxu0 0.0
        %2138 = vmatpush1.xpose.msra.mxu0 0.0
        %2139 = vmatprep.subr.mxu0 0.0
        %2140 = vmatpush1.xpose.msra.mxu0 0.0
        %2141 = vmatprep.subr.mxu0 0.0
        %2142 = vmatpush1.xpose.msra.mxu0 0.0
        %2143 = vmatprep.subr.mxu0 0.0
        %2144 = vmatpush1.xpose.msra.mxu0 0.0
        %2145 = vmatprep.subr.mxu0 0.0
        %2146 = vmatpush1.xpose.msra.mxu0 0.0
        %2147 = vmatprep.subr.mxu0 0.0
        %2148 = vmatpush1.xpose.msra.mxu0 0.0
        %2149 = vmatprep.subr.mxu0 0.0
        %2150 = vmatpush1.xpose.msra.mxu0 0.0
        %2151 = vmatprep.subr.mxu0 0.0
        %2152 = vmatpush1.xpose.msra.mxu0 0.0
        %2153 = vmatprep.subr.mxu0 0.0
        %2154 = vmatpush1.xpose.msra.mxu0 0.0
        %2155 = vmatprep.subr.mxu0 0.0
        %2156 = vmatpush1.xpose.msra.mxu0 0.0
        %2157 = vmatprep.subr.mxu0 0.0
        %2158 = vmatpush1.xpose.msra.mxu0 0.0
        %2159 = vmatprep.subr.mxu0 0.0
        %2160 = vmatpush1.xpose.msra.mxu0 0.0
        %2161 = vmatprep.subr.mxu0 0.0
        %2162 = vmatpush1.xpose.msra.mxu0 0.0
        %2163 = vmatprep.subr.mxu0 0.0
        %2164 = vmatpush1.xpose.msra.mxu0 0.0
        %2165 = vmatprep.mubr.f32.mxu0 0.0
        %2166 = vmatmul.mubr.f32.gmra.mrb[0].mxu0 %v2096
        %v2167 = vpop.f32.mrb[0].mxu0
        %v2168 = vadd.f32 0.0, %v2167
        %v2169 = vpop.f32.mrb[0].mxu0
        %2170 = vdwg.mxu0
        %v2171 = vmul.f32 %v1940, 0.35355338
        %v2172 = vmul.f32 %v2016, 0.35355338
        %v2173 = vmul.f32 %v2092, 0.35355338
        %v2174 = vmul.f32 %v2168, 0.35355338
        %v2175 = vsel %vm830, 1, 0
        %vm2176 = vcmp.eq.s32.totalorder %v2175, 1
        %v2177 = vsel %vm2176, -1e+32, %v2171
        %v2178 = vsel %vm2176, -1e+32, %v2172
        %v2179 = vsel %vm2176, -1e+32, %v2173
        %v2180 = vsel %vm2176, -1e+32, %v2174
        %v2181 = vsel %vm834, %v2177, -inf
        %2182 = vmax.xlane.f32.xlu0 %v2181
        %v2183 = vpop.xlane.xlu0 %2182
        %v2184 = vsel %vm834, %v2178, -inf
        %2185 = vmax.xlane.f32.xlu0 %v2184
        %v2186 = vpop.xlane.xlu0 %2185
        %v2187 = vsel %vm834, %v2179, -inf
        %2188 = vmax.xlane.f32.xlu0 %v2187
        %v2189 = vpop.xlane.xlu0 %2188
        %v2190 = vsel %vm834, %v2180, -inf
        %2191 = vmax.xlane.f32.xlu0 %v2190
        %v2192 = vpop.xlane.xlu0 %2191
        %v2193 = vsub.f32 %v2177, %v2183
        %v2194 = vsub.f32 %v2178, %v2186
        %v2195 = vsub.f32 %v2179, %v2189
        %v2196 = vsub.f32 %v2180, %v2192
        %v2197 = vmul.f32 %v2193, 1.442695
        %v2198 = vpow.pop %v2197
        %v2199 = vmul.f32 %v2194, 1.442695
        %v2200 = vpow.pop %v2199
        %v2201 = vmul.f32 %v2195, 1.442695
        %v2202 = vpow.pop %v2201
        %v2203 = vmul.f32 %v2196, 1.442695
        %v2204 = vpow.pop %v2203
        %v2205 = vsel %vm834, %v2198, 0.0
        %2206 = vadd.xlane.f32.xlu0 %v2205
        %v2207 = vpop.xlane.xlu0 %2206
        %v2208 = vsel %vm834, %v2200, 0.0
        %2209 = vadd.xlane.f32.xlu0 %v2208
        %v2210 = vpop.xlane.xlu0 %2209
        %v2211 = vsel %vm834, %v2202, 0.0
        %2212 = vadd.xlane.f32.xlu0 %v2211
        %v2213 = vpop.xlane.xlu0 %2212
        %v2214 = vsel %vm834, %v2204, 0.0
        %2215 = vadd.xlane.f32.xlu0 %v2214
        %v2216 = vpop.xlane.xlu0 %2215
        %v2217 = vrcp.pop %v2207
        %v2218 = vmul.f32 %v2198, %v2217
        %v2219 = vrcp.pop %v2210
        %v2220 = vmul.f32 %v2200, %v2219
        %v2221 = vrcp.pop %v2213
        %v2222 = vmul.f32 %v2202, %v2221
        %v2223 = vrcp.pop %v2216
        %v2224 = vmul.f32 %v2204, %v2223
        %v2225 = vsel %vm831, 1, 0
        %vm2226 = vcmp.eq.s32.totalorder %v2225, 1
        %v2227 = vsel %vm2226, 0.0, %v2218
        %v2228 = vsel %vm2226, 0.0, %v2220
        %v2229 = vsel %vm2226, 0.0, %v2222
        %v2230 = vsel %vm2226, 0.0, %v2224
        %v2231 = vstv %s882
        %v2232 = vmul.f32 %v2231, %v2227
        %v2233 = vmul.f32 %v2231, %v2228
        %v2234 = vmul.f32 %v2231, %v2229
        %v2235 = vmul.f32 %v2231, %v2230
        %v2236 = vadd.f32 %v2232, %v888
        %v2237 = vadd.f32 %v2233, %v888
        %v2238 = vadd.f32 %v2234, %v888
        %v2239 = vadd.f32 %v2235, %v888
        %v2241 = vsel %vm834, %v2236, 0
        %2243 = vmatprep.subr.mxu0 0.0
        %2244 = vmatpush1.msra.mxu0 %v1654
        %2245 = vmatprep.subr.mxu0 0.0
        %2246 = vmatpush1.msra.mxu0 0.0
        %2247 = vmatprep.subr.mxu0 0.0
        %2248 = vmatpush1.msra.mxu0 0.0
        %2249 = vmatprep.subr.mxu0 0.0
        %2250 = vmatpush1.msra.mxu0 0.0
        %2251 = vmatprep.subr.mxu0 0.0
        %2252 = vmatpush1.msra.mxu0 0.0
        %2253 = vmatprep.subr.mxu0 0.0
        %2254 = vmatpush1.msra.mxu0 0.0
        %2255 = vmatprep.subr.mxu0 0.0
        %2256 = vmatpush1.msra.mxu0 0.0
        %2257 = vmatprep.subr.mxu0 0.0
        %2258 = vmatpush1.msra.mxu0 0.0
        %2259 = vmatprep.subr.mxu0 0.0
        %2260 = vmatpush1.msra.mxu0 0.0
        %2261 = vmatprep.subr.mxu0 0.0
        %2262 = vmatpush1.msra.mxu0 0.0
        %2263 = vmatprep.subr.mxu0 0.0
        %2264 = vmatpush1.msra.mxu0 0.0
        %2265 = vmatprep.subr.mxu0 0.0
        %2266 = vmatpush1.msra.mxu0 0.0
        %2267 = vmatprep.subr.mxu0 0.0
        %2268 = vmatpush1.msra.mxu0 0.0
        %2269 = vmatprep.subr.mxu0 0.0
        %2270 = vmatpush1.msra.mxu0 0.0
        %2271 = vmatprep.subr.mxu0 0.0
        %2272 = vmatpush1.msra.mxu0 0.0
        %2273 = vmatprep.subr.mxu0 0.0
        %2274 = vmatpush1.msra.mxu0 0.0
        %2275 = vmatprep.subr.mxu0 0.0
        %2276 = vmatpush1.msra.mxu0 0.0
        %2277 = vmatprep.subr.mxu0 0.0
        %2278 = vmatpush1.msra.mxu0 0.0
        %2279 = vmatprep.subr.mxu0 0.0
        %2280 = vmatpush1.msra.mxu0 0.0
        %2281 = vmatprep.subr.mxu0 0.0
        %2282 = vmatpush1.msra.mxu0 0.0
        %2283 = vmatprep.subr.mxu0 0.0
        %2284 = vmatpush1.msra.mxu0 0.0
        %2285 = vmatprep.subr.mxu0 0.0
        %2286 = vmatpush1.msra.mxu0 0.0
        %2287 = vmatprep.subr.mxu0 0.0
        %2288 = vmatpush1.msra.mxu0 0.0
        %2289 = vmatprep.subr.mxu0 0.0
        %2290 = vmatpush1.msra.mxu0 0.0
        %2291 = vmatprep.subr.mxu0 0.0
        %2292 = vmatpush1.msra.mxu0 0.0
        %2293 = vmatprep.subr.mxu0 0.0
        %2294 = vmatpush1.msra.mxu0 0.0
        %2295 = vmatprep.subr.mxu0 0.0
        %2296 = vmatpush1.msra.mxu0 0.0
        %2297 = vmatprep.subr.mxu0 0.0
        %2298 = vmatpush1.msra.mxu0 0.0
        %2299 = vmatprep.subr.mxu0 0.0
        %2300 = vmatpush1.msra.mxu0 0.0
        %2301 = vmatprep.subr.mxu0 0.0
        %2302 = vmatpush1.msra.mxu0 0.0
        %2303 = vmatprep.subr.mxu0 0.0
        %2304 = vmatpush1.msra.mxu0 0.0
        %2305 = vmatprep.subr.mxu0 0.0
        %2306 = vmatpush1.msra.mxu0 0.0
        %2307 = vmatprep.mubr.f32.mxu0 0.0
        %2308 = vmatmul.mubr.f32.gmra.mrb[0].mxu0 %v2241
        %v2309 = vpop.f32.mrb[0].mxu0
        %v2310 = vadd.f32 0.0, %v2309
        %v2311 = vpop.f32.mrb[0].mxu0
        %2312 = vdwg.mxu0
        %v2314 = vsel %vm834, %v2237, 0
        %2316 = vmatprep.subr.mxu0 0.0
        %2317 = vmatpush1.msra.mxu0 %v1724
        %2318 = vmatprep.subr.mxu0 0.0
        %2319 = vmatpush1.msra.mxu0 0.0
        %2320 = vmatprep.subr.mxu0 0.0
        %2321 = vmatpush1.msra.mxu0 0.0
        %2322 = vmatprep.subr.mxu0 0.0
        %2323 = vmatpush1.msra.mxu0 0.0
        %2324 = vmatprep.subr.mxu0 0.0
        %2325 = vmatpush1.msra.mxu0 0.0
        %2326 = vmatprep.subr.mxu0 0.0
        %2327 = vmatpush1.msra.mxu0 0.0
        %2328 = vmatprep.subr.mxu0 0.0
        %2329 = vmatpush1.msra.mxu0 0.0
        %2330 = vmatprep.subr.mxu0 0.0
        %2331 = vmatpush1.msra.mxu0 0.0
        %2332 = vmatprep.subr.mxu0 0.0
        %2333 = vmatpush1.msra.mxu0 0.0
        %2334 = vmatprep.subr.mxu0 0.0
        %2335 = vmatpush1.msra.mxu0 0.0
        %2336 = vmatprep.subr.mxu0 0.0
        %2337 = vmatpush1.msra.mxu0 0.0
        %2338 = vmatprep.subr.mxu0 0.0
        %2339 = vmatpush1.msra.mxu0 0.0
        %2340 = vmatprep.subr.mxu0 0.0
        %2341 = vmatpush1.msra.mxu0 0.0
        %2342 = vmatprep.subr.mxu0 0.0
        %2343 = vmatpush1.msra.mxu0 0.0
        %2344 = vmatprep.subr.mxu0 0.0
        %2345 = vmatpush1.msra.mxu0 0.0
        %2346 = vmatprep.subr.mxu0 0.0
        %2347 = vmatpush1.msra.mxu0 0.0
        %2348 = vmatprep.subr.mxu0 0.0
        %2349 = vmatpush1.msra.mxu0 0.0
        %2350 = vmatprep.subr.mxu0 0.0
        %2351 = vmatpush1.msra.mxu0 0.0
        %2352 = vmatprep.subr.mxu0 0.0
        %2353 = vmatpush1.msra.mxu0 0.0
        %2354 = vmatprep.subr.mxu0 0.0
        %2355 = vmatpush1.msra.mxu0 0.0
        %2356 = vmatprep.subr.mxu0 0.0
        %2357 = vmatpush1.msra.mxu0 0.0
        %2358 = vmatprep.subr.mxu0 0.0
        %2359 = vmatpush1.msra.mxu0 0.0
        %2360 = vmatprep.subr.mxu0 0.0
        %2361 = vmatpush1.msra.mxu0 0.0
        %2362 = vmatprep.subr.mxu0 0.0
        %2363 = vmatpush1.msra.mxu0 0.0
        %2364 = vmatprep.subr.mxu0 0.0
        %2365 = vmatpush1.msra.mxu0 0.0
        %2366 = vmatprep.subr.mxu0 0.0
        %2367 = vmatpush1.msra.mxu0 0.0
        %2368 = vmatprep.subr.mxu0 0.0
        %2369 = vmatpush1.msra.mxu0 0.0
        %2370 = vmatprep.subr.mxu0 0.0
        %2371 = vmatpush1.msra.mxu0 0.0
        %2372 = vmatprep.subr.mxu0 0.0
        %2373 = vmatpush1.msra.mxu0 0.0
        %2374 = vmatprep.subr.mxu0 0.0
        %2375 = vmatpush1.msra.mxu0 0.0
        %2376 = vmatprep.subr.mxu0 0.0
        %2377 = vmatpush1.msra.mxu0 0.0
        %2378 = vmatprep.subr.mxu0 0.0
        %2379 = vmatpush1.msra.mxu0 0.0
        %2380 = vmatprep.mubr.f32.mxu0 0.0
        %2381 = vmatmul.mubr.f32.gmra.mrb[0].mxu0 %v2314
        %v2382 = vpop.f32.mrb[0].mxu0
        %v2383 = vadd.f32 0.0, %v2382
        %v2384 = vpop.f32.mrb[0].mxu0
        %2385 = vdwg.mxu0
        %v2387 = vsel %vm834, %v2238, 0
        %2389 = vmatprep.subr.mxu0 0.0
        %2390 = vmatpush1.msra.mxu0 %v1794
        %2391 = vmatprep.subr.mxu0 0.0
        %2392 = vmatpush1.msra.mxu0 0.0
        %2393 = vmatprep.subr.mxu0 0.0
        %2394 = vmatpush1.msra.mxu0 0.0
        %2395 = vmatprep.subr.mxu0 0.0
        %2396 = vmatpush1.msra.mxu0 0.0
        %2397 = vmatprep.subr.mxu0 0.0
        %2398 = vmatpush1.msra.mxu0 0.0
        %2399 = vmatprep.subr.mxu0 0.0
        %2400 = vmatpush1.msra.mxu0 0.0
        %2401 = vmatprep.subr.mxu0 0.0
        %2402 = vmatpush1.msra.mxu0 0.0
        %2403 = vmatprep.subr.mxu0 0.0
        %2404 = vmatpush1.msra.mxu0 0.0
        %2405 = vmatprep.subr.mxu0 0.0
        %2406 = vmatpush1.msra.mxu0 0.0
        %2407 = vmatprep.subr.mxu0 0.0
        %2408 = vmatpush1.msra.mxu0 0.0
        %2409 = vmatprep.subr.mxu0 0.0
        %2410 = vmatpush1.msra.mxu0 0.0
        %2411 = vmatprep.subr.mxu0 0.0
        %2412 = vmatpush1.msra.mxu0 0.0
        %2413 = vmatprep.subr.mxu0 0.0
        %2414 = vmatpush1.msra.mxu0 0.0
        %2415 = vmatprep.subr.mxu0 0.0
        %2416 = vmatpush1.msra.mxu0 0.0
        %2417 = vmatprep.subr.mxu0 0.0
        %2418 = vmatpush1.msra.mxu0 0.0
        %2419 = vmatprep.subr.mxu0 0.0
        %2420 = vmatpush1.msra.mxu0 0.0
        %2421 = vmatprep.subr.mxu0 0.0
        %2422 = vmatpush1.msra.mxu0 0.0
        %2423 = vmatprep.subr.mxu0 0.0
        %2424 = vmatpush1.msra.mxu0 0.0
        %2425 = vmatprep.subr.mxu0 0.0
        %2426 = vmatpush1.msra.mxu0 0.0
        %2427 = vmatprep.subr.mxu0 0.0
        %2428 = vmatpush1.msra.mxu0 0.0
        %2429 = vmatprep.subr.mxu0 0.0
        %2430 = vmatpush1.msra.mxu0 0.0
        %2431 = vmatprep.subr.mxu0 0.0
        %2432 = vmatpush1.msra.mxu0 0.0
        %2433 = vmatprep.subr.mxu0 0.0
        %2434 = vmatpush1.msra.mxu0 0.0
        %2435 = vmatprep.subr.mxu0 0.0
        %2436 = vmatpush1.msra.mxu0 0.0
        %2437 = vmatprep.subr.mxu0 0.0
        %2438 = vmatpush1.msra.mxu0 0.0
        %2439 = vmatprep.subr.mxu0 0.0
        %2440 = vmatpush1.msra.mxu0 0.0
        %2441 = vmatprep.subr.mxu0 0.0
        %2442 = vmatpush1.msra.mxu0 0.0
        %2443 = vmatprep.subr.mxu0 0.0
        %2444 = vmatpush1.msra.mxu0 0.0
        %2445 = vmatprep.subr.mxu0 0.0
        %2446 = vmatpush1.msra.mxu0 0.0
        %2447 = vmatprep.subr.mxu0 0.0
        %2448 = vmatpush1.msra.mxu0 0.0
        %2449 = vmatprep.subr.mxu0 0.0
        %2450 = vmatpush1.msra.mxu0 0.0
        %2451 = vmatprep.subr.mxu0 0.0
        %2452 = vmatpush1.msra.mxu0 0.0
        %2453 = vmatprep.mubr.f32.mxu0 0.0
        %2454 = vmatmul.mubr.f32.gmra.mrb[0].mxu0 %v2387
        %v2455 = vpop.f32.mrb[0].mxu0
        %v2456 = vadd.f32 0.0, %v2455
        %v2457 = vpop.f32.mrb[0].mxu0
        %2458 = vdwg.mxu0
        %v2460 = vsel %vm834, %v2239, 0
        %2462 = vmatprep.subr.mxu0 0.0
        %2463 = vmatpush1.msra.mxu0 %v1864
        %2464 = vmatprep.subr.mxu0 0.0
        %2465 = vmatpush1.msra.mxu0 0.0
        %2466 = vmatprep.subr.mxu0 0.0
        %2467 = vmatpush1.msra.mxu0 0.0
        %2468 = vmatprep.subr.mxu0 0.0
        %2469 = vmatpush1.msra.mxu0 0.0
        %2470 = vmatprep.subr.mxu0 0.0
        %2471 = vmatpush1.msra.mxu0 0.0
        %2472 = vmatprep.subr.mxu0 0.0
        %2473 = vmatpush1.msra.mxu0 0.0
        %2474 = vmatprep.subr.mxu0 0.0
        %2475 = vmatpush1.msra.mxu0 0.0
        %2476 = vmatprep.subr.mxu0 0.0
        %2477 = vmatpush1.msra.mxu0 0.0
        %2478 = vmatprep.subr.mxu0 0.0
        %2479 = vmatpush1.msra.mxu0 0.0
        %2480 = vmatprep.subr.mxu0 0.0
        %2481 = vmatpush1.msra.mxu0 0.0
        %2482 = vmatprep.subr.mxu0 0.0
        %2483 = vmatpush1.msra.mxu0 0.0
        %2484 = vmatprep.subr.mxu0 0.0
        %2485 = vmatpush1.msra.mxu0 0.0
        %2486 = vmatprep.subr.mxu0 0.0
        %2487 = vmatpush1.msra.mxu0 0.0
        %2488 = vmatprep.subr.mxu0 0.0
        %2489 = vmatpush1.msra.mxu0 0.0
        %2490 = vmatprep.subr.mxu0 0.0
        %2491 = vmatpush1.msra.mxu0 0.0
        %2492 = vmatprep.subr.mxu0 0.0
        %2493 = vmatpush1.msra.mxu0 0.0
        %2494 = vmatprep.subr.mxu0 0.0
        %2495 = vmatpush1.msra.mxu0 0.0
        %2496 = vmatprep.subr.mxu0 0.0
        %2497 = vmatpush1.msra.mxu0 0.0
        %2498 = vmatprep.subr.mxu0 0.0
        %2499 = vmatpush1.msra.mxu0 0.0
        %2500 = vmatprep.subr.mxu0 0.0
        %2501 = vmatpush1.msra.mxu0 0.0
        %2502 = vmatprep.subr.mxu0 0.0
        %2503 = vmatpush1.msra.mxu0 0.0
        %2504 = vmatprep.subr.mxu0 0.0
        %2505 = vmatpush1.msra.mxu0 0.0
        %2506 = vmatprep.subr.mxu0 0.0
        %2507 = vmatpush1.msra.mxu0 0.0
        %2508 = vmatprep.subr.mxu0 0.0
        %2509 = vmatpush1.msra.mxu0 0.0
        %2510 = vmatprep.subr.mxu0 0.0
        %2511 = vmatpush1.msra.mxu0 0.0
        %2512 = vmatprep.subr.mxu0 0.0
        %2513 = vmatpush1.msra.mxu0 0.0
        %2514 = vmatprep.subr.mxu0 0.0
        %2515 = vmatpush1.msra.mxu0 0.0
        %2516 = vmatprep.subr.mxu0 0.0
        %2517 = vmatpush1.msra.mxu0 0.0
        %2518 = vmatprep.subr.mxu0 0.0
        %2519 = vmatpush1.msra.mxu0 0.0
        %2520 = vmatprep.subr.mxu0 0.0
        %2521 = vmatpush1.msra.mxu0 0.0
        %2522 = vmatprep.subr.mxu0 0.0
        %2523 = vmatpush1.msra.mxu0 0.0
        %2524 = vmatprep.subr.mxu0 0.0
        %2525 = vmatpush1.msra.mxu0 0.0
        %2526 = vmatprep.mubr.f32.mxu0 0.0
        %2527 = vmatmul.mubr.f32.gmra.mrb[0].mxu0 %v2460
        %v2528 = vpop.f32.mrb[0].mxu0
        %v2529 = vadd.f32 0.0, %v2528
        %v2530 = vpop.f32.mrb[0].mxu0
        %2531 = vdwg.mxu0
        %2533 = vrot.lane.b32.xlu0 %v2383, 8
        %v2534 = vpop.permute.xlu0 %2533
        %2537 = vrot.lane.b32.xlu0 %v2456, 16
        %v2538 = vpop.permute.xlu0 %2537
        %2541 = vrot.lane.b32.xlu0 %v2529, 24
        %v2542 = vpop.permute.xlu0 %2541
        %v2544 = vsel %vm834, %v2310, %v2534
        %vm2545 = vcmask 130048
        %v2546 = vsel %vm2545, %v2544, %v2538
        %vm2547 = vcmask 195584
        %v2548 = vsel %vm2547, %v2546, %v2542
        %s2549 = scalar_lea.vmem %s11, 128
        %v2550 = vld [vmem:[%s2549] sm:$0xff]
        %v2551 = vld [vmem:[%s2549 + $0x8] sm:$0xff]
        %v2552 = vld [vmem:[%s2549 + $0x10] sm:$0xff]
        %v2553 = vld [vmem:[%s2549 + $0x18] sm:$0xff]
        %v2554 = vld [vmem:[%s2549 + $0x20] sm:$0xff]
        %v2555 = vld [vmem:[%s2549 + $0x28] sm:$0xff]
        %v2556 = vld [vmem:[%s2549 + $0x30] sm:$0xff]
        %v2557 = vld [vmem:[%s2549 + $0x38] sm:$0xff]
        %v2558 = vld [vmem:[%s2549 + $0x40] sm:$0xff]
        %v2559 = vld [vmem:[%s2549 + $0x48] sm:$0xff]
        %v2560 = vld [vmem:[%s2549 + $0x50] sm:$0xff]
        %v2561 = vld [vmem:[%s2549 + $0x58] sm:$0xff]
        %v2562 = vld [vmem:[%s2549 + $0x60] sm:$0xff]
        %v2563 = vld [vmem:[%s2549 + $0x68] sm:$0xff]
        %v2564 = vld [vmem:[%s2549 + $0x70] sm:$0xff]
        %v2565 = vld [vmem:[%s2549 + $0x78] sm:$0xff]
        %s2566 = scalar_lea.vmem %s12, 128
        %v2567 = vld [vmem:[%s2566] sm:$0xff]
        %v2568 = vld [vmem:[%s2566 + $0x8] sm:$0xff]
        %v2569 = vld [vmem:[%s2566 + $0x10] sm:$0xff]
        %v2570 = vld [vmem:[%s2566 + $0x18] sm:$0xff]
        %v2571 = vld [vmem:[%s2566 + $0x20] sm:$0xff]
        %v2572 = vld [vmem:[%s2566 + $0x28] sm:$0xff]
        %v2573 = vld [vmem:[%s2566 + $0x30] sm:$0xff]
        %v2574 = vld [vmem:[%s2566 + $0x38] sm:$0xff]
        %v2575 = vld [vmem:[%s2566 + $0x40] sm:$0xff]
        %v2576 = vld [vmem:[%s2566 + $0x48] sm:$0xff]
        %v2577 = vld [vmem:[%s2566 + $0x50] sm:$0xff]
        %v2578 = vld [vmem:[%s2566 + $0x58] sm:$0xff]
        %v2579 = vld [vmem:[%s2566 + $0x60] sm:$0xff]
        %v2580 = vld [vmem:[%s2566 + $0x68] sm:$0xff]
        %v2581 = vld [vmem:[%s2566 + $0x70] sm:$0xff]
        %v2582 = vld [vmem:[%s2566 + $0x78] sm:$0xff]
        %s2583 = scalar_lea.vmem %s13, 128
        %v2584 = vld [vmem:[%s2583] sm:$0xff]
        %v2585 = vld [vmem:[%s2583 + $0x8] sm:$0xff]
        %v2586 = vld [vmem:[%s2583 + $0x10] sm:$0xff]
        %v2587 = vld [vmem:[%s2583 + $0x18] sm:$0xff]
        %v2588 = vld [vmem:[%s2583 + $0x20] sm:$0xff]
        %v2589 = vld [vmem:[%s2583 + $0x28] sm:$0xff]
        %v2590 = vld [vmem:[%s2583 + $0x30] sm:$0xff]
        %v2591 = vld [vmem:[%s2583 + $0x38] sm:$0xff]
        %v2592 = vld [vmem:[%s2583 + $0x40] sm:$0xff]
        %v2593 = vld [vmem:[%s2583 + $0x48] sm:$0xff]
        %v2594 = vld [vmem:[%s2583 + $0x50] sm:$0xff]
        %v2595 = vld [vmem:[%s2583 + $0x58] sm:$0xff]
        %v2596 = vld [vmem:[%s2583 + $0x60] sm:$0xff]
        %v2597 = vld [vmem:[%s2583 + $0x68] sm:$0xff]
        %v2598 = vld [vmem:[%s2583 + $0x70] sm:$0xff]
        %v2599 = vld [vmem:[%s2583 + $0x78] sm:$0xff]
        %s2600 = scalar_lea.vmem %s14, 4
        %v2601 = vld [vmem:[%s2600] sm:$0x1]
        %v2602 = vld [vmem:[%s2600 + $0x1] sm:$0x1]
        %v2603 = vld [vmem:[%s2600 + $0x2] sm:$0x1]
        %v2604 = vld [vmem:[%s2600 + $0x3] sm:$0x1]
        %s2605 = scalar_lea.vmem %s15, 4
        %v2606 = vld [vmem:[%s2605] sm:$0x1]
        %v2607 = vld [vmem:[%s2605 + $0x1] sm:$0x1]
        %v2608 = vld [vmem:[%s2605 + $0x2] sm:$0x1]
        %v2609 = vld [vmem:[%s2605 + $0x3] sm:$0x1]
        %s2610 = scalar_lea.vmem %s16, 4
        %v2611 = vld [vmem:[%s2610] sm:$0x1]
        %v2612 = vld [vmem:[%s2610 + $0x1] sm:$0x1]
        %v2613 = vld [vmem:[%s2610 + $0x2] sm:$0x1]
        %v2614 = vld [vmem:[%s2610 + $0x3] sm:$0x1]
        %v2619 = vlaneseq
        %v2620 = vshrl.u32 %v2619, 7
        %v2621 = vsub.s32 0, %v2620
        %v2622 = vrot.slane %v2601, %v2621
        %v2623 = vlaneseq
        %v2624 = vshrl.u32 %v2623, 7
        %v2625 = vsub.s32 0, %v2624
        %v2626 = vrot.slane %v2602, %v2625
        %v2627 = vlaneseq
        %v2628 = vshrl.u32 %v2627, 7
        %v2629 = vsub.s32 0, %v2628
        %v2630 = vrot.slane %v2603, %v2629
        %v2631 = vlaneseq
        %v2632 = vshrl.u32 %v2631, 7
        %v2633 = vsub.s32 0, %v2632
        %v2634 = vrot.slane %v2604, %v2633
        %2639 = vmatprep.subr.mxu0 0.0
        %2640 = vmatpush1.msra.mxu0 %v2550
        %2641 = vmatprep.subr.mxu0 0.0
        %2642 = vmatpush1.msra.mxu0 %v2551
        %2643 = vmatprep.subr.mxu0 0.0
        %2644 = vmatpush1.msra.mxu0 %v2552
        %2645 = vmatprep.subr.mxu0 0.0
        %2646 = vmatpush1.msra.mxu0 %v2553
        %2647 = vmatprep.subr.mxu0 0.0
        %2648 = vmatpush1.msra.mxu0 0.0
        %2649 = vmatprep.subr.mxu0 0.0
        %2650 = vmatpush1.msra.mxu0 0.0
        %2651 = vmatprep.subr.mxu0 0.0
        %2652 = vmatpush1.msra.mxu0 0.0
        %2653 = vmatprep.subr.mxu0 0.0
        %2654 = vmatpush1.msra.mxu0 0.0
        %2655 = vmatprep.subr.mxu0 0.0
        %2656 = vmatpush1.msra.mxu0 0.0
        %2657 = vmatprep.subr.mxu0 0.0
        %2658 = vmatpush1.msra.mxu0 0.0
        %2659 = vmatprep.subr.mxu0 0.0
        %2660 = vmatpush1.msra.mxu0 0.0
        %2661 = vmatprep.subr.mxu0 0.0
        %2662 = vmatpush1.msra.mxu0 0.0
        %2663 = vmatprep.subr.mxu0 0.0
        %2664 = vmatpush1.msra.mxu0 0.0
        %2665 = vmatprep.subr.mxu0 0.0
        %2666 = vmatpush1.msra.mxu0 0.0
        %2667 = vmatprep.subr.mxu0 0.0
        %2668 = vmatpush1.msra.mxu0 0.0
        %2669 = vmatprep.subr.mxu0 0.0
        %2670 = vmatpush1.msra.mxu0 0.0
        %2671 = vmatprep.subr.mxu0 0.0
        %2672 = vmatpush1.msra.mxu0 0.0
        %2673 = vmatprep.subr.mxu0 0.0
        %2674 = vmatpush1.msra.mxu0 0.0
        %2675 = vmatprep.subr.mxu0 0.0
        %2676 = vmatpush1.msra.mxu0 0.0
        %2677 = vmatprep.subr.mxu0 0.0
        %2678 = vmatpush1.msra.mxu0 0.0
        %2679 = vmatprep.subr.mxu0 0.0
        %2680 = vmatpush1.msra.mxu0 0.0
        %2681 = vmatprep.subr.mxu0 0.0
        %2682 = vmatpush1.msra.mxu0 0.0
        %2683 = vmatprep.subr.mxu0 0.0
        %2684 = vmatpush1.msra.mxu0 0.0
        %2685 = vmatprep.subr.mxu0 0.0
        %2686 = vmatpush1.msra.mxu0 0.0
        %2687 = vmatprep.subr.mxu0 0.0
        %2688 = vmatpush1.msra.mxu0 0.0
        %2689 = vmatprep.subr.mxu0 0.0
        %2690 = vmatpush1.msra.mxu0 0.0
        %2691 = vmatprep.subr.mxu0 0.0
        %2692 = vmatpush1.msra.mxu0 0.0
        %2693 = vmatprep.subr.mxu0 0.0
        %2694 = vmatpush1.msra.mxu0 0.0
        %2695 = vmatprep.subr.mxu0 0.0
        %2696 = vmatpush1.msra.mxu0 0.0
        %2697 = vmatprep.subr.mxu0 0.0
        %2698 = vmatpush1.msra.mxu0 0.0
        %2699 = vmatprep.subr.mxu0 0.0
        %2700 = vmatpush1.msra.mxu0 0.0
        %2701 = vmatprep.subr.mxu0 0.0
        %2702 = vmatpush1.msra.mxu0 0.0
        %2703 = vmatprep.mubr.f32.mxu0 0.0
        %2704 = vmatmul.mubr.f32.gmra.mrb[0].mxu0 %v974
        %v2705 = vpop.f32.mrb[0].mxu0
        %v2706 = vadd.f32 %v2622, %v2705
        %v2707 = vpop.f32.mrb[0].mxu0
        %2708 = vdwg.mxu0
        %2709 = vmatprep.subr.mxu0 0.0
        %2710 = vmatpush1.msra.mxu0 %v2554
        %2711 = vmatprep.subr.mxu0 0.0
        %2712 = vmatpush1.msra.mxu0 %v2555
        %2713 = vmatprep.subr.mxu0 0.0
        %2714 = vmatpush1.msra.mxu0 %v2556
        %2715 = vmatprep.subr.mxu0 0.0
        %2716 = vmatpush1.msra.mxu0 %v2557
        %2717 = vmatprep.subr.mxu0 0.0
        %2718 = vmatpush1.msra.mxu0 0.0
        %2719 = vmatprep.subr.mxu0 0.0
        %2720 = vmatpush1.msra.mxu0 0.0
        %2721 = vmatprep.subr.mxu0 0.0
        %2722 = vmatpush1.msra.mxu0 0.0
        %2723 = vmatprep.subr.mxu0 0.0
        %2724 = vmatpush1.msra.mxu0 0.0
        %2725 = vmatprep.subr.mxu0 0.0
        %2726 = vmatpush1.msra.mxu0 0.0
        %2727 = vmatprep.subr.mxu0 0.0
        %2728 = vmatpush1.msra.mxu0 0.0
        %2729 = vmatprep.subr.mxu0 0.0
        %2730 = vmatpush1.msra.mxu0 0.0
        %2731 = vmatprep.subr.mxu0 0.0
        %2732 = vmatpush1.msra.mxu0 0.0
        %2733 = vmatprep.subr.mxu0 0.0
        %2734 = vmatpush1.msra.mxu0 0.0
        %2735 = vmatprep.subr.mxu0 0.0
        %2736 = vmatpush1.msra.mxu0 0.0
        %2737 = vmatprep.subr.mxu0 0.0
        %2738 = vmatpush1.msra.mxu0 0.0
        %2739 = vmatprep.subr.mxu0 0.0
        %2740 = vmatpush1.msra.mxu0 0.0
        %2741 = vmatprep.subr.mxu0 0.0
        %2742 = vmatpush1.msra.mxu0 0.0
        %2743 = vmatprep.subr.mxu0 0.0
        %2744 = vmatpush1.msra.mxu0 0.0
        %2745 = vmatprep.subr.mxu0 0.0
        %2746 = vmatpush1.msra.mxu0 0.0
        %2747 = vmatprep.subr.mxu0 0.0
        %2748 = vmatpush1.msra.mxu0 0.0
        %2749 = vmatprep.subr.mxu0 0.0
        %2750 = vmatpush1.msra.mxu0 0.0
        %2751 = vmatprep.subr.mxu0 0.0
        %2752 = vmatpush1.msra.mxu0 0.0
        %2753 = vmatprep.subr.mxu0 0.0
        %2754 = vmatpush1.msra.mxu0 0.0
        %2755 = vmatprep.subr.mxu0 0.0
        %2756 = vmatpush1.msra.mxu0 0.0
        %2757 = vmatprep.subr.mxu0 0.0
        %2758 = vmatpush1.msra.mxu0 0.0
        %2759 = vmatprep.subr.mxu0 0.0
        %2760 = vmatpush1.msra.mxu0 0.0
        %2761 = vmatprep.subr.mxu0 0.0
        %2762 = vmatpush1.msra.mxu0 0.0
        %2763 = vmatprep.subr.mxu0 0.0
        %2764 = vmatpush1.msra.mxu0 0.0
        %2765 = vmatprep.subr.mxu0 0.0
        %2766 = vmatpush1.msra.mxu0 0.0
        %2767 = vmatprep.subr.mxu0 0.0
        %2768 = vmatpush1.msra.mxu0 0.0
        %2769 = vmatprep.subr.mxu0 0.0
        %2770 = vmatpush1.msra.mxu0 0.0
        %2771 = vmatprep.subr.mxu0 0.0
        %2772 = vmatpush1.msra.mxu0 0.0
        %2773 = vmatprep.mubr.f32.mxu0 0.0
        %2774 = vmatmul.mubr.f32.gmra.mrb[0].mxu0 %v974
        %v2775 = vpop.f32.mrb[0].mxu0
        %v2776 = vadd.f32 %v2626, %v2775
        %v2777 = vpop.f32.mrb[0].mxu0
        %2778 = vdwg.mxu0
        %2779 = vmatprep.subr.mxu0 0.0
        %2780 = vmatpush1.msra.mxu0 %v2558
        %2781 = vmatprep.subr.mxu0 0.0
        %2782 = vmatpush1.msra.mxu0 %v2559
        %2783 = vmatprep.subr.mxu0 0.0
        %2784 = vmatpush1.msra.mxu0 %v2560
        %2785 = vmatprep.subr.mxu0 0.0
        %2786 = vmatpush1.msra.mxu0 %v2561
        %2787 = vmatprep.subr.mxu0 0.0
        %2788 = vmatpush1.msra.mxu0 0.0
        %2789 = vmatprep.subr.mxu0 0.0
        %2790 = vmatpush1.msra.mxu0 0.0
        %2791 = vmatprep.subr.mxu0 0.0
        %2792 = vmatpush1.msra.mxu0 0.0
        %2793 = vmatprep.subr.mxu0 0.0
        %2794 = vmatpush1.msra.mxu0 0.0
        %2795 = vmatprep.subr.mxu0 0.0
        %2796 = vmatpush1.msra.mxu0 0.0
        %2797 = vmatprep.subr.mxu0 0.0
        %2798 = vmatpush1.msra.mxu0 0.0
        %2799 = vmatprep.subr.mxu0 0.0
        %2800 = vmatpush1.msra.mxu0 0.0
        %2801 = vmatprep.subr.mxu0 0.0
        %2802 = vmatpush1.msra.mxu0 0.0
        %2803 = vmatprep.subr.mxu0 0.0
        %2804 = vmatpush1.msra.mxu0 0.0
        %2805 = vmatprep.subr.mxu0 0.0
        %2806 = vmatpush1.msra.mxu0 0.0
        %2807 = vmatprep.subr.mxu0 0.0
        %2808 = vmatpush1.msra.mxu0 0.0
        %2809 = vmatprep.subr.mxu0 0.0
        %2810 = vmatpush1.msra.mxu0 0.0
        %2811 = vmatprep.subr.mxu0 0.0
        %2812 = vmatpush1.msra.mxu0 0.0
        %2813 = vmatprep.subr.mxu0 0.0
        %2814 = vmatpush1.msra.mxu0 0.0
        %2815 = vmatprep.subr.mxu0 0.0
        %2816 = vmatpush1.msra.mxu0 0.0
        %2817 = vmatprep.subr.mxu0 0.0
        %2818 = vmatpush1.msra.mxu0 0.0
        %2819 = vmatprep.subr.mxu0 0.0
        %2820 = vmatpush1.msra.mxu0 0.0
        %2821 = vmatprep.subr.mxu0 0.0
        %2822 = vmatpush1.msra.mxu0 0.0
        %2823 = vmatprep.subr.mxu0 0.0
        %2824 = vmatpush1.msra.mxu0 0.0
        %2825 = vmatprep.subr.mxu0 0.0
        %2826 = vmatpush1.msra.mxu0 0.0
        %2827 = vmatprep.subr.mxu0 0.0
        %2828 = vmatpush1.msra.mxu0 0.0
        %2829 = vmatprep.subr.mxu0 0.0
        %2830 = vmatpush1.msra.mxu0 0.0
        %2831 = vmatprep.subr.mxu0 0.0
        %2832 = vmatpush1.msra.mxu0 0.0
        %2833 = vmatprep.subr.mxu0 0.0
        %2834 = vmatpush1.msra.mxu0 0.0
        %2835 = vmatprep.subr.mxu0 0.0
        %2836 = vmatpush1.msra.mxu0 0.0
        %2837 = vmatprep.subr.mxu0 0.0
        %2838 = vmatpush1.msra.mxu0 0.0
        %2839 = vmatprep.subr.mxu0 0.0
        %2840 = vmatpush1.msra.mxu0 0.0
        %2841 = vmatprep.subr.mxu0 0.0
        %2842 = vmatpush1.msra.mxu0 0.0
        %2843 = vmatprep.mubr.f32.mxu0 0.0
        %2844 = vmatmul.mubr.f32.gmra.mrb[0].mxu0 %v974
        %v2845 = vpop.f32.mrb[0].mxu0
        %v2846 = vadd.f32 %v2630, %v2845
        %v2847 = vpop.f32.mrb[0].mxu0
        %2848 = vdwg.mxu0
        %2849 = vmatprep.subr.mxu0 0.0
        %2850 = vmatpush1.msra.mxu0 %v2562
        %2851 = vmatprep.subr.mxu0 0.0
        %2852 = vmatpush1.msra.mxu0 %v2563
        %2853 = vmatprep.subr.mxu0 0.0
        %2854 = vmatpush1.msra.mxu0 %v2564
        %2855 = vmatprep.subr.mxu0 0.0
        %2856 = vmatpush1.msra.mxu0 %v2565
        %2857 = vmatprep.subr.mxu0 0.0
        %2858 = vmatpush1.msra.mxu0 0.0
        %2859 = vmatprep.subr.mxu0 0.0
        %2860 = vmatpush1.msra.mxu0 0.0
        %2861 = vmatprep.subr.mxu0 0.0
        %2862 = vmatpush1.msra.mxu0 0.0
        %2863 = vmatprep.subr.mxu0 0.0
        %2864 = vmatpush1.msra.mxu0 0.0
        %2865 = vmatprep.subr.mxu0 0.0
        %2866 = vmatpush1.msra.mxu0 0.0
        %2867 = vmatprep.subr.mxu0 0.0
        %2868 = vmatpush1.msra.mxu0 0.0
        %2869 = vmatprep.subr.mxu0 0.0
        %2870 = vmatpush1.msra.mxu0 0.0
        %2871 = vmatprep.subr.mxu0 0.0
        %2872 = vmatpush1.msra.mxu0 0.0
        %2873 = vmatprep.subr.mxu0 0.0
        %2874 = vmatpush1.msra.mxu0 0.0
        %2875 = vmatprep.subr.mxu0 0.0
        %2876 = vmatpush1.msra.mxu0 0.0
        %2877 = vmatprep.subr.mxu0 0.0
        %2878 = vmatpush1.msra.mxu0 0.0
        %2879 = vmatprep.subr.mxu0 0.0
        %2880 = vmatpush1.msra.mxu0 0.0
        %2881 = vmatprep.subr.mxu0 0.0
        %2882 = vmatpush1.msra.mxu0 0.0
        %2883 = vmatprep.subr.mxu0 0.0
        %2884 = vmatpush1.msra.mxu0 0.0
        %2885 = vmatprep.subr.mxu0 0.0
        %2886 = vmatpush1.msra.mxu0 0.0
        %2887 = vmatprep.subr.mxu0 0.0
        %2888 = vmatpush1.msra.mxu0 0.0
        %2889 = vmatprep.subr.mxu0 0.0
        %2890 = vmatpush1.msra.mxu0 0.0
        %2891 = vmatprep.subr.mxu0 0.0
        %2892 = vmatpush1.msra.mxu0 0.0
        %2893 = vmatprep.subr.mxu0 0.0
        %2894 = vmatpush1.msra.mxu0 0.0
        %2895 = vmatprep.subr.mxu0 0.0
        %2896 = vmatpush1.msra.mxu0 0.0
        %2897 = vmatprep.subr.mxu0 0.0
        %2898 = vmatpush1.msra.mxu0 0.0
        %2899 = vmatprep.subr.mxu0 0.0
        %2900 = vmatpush1.msra.mxu0 0.0
        %2901 = vmatprep.subr.mxu0 0.0
        %2902 = vmatpush1.msra.mxu0 0.0
        %2903 = vmatprep.subr.mxu0 0.0
        %2904 = vmatpush1.msra.mxu0 0.0
        %2905 = vmatprep.subr.mxu0 0.0
        %2906 = vmatpush1.msra.mxu0 0.0
        %2907 = vmatprep.subr.mxu0 0.0
        %2908 = vmatpush1.msra.mxu0 0.0
        %2909 = vmatprep.subr.mxu0 0.0
        %2910 = vmatpush1.msra.mxu0 0.0
        %2911 = vmatprep.subr.mxu0 0.0
        %2912 = vmatpush1.msra.mxu0 0.0
        %2913 = vmatprep.mubr.f32.mxu0 0.0
        %2914 = vmatmul.mubr.f32.gmra.mrb[0].mxu0 %v974
        %v2915 = vpop.f32.mrb[0].mxu0
        %v2916 = vadd.f32 %v2634, %v2915
        %v2917 = vpop.f32.mrb[0].mxu0
        %2918 = vdwg.mxu0
        %v2923 = vlaneseq
        %v2924 = vshrl.u32 %v2923, 7
        %v2925 = vsub.s32 0, %v2924
        %v2926 = vrot.slane %v2606, %v2925
        %v2927 = vlaneseq
        %v2928 = vshrl.u32 %v2927, 7
        %v2929 = vsub.s32 0, %v2928
        %v2930 = vrot.slane %v2607, %v2929
        %v2931 = vlaneseq
        %v2932 = vshrl.u32 %v2931, 7
        %v2933 = vsub.s32 0, %v2932
        %v2934 = vrot.slane %v2608, %v2933
        %v2935 = vlaneseq
        %v2936 = vshrl.u32 %v2935, 7
        %v2937 = vsub.s32 0, %v2936
        %v2938 = vrot.slane %v2609, %v2937
        %v2944 = vsel %vm668, %v2548, 0
        %2946 = vmatprep.subr.mxu0 0.0
        %2947 = vmatpush1.msra.mxu0 %v2567
        %2948 = vmatprep.subr.mxu0 0.0
        %2949 = vmatpush1.msra.mxu0 %v2568
        %2950 = vmatprep.subr.mxu0 0.0
        %2951 = vmatpush1.msra.mxu0 %v2569
        %2952 = vmatprep.subr.mxu0 0.0
        %2953 = vmatpush1.msra.mxu0 %v2570
        %2954 = vmatprep.subr.mxu0 0.0
        %2955 = vmatpush1.msra.mxu0 0.0
        %2956 = vmatprep.subr.mxu0 0.0
        %2957 = vmatpush1.msra.mxu0 0.0
        %2958 = vmatprep.subr.mxu0 0.0
        %2959 = vmatpush1.msra.mxu0 0.0
        %2960 = vmatprep.subr.mxu0 0.0
        %2961 = vmatpush1.msra.mxu0 0.0
        %2962 = vmatprep.subr.mxu0 0.0
        %2963 = vmatpush1.msra.mxu0 0.0
        %2964 = vmatprep.subr.mxu0 0.0
        %2965 = vmatpush1.msra.mxu0 0.0
        %2966 = vmatprep.subr.mxu0 0.0
        %2967 = vmatpush1.msra.mxu0 0.0
        %2968 = vmatprep.subr.mxu0 0.0
        %2969 = vmatpush1.msra.mxu0 0.0
        %2970 = vmatprep.subr.mxu0 0.0
        %2971 = vmatpush1.msra.mxu0 0.0
        %2972 = vmatprep.subr.mxu0 0.0
        %2973 = vmatpush1.msra.mxu0 0.0
        %2974 = vmatprep.subr.mxu0 0.0
        %2975 = vmatpush1.msra.mxu0 0.0
        %2976 = vmatprep.subr.mxu0 0.0
        %2977 = vmatpush1.msra.mxu0 0.0
        %2978 = vmatprep.subr.mxu0 0.0
        %2979 = vmatpush1.msra.mxu0 0.0
        %2980 = vmatprep.subr.mxu0 0.0
        %2981 = vmatpush1.msra.mxu0 0.0
        %2982 = vmatprep.subr.mxu0 0.0
        %2983 = vmatpush1.msra.mxu0 0.0
        %2984 = vmatprep.subr.mxu0 0.0
        %2985 = vmatpush1.msra.mxu0 0.0
        %2986 = vmatprep.subr.mxu0 0.0
        %2987 = vmatpush1.msra.mxu0 0.0
        %2988 = vmatprep.subr.mxu0 0.0
        %2989 = vmatpush1.msra.mxu0 0.0
        %2990 = vmatprep.subr.mxu0 0.0
        %2991 = vmatpush1.msra.mxu0 0.0
        %2992 = vmatprep.subr.mxu0 0.0
        %2993 = vmatpush1.msra.mxu0 0.0
        %2994 = vmatprep.subr.mxu0 0.0
        %2995 = vmatpush1.msra.mxu0 0.0
        %2996 = vmatprep.subr.mxu0 0.0
        %2997 = vmatpush1.msra.mxu0 0.0
        %2998 = vmatprep.subr.mxu0 0.0
        %2999 = vmatpush1.msra.mxu0 0.0
        %3000 = vmatprep.subr.mxu0 0.0
        %3001 = vmatpush1.msra.mxu0 0.0
        %3002 = vmatprep.subr.mxu0 0.0
        %3003 = vmatpush1.msra.mxu0 0.0
        %3004 = vmatprep.subr.mxu0 0.0
        %3005 = vmatpush1.msra.mxu0 0.0
        %3006 = vmatprep.subr.mxu0 0.0
        %3007 = vmatpush1.msra.mxu0 0.0
        %3008 = vmatprep.subr.mxu0 0.0
        %3009 = vmatpush1.msra.mxu0 0.0
        %3010 = vmatprep.mubr.f32.mxu0 0.0
        %3011 = vmatmul.mubr.f32.gmra.mrb[0].mxu0 %v2944
        %v3012 = vpop.f32.mrb[0].mxu0
        %v3013 = vadd.f32 %v2926, %v3012
        %v3014 = vpop.f32.mrb[0].mxu0
        %3015 = vdwg.mxu0
        %3016 = vmatprep.subr.mxu0 0.0
        %3017 = vmatpush1.msra.mxu0 %v2571
        %3018 = vmatprep.subr.mxu0 0.0
        %3019 = vmatpush1.msra.mxu0 %v2572
        %3020 = vmatprep.subr.mxu0 0.0
        %3021 = vmatpush1.msra.mxu0 %v2573
        %3022 = vmatprep.subr.mxu0 0.0
        %3023 = vmatpush1.msra.mxu0 %v2574
        %3024 = vmatprep.subr.mxu0 0.0
        %3025 = vmatpush1.msra.mxu0 0.0
        %3026 = vmatprep.subr.mxu0 0.0
        %3027 = vmatpush1.msra.mxu0 0.0
        %3028 = vmatprep.subr.mxu0 0.0
        %3029 = vmatpush1.msra.mxu0 0.0
        %3030 = vmatprep.subr.mxu0 0.0
        %3031 = vmatpush1.msra.mxu0 0.0
        %3032 = vmatprep.subr.mxu0 0.0
        %3033 = vmatpush1.msra.mxu0 0.0
        %3034 = vmatprep.subr.mxu0 0.0
        %3035 = vmatpush1.msra.mxu0 0.0
        %3036 = vmatprep.subr.mxu0 0.0
        %3037 = vmatpush1.msra.mxu0 0.0
        %3038 = vmatprep.subr.mxu0 0.0
        %3039 = vmatpush1.msra.mxu0 0.0
        %3040 = vmatprep.subr.mxu0 0.0
        %3041 = vmatpush1.msra.mxu0 0.0
        %3042 = vmatprep.subr.mxu0 0.0
        %3043 = vmatpush1.msra.mxu0 0.0
        %3044 = vmatprep.subr.mxu0 0.0
        %3045 = vmatpush1.msra.mxu0 0.0
        %3046 = vmatprep.subr.mxu0 0.0
        %3047 = vmatpush1.msra.mxu0 0.0
        %3048 = vmatprep.subr.mxu0 0.0
        %3049 = vmatpush1.msra.mxu0 0.0
        %3050 = vmatprep.subr.mxu0 0.0
        %3051 = vmatpush1.msra.mxu0 0.0
        %3052 = vmatprep.subr.mxu0 0.0
        %3053 = vmatpush1.msra.mxu0 0.0
        %3054 = vmatprep.subr.mxu0 0.0
        %3055 = vmatpush1.msra.mxu0 0.0
        %3056 = vmatprep.subr.mxu0 0.0
        %3057 = vmatpush1.msra.mxu0 0.0
        %3058 = vmatprep.subr.mxu0 0.0
        %3059 = vmatpush1.msra.mxu0 0.0
        %3060 = vmatprep.subr.mxu0 0.0
        %3061 = vmatpush1.msra.mxu0 0.0
        %3062 = vmatprep.subr.mxu0 0.0
        %3063 = vmatpush1.msra.mxu0 0.0
        %3064 = vmatprep.subr.mxu0 0.0
        %3065 = vmatpush1.msra.mxu0 0.0
        %3066 = vmatprep.subr.mxu0 0.0
        %3067 = vmatpush1.msra.mxu0 0.0
        %3068 = vmatprep.subr.mxu0 0.0
        %3069 = vmatpush1.msra.mxu0 0.0
        %3070 = vmatprep.subr.mxu0 0.0
        %3071 = vmatpush1.msra.mxu0 0.0
        %3072 = vmatprep.subr.mxu0 0.0
        %3073 = vmatpush1.msra.mxu0 0.0
        %3074 = vmatprep.subr.mxu0 0.0
        %3075 = vmatpush1.msra.mxu0 0.0
        %3076 = vmatprep.subr.mxu0 0.0
        %3077 = vmatpush1.msra.mxu0 0.0
        %3078 = vmatprep.subr.mxu0 0.0
        %3079 = vmatpush1.msra.mxu0 0.0
        %3080 = vmatprep.mubr.f32.mxu0 0.0
        %3081 = vmatmul.mubr.f32.gmra.mrb[0].mxu0 %v2944
        %v3082 = vpop.f32.mrb[0].mxu0
        %v3083 = vadd.f32 %v2930, %v3082
        %v3084 = vpop.f32.mrb[0].mxu0
        %3085 = vdwg.mxu0
        %3086 = vmatprep.subr.mxu0 0.0
        %3087 = vmatpush1.msra.mxu0 %v2575
        %3088 = vmatprep.subr.mxu0 0.0
        %3089 = vmatpush1.msra.mxu0 %v2576
        %3090 = vmatprep.subr.mxu0 0.0
        %3091 = vmatpush1.msra.mxu0 %v2577
        %3092 = vmatprep.subr.mxu0 0.0
        %3093 = vmatpush1.msra.mxu0 %v2578
        %3094 = vmatprep.subr.mxu0 0.0
        %3095 = vmatpush1.msra.mxu0 0.0
        %3096 = vmatprep.subr.mxu0 0.0
        %3097 = vmatpush1.msra.mxu0 0.0
        %3098 = vmatprep.subr.mxu0 0.0
        %3099 = vmatpush1.msra.mxu0 0.0
        %3100 = vmatprep.subr.mxu0 0.0
        %3101 = vmatpush1.msra.mxu0 0.0
        %3102 = vmatprep.subr.mxu0 0.0
        %3103 = vmatpush1.msra.mxu0 0.0
        %3104 = vmatprep.subr.mxu0 0.0
        %3105 = vmatpush1.msra.mxu0 0.0
        %3106 = vmatprep.subr.mxu0 0.0
        %3107 = vmatpush1.msra.mxu0 0.0
        %3108 = vmatprep.subr.mxu0 0.0
        %3109 = vmatpush1.msra.mxu0 0.0
        %3110 = vmatprep.subr.mxu0 0.0
        %3111 = vmatpush1.msra.mxu0 0.0
        %3112 = vmatprep.subr.mxu0 0.0
        %3113 = vmatpush1.msra.mxu0 0.0
        %3114 = vmatprep.subr.mxu0 0.0
        %3115 = vmatpush1.msra.mxu0 0.0
        %3116 = vmatprep.subr.mxu0 0.0
        %3117 = vmatpush1.msra.mxu0 0.0
        %3118 = vmatprep.subr.mxu0 0.0
        %3119 = vmatpush1.msra.mxu0 0.0
        %3120 = vmatprep.subr.mxu0 0.0
        %3121 = vmatpush1.msra.mxu0 0.0
        %3122 = vmatprep.subr.mxu0 0.0
        %3123 = vmatpush1.msra.mxu0 0.0
        %3124 = vmatprep.subr.mxu0 0.0
        %3125 = vmatpush1.msra.mxu0 0.0
        %3126 = vmatprep.subr.mxu0 0.0
        %3127 = vmatpush1.msra.mxu0 0.0
        %3128 = vmatprep.subr.mxu0 0.0
        %3129 = vmatpush1.msra.mxu0 0.0
        %3130 = vmatprep.subr.mxu0 0.0
        %3131 = vmatpush1.msra.mxu0 0.0
        %3132 = vmatprep.subr.mxu0 0.0
        %3133 = vmatpush1.msra.mxu0 0.0
        %3134 = vmatprep.subr.mxu0 0.0
        %3135 = vmatpush1.msra.mxu0 0.0
        %3136 = vmatprep.subr.mxu0 0.0
        %3137 = vmatpush1.msra.mxu0 0.0
        %3138 = vmatprep.subr.mxu0 0.0
        %3139 = vmatpush1.msra.mxu0 0.0
        %3140 = vmatprep.subr.mxu0 0.0
        %3141 = vmatpush1.msra.mxu0 0.0
        %3142 = vmatprep.subr.mxu0 0.0
        %3143 = vmatpush1.msra.mxu0 0.0
        %3144 = vmatprep.subr.mxu0 0.0
        %3145 = vmatpush1.msra.mxu0 0.0
        %3146 = vmatprep.subr.mxu0 0.0
        %3147 = vmatpush1.msra.mxu0 0.0
        %3148 = vmatprep.subr.mxu0 0.0
        %3149 = vmatpush1.msra.mxu0 0.0
        %3150 = vmatprep.mubr.f32.mxu0 0.0
        %3151 = vmatmul.mubr.f32.gmra.mrb[0].mxu0 %v2944
        %v3152 = vpop.f32.mrb[0].mxu0
        %v3153 = vadd.f32 %v2934, %v3152
        %v3154 = vpop.f32.mrb[0].mxu0
        %3155 = vdwg.mxu0
        %3156 = vmatprep.subr.mxu0 0.0
        %3157 = vmatpush1.msra.mxu0 %v2579
        %3158 = vmatprep.subr.mxu0 0.0
        %3159 = vmatpush1.msra.mxu0 %v2580
        %3160 = vmatprep.subr.mxu0 0.0
        %3161 = vmatpush1.msra.mxu0 %v2581
        %3162 = vmatprep.subr.mxu0 0.0
        %3163 = vmatpush1.msra.mxu0 %v2582
        %3164 = vmatprep.subr.mxu0 0.0
        %3165 = vmatpush1.msra.mxu0 0.0
        %3166 = vmatprep.subr.mxu0 0.0
        %3167 = vmatpush1.msra.mxu0 0.0
        %3168 = vmatprep.subr.mxu0 0.0
        %3169 = vmatpush1.msra.mxu0 0.0
        %3170 = vmatprep.subr.mxu0 0.0
        %3171 = vmatpush1.msra.mxu0 0.0
        %3172 = vmatprep.subr.mxu0 0.0
        %3173 = vmatpush1.msra.mxu0 0.0
        %3174 = vmatprep.subr.mxu0 0.0
        %3175 = vmatpush1.msra.mxu0 0.0
        %3176 = vmatprep.subr.mxu0 0.0
        %3177 = vmatpush1.msra.mxu0 0.0
        %3178 = vmatprep.subr.mxu0 0.0
        %3179 = vmatpush1.msra.mxu0 0.0
        %3180 = vmatprep.subr.mxu0 0.0
        %3181 = vmatpush1.msra.mxu0 0.0
        %3182 = vmatprep.subr.mxu0 0.0
        %3183 = vmatpush1.msra.mxu0 0.0
        %3184 = vmatprep.subr.mxu0 0.0
        %3185 = vmatpush1.msra.mxu0 0.0
        %3186 = vmatprep.subr.mxu0 0.0
        %3187 = vmatpush1.msra.mxu0 0.0
        %3188 = vmatprep.subr.mxu0 0.0
        %3189 = vmatpush1.msra.mxu0 0.0
        %3190 = vmatprep.subr.mxu0 0.0
        %3191 = vmatpush1.msra.mxu0 0.0
        %3192 = vmatprep.subr.mxu0 0.0
        %3193 = vmatpush1.msra.mxu0 0.0
        %3194 = vmatprep.subr.mxu0 0.0
        %3195 = vmatpush1.msra.mxu0 0.0
        %3196 = vmatprep.subr.mxu0 0.0
        %3197 = vmatpush1.msra.mxu0 0.0
        %3198 = vmatprep.subr.mxu0 0.0
        %3199 = vmatpush1.msra.mxu0 0.0
        %3200 = vmatprep.subr.mxu0 0.0
        %3201 = vmatpush1.msra.mxu0 0.0
        %3202 = vmatprep.subr.mxu0 0.0
        %3203 = vmatpush1.msra.mxu0 0.0
        %3204 = vmatprep.subr.mxu0 0.0
        %3205 = vmatpush1.msra.mxu0 0.0
        %3206 = vmatprep.subr.mxu0 0.0
        %3207 = vmatpush1.msra.mxu0 0.0
        %3208 = vmatprep.subr.mxu0 0.0
        %3209 = vmatpush1.msra.mxu0 0.0
        %3210 = vmatprep.subr.mxu0 0.0
        %3211 = vmatpush1.msra.mxu0 0.0
        %3212 = vmatprep.subr.mxu0 0.0
        %3213 = vmatpush1.msra.mxu0 0.0
        %3214 = vmatprep.subr.mxu0 0.0
        %3215 = vmatpush1.msra.mxu0 0.0
        %3216 = vmatprep.subr.mxu0 0.0
        %3217 = vmatpush1.msra.mxu0 0.0
        %3218 = vmatprep.subr.mxu0 0.0
        %3219 = vmatpush1.msra.mxu0 0.0
        %3220 = vmatprep.mubr.f32.mxu0 0.0
        %3221 = vmatmul.mubr.f32.gmra.mrb[0].mxu0 %v2944
        %v3222 = vpop.f32.mrb[0].mxu0
        %v3223 = vadd.f32 %v2938, %v3222
        %v3224 = vpop.f32.mrb[0].mxu0
        %3225 = vdwg.mxu0
        %v3230 = vlaneseq
        %v3231 = vshrl.u32 %v3230, 7
        %v3232 = vsub.s32 0, %v3231
        %v3233 = vrot.slane %v2611, %v3232
        %v3234 = vlaneseq
        %v3235 = vshrl.u32 %v3234, 7
        %v3236 = vsub.s32 0, %v3235
        %v3237 = vrot.slane %v2612, %v3236
        %v3238 = vlaneseq
        %v3239 = vshrl.u32 %v3238, 7
        %v3240 = vsub.s32 0, %v3239
        %v3241 = vrot.slane %v2613, %v3240
        %v3242 = vlaneseq
        %v3243 = vshrl.u32 %v3242, 7
        %v3244 = vsub.s32 0, %v3243
        %v3245 = vrot.slane %v2614, %v3244
        %3250 = vmatprep.subr.mxu0 0.0
        %3251 = vmatpush1.msra.mxu0 %v2584
        %3252 = vmatprep.subr.mxu0 0.0
        %3253 = vmatpush1.msra.mxu0 %v2585
        %3254 = vmatprep.subr.mxu0 0.0
        %3255 = vmatpush1.msra.mxu0 %v2586
        %3256 = vmatprep.subr.mxu0 0.0
        %3257 = vmatpush1.msra.mxu0 %v2587
        %3258 = vmatprep.subr.mxu0 0.0
        %3259 = vmatpush1.msra.mxu0 0.0
        %3260 = vmatprep.subr.mxu0 0.0
        %3261 = vmatpush1.msra.mxu0 0.0
        %3262 = vmatprep.subr.mxu0 0.0
        %3263 = vmatpush1.msra.mxu0 0.0
        %3264 = vmatprep.subr.mxu0 0.0
        %3265 = vmatpush1.msra.mxu0 0.0
        %3266 = vmatprep.subr.mxu0 0.0
        %3267 = vmatpush1.msra.mxu0 0.0
        %3268 = vmatprep.subr.mxu0 0.0
        %3269 = vmatpush1.msra.mxu0 0.0
        %3270 = vmatprep.subr.mxu0 0.0
        %3271 = vmatpush1.msra.mxu0 0.0
        %3272 = vmatprep.subr.mxu0 0.0
        %3273 = vmatpush1.msra.mxu0 0.0
        %3274 = vmatprep.subr.mxu0 0.0
        %3275 = vmatpush1.msra.mxu0 0.0
        %3276 = vmatprep.subr.mxu0 0.0
        %3277 = vmatpush1.msra.mxu0 0.0
        %3278 = vmatprep.subr.mxu0 0.0
        %3279 = vmatpush1.msra.mxu0 0.0
        %3280 = vmatprep.subr.mxu0 0.0
        %3281 = vmatpush1.msra.mxu0 0.0
        %3282 = vmatprep.subr.mxu0 0.0
        %3283 = vmatpush1.msra.mxu0 0.0
        %3284 = vmatprep.subr.mxu0 0.0
        %3285 = vmatpush1.msra.mxu0 0.0
        %3286 = vmatprep.subr.mxu0 0.0
        %3287 = vmatpush1.msra.mxu0 0.0
        %3288 = vmatprep.subr.mxu0 0.0
        %3289 = vmatpush1.msra.mxu0 0.0
        %3290 = vmatprep.subr.mxu0 0.0
        %3291 = vmatpush1.msra.mxu0 0.0
        %3292 = vmatprep.subr.mxu0 0.0
        %3293 = vmatpush1.msra.mxu0 0.0
        %3294 = vmatprep.subr.mxu0 0.0
        %3295 = vmatpush1.msra.mxu0 0.0
        %3296 = vmatprep.subr.mxu0 0.0
        %3297 = vmatpush1.msra.mxu0 0.0
        %3298 = vmatprep.subr.mxu0 0.0
        %3299 = vmatpush1.msra.mxu0 0.0
        %3300 = vmatprep.subr.mxu0 0.0
        %3301 = vmatpush1.msra.mxu0 0.0
        %3302 = vmatprep.subr.mxu0 0.0
        %3303 = vmatpush1.msra.mxu0 0.0
        %3304 = vmatprep.subr.mxu0 0.0
        %3305 = vmatpush1.msra.mxu0 0.0
        %3306 = vmatprep.subr.mxu0 0.0
        %3307 = vmatpush1.msra.mxu0 0.0
        %3308 = vmatprep.subr.mxu0 0.0
        %3309 = vmatpush1.msra.mxu0 0.0
        %3310 = vmatprep.subr.mxu0 0.0
        %3311 = vmatpush1.msra.mxu0 0.0
        %3312 = vmatprep.subr.mxu0 0.0
        %3313 = vmatpush1.msra.mxu0 0.0
        %3314 = vmatprep.mubr.f32.mxu0 0.0
        %3315 = vmatmul.mubr.f32.gmra.mrb[0].mxu0 %v2944
        %v3316 = vpop.f32.mrb[0].mxu0
        %v3317 = vadd.f32 %v3233, %v3316
        %v3318 = vpop.f32.mrb[0].mxu0
        %3319 = vdwg.mxu0
        %3320 = vmatprep.subr.mxu0 0.0
        %3321 = vmatpush1.msra.mxu0 %v2588
        %3322 = vmatprep.subr.mxu0 0.0
        %3323 = vmatpush1.msra.mxu0 %v2589
        %3324 = vmatprep.subr.mxu0 0.0
        %3325 = vmatpush1.msra.mxu0 %v2590
        %3326 = vmatprep.subr.mxu0 0.0
        %3327 = vmatpush1.msra.mxu0 %v2591
        %3328 = vmatprep.subr.mxu0 0.0
        %3329 = vmatpush1.msra.mxu0 0.0
        %3330 = vmatprep.subr.mxu0 0.0
        %3331 = vmatpush1.msra.mxu0 0.0
        %3332 = vmatprep.subr.mxu0 0.0
        %3333 = vmatpush1.msra.mxu0 0.0
        %3334 = vmatprep.subr.mxu0 0.0
        %3335 = vmatpush1.msra.mxu0 0.0
        %3336 = vmatprep.subr.mxu0 0.0
        %3337 = vmatpush1.msra.mxu0 0.0
        %3338 = vmatprep.subr.mxu0 0.0
        %3339 = vmatpush1.msra.mxu0 0.0
        %3340 = vmatprep.subr.mxu0 0.0
        %3341 = vmatpush1.msra.mxu0 0.0
        %3342 = vmatprep.subr.mxu0 0.0
        %3343 = vmatpush1.msra.mxu0 0.0
        %3344 = vmatprep.subr.mxu0 0.0
        %3345 = vmatpush1.msra.mxu0 0.0
        %3346 = vmatprep.subr.mxu0 0.0
        %3347 = vmatpush1.msra.mxu0 0.0
        %3348 = vmatprep.subr.mxu0 0.0
        %3349 = vmatpush1.msra.mxu0 0.0
        %3350 = vmatprep.subr.mxu0 0.0
        %3351 = vmatpush1.msra.mxu0 0.0
        %3352 = vmatprep.subr.mxu0 0.0
        %3353 = vmatpush1.msra.mxu0 0.0
        %3354 = vmatprep.subr.mxu0 0.0
        %3355 = vmatpush1.msra.mxu0 0.0
        %3356 = vmatprep.subr.mxu0 0.0
        %3357 = vmatpush1.msra.mxu0 0.0
        %3358 = vmatprep.subr.mxu0 0.0
        %3359 = vmatpush1.msra.mxu0 0.0
        %3360 = vmatprep.subr.mxu0 0.0
        %3361 = vmatpush1.msra.mxu0 0.0
        %3362 = vmatprep.subr.mxu0 0.0
        %3363 = vmatpush1.msra.mxu0 0.0
        %3364 = vmatprep.subr.mxu0 0.0
        %3365 = vmatpush1.msra.mxu0 0.0
        %3366 = vmatprep.subr.mxu0 0.0
        %3367 = vmatpush1.msra.mxu0 0.0
        %3368 = vmatprep.subr.mxu0 0.0
        %3369 = vmatpush1.msra.mxu0 0.0
        %3370 = vmatprep.subr.mxu0 0.0
        %3371 = vmatpush1.msra.mxu0 0.0
        %3372 = vmatprep.subr.mxu0 0.0
        %3373 = vmatpush1.msra.mxu0 0.0
        %3374 = vmatprep.subr.mxu0 0.0
        %3375 = vmatpush1.msra.mxu0 0.0
        %3376 = vmatprep.subr.mxu0 0.0
        %3377 = vmatpush1.msra.mxu0 0.0
        %3378 = vmatprep.subr.mxu0 0.0
        %3379 = vmatpush1.msra.mxu0 0.0
        %3380 = vmatprep.subr.mxu0 0.0
        %3381 = vmatpush1.msra.mxu0 0.0
        %3382 = vmatprep.subr.mxu0 0.0
        %3383 = vmatpush1.msra.mxu0 0.0
        %3384 = vmatprep.mubr.f32.mxu0 0.0
        %3385 = vmatmul.mubr.f32.gmra.mrb[0].mxu0 %v2944
        %v3386 = vpop.f32.mrb[0].mxu0
        %v3387 = vadd.f32 %v3237, %v3386
        %v3388 = vpop.f32.mrb[0].mxu0
        %3389 = vdwg.mxu0
        %3390 = vmatprep.subr.mxu0 0.0
        %3391 = vmatpush1.msra.mxu0 %v2592
        %3392 = vmatprep.subr.mxu0 0.0
        %3393 = vmatpush1.msra.mxu0 %v2593
        %3394 = vmatprep.subr.mxu0 0.0
        %3395 = vmatpush1.msra.mxu0 %v2594
        %3396 = vmatprep.subr.mxu0 0.0
        %3397 = vmatpush1.msra.mxu0 %v2595
        %3398 = vmatprep.subr.mxu0 0.0
        %3399 = vmatpush1.msra.mxu0 0.0
        %3400 = vmatprep.subr.mxu0 0.0
        %3401 = vmatpush1.msra.mxu0 0.0
        %3402 = vmatprep.subr.mxu0 0.0
        %3403 = vmatpush1.msra.mxu0 0.0
        %3404 = vmatprep.subr.mxu0 0.0
        %3405 = vmatpush1.msra.mxu0 0.0
        %3406 = vmatprep.subr.mxu0 0.0
        %3407 = vmatpush1.msra.mxu0 0.0
        %3408 = vmatprep.subr.mxu0 0.0
        %3409 = vmatpush1.msra.mxu0 0.0
        %3410 = vmatprep.subr.mxu0 0.0
        %3411 = vmatpush1.msra.mxu0 0.0
        %3412 = vmatprep.subr.mxu0 0.0
        %3413 = vmatpush1.msra.mxu0 0.0
        %3414 = vmatprep.subr.mxu0 0.0
        %3415 = vmatpush1.msra.mxu0 0.0
        %3416 = vmatprep.subr.mxu0 0.0
        %3417 = vmatpush1.msra.mxu0 0.0
        %3418 = vmatprep.subr.mxu0 0.0
        %3419 = vmatpush1.msra.mxu0 0.0
        %3420 = vmatprep.subr.mxu0 0.0
        %3421 = vmatpush1.msra.mxu0 0.0
        %3422 = vmatprep.subr.mxu0 0.0
        %3423 = vmatpush1.msra.mxu0 0.0
        %3424 = vmatprep.subr.mxu0 0.0
        %3425 = vmatpush1.msra.mxu0 0.0
        %3426 = vmatprep.subr.mxu0 0.0
        %3427 = vmatpush1.msra.mxu0 0.0
        %3428 = vmatprep.subr.mxu0 0.0
        %3429 = vmatpush1.msra.mxu0 0.0
        %3430 = vmatprep.subr.mxu0 0.0
        %3431 = vmatpush1.msra.mxu0 0.0
        %3432 = vmatprep.subr.mxu0 0.0
        %3433 = vmatpush1.msra.mxu0 0.0
        %3434 = vmatprep.subr.mxu0 0.0
        %3435 = vmatpush1.msra.mxu0 0.0
        %3436 = vmatprep.subr.mxu0 0.0
        %3437 = vmatpush1.msra.mxu0 0.0
        %3438 = vmatprep.subr.mxu0 0.0
        %3439 = vmatpush1.msra.mxu0 0.0
        %3440 = vmatprep.subr.mxu0 0.0
        %3441 = vmatpush1.msra.mxu0 0.0
        %3442 = vmatprep.subr.mxu0 0.0
        %3443 = vmatpush1.msra.mxu0 0.0
        %3444 = vmatprep.subr.mxu0 0.0
        %3445 = vmatpush1.msra.mxu0 0.0
        %3446 = vmatprep.subr.mxu0 0.0
        %3447 = vmatpush1.msra.mxu0 0.0
        %3448 = vmatprep.subr.mxu0 0.0
        %3449 = vmatpush1.msra.mxu0 0.0
        %3450 = vmatprep.subr.mxu0 0.0
        %3451 = vmatpush1.msra.mxu0 0.0
        %3452 = vmatprep.subr.mxu0 0.0
        %3453 = vmatpush1.msra.mxu0 0.0
        %3454 = vmatprep.mubr.f32.mxu0 0.0
        %3455 = vmatmul.mubr.f32.gmra.mrb[0].mxu0 %v2944
        %v3456 = vpop.f32.mrb[0].mxu0
        %v3457 = vadd.f32 %v3241, %v3456
        %v3458 = vpop.f32.mrb[0].mxu0
        %3459 = vdwg.mxu0
        %3460 = vmatprep.subr.mxu0 0.0
        %3461 = vmatpush1.msra.mxu0 %v2596
        %3462 = vmatprep.subr.mxu0 0.0
        %3463 = vmatpush1.msra.mxu0 %v2597
        %3464 = vmatprep.subr.mxu0 0.0
        %3465 = vmatpush1.msra.mxu0 %v2598
        %3466 = vmatprep.subr.mxu0 0.0
        %3467 = vmatpush1.msra.mxu0 %v2599
        %3468 = vmatprep.subr.mxu0 0.0
        %3469 = vmatpush1.msra.mxu0 0.0
        %3470 = vmatprep.subr.mxu0 0.0
        %3471 = vmatpush1.msra.mxu0 0.0
        %3472 = vmatprep.subr.mxu0 0.0
        %3473 = vmatpush1.msra.mxu0 0.0
        %3474 = vmatprep.subr.mxu0 0.0
        %3475 = vmatpush1.msra.mxu0 0.0
        %3476 = vmatprep.subr.mxu0 0.0
        %3477 = vmatpush1.msra.mxu0 0.0
        %3478 = vmatprep.subr.mxu0 0.0
        %3479 = vmatpush1.msra.mxu0 0.0
        %3480 = vmatprep.subr.mxu0 0.0
        %3481 = vmatpush1.msra.mxu0 0.0
        %3482 = vmatprep.subr.mxu0 0.0
        %3483 = vmatpush1.msra.mxu0 0.0
        %3484 = vmatprep.subr.mxu0 0.0
        %3485 = vmatpush1.msra.mxu0 0.0
        %3486 = vmatprep.subr.mxu0 0.0
        %3487 = vmatpush1.msra.mxu0 0.0
        %3488 = vmatprep.subr.mxu0 0.0
        %3489 = vmatpush1.msra.mxu0 0.0
        %3490 = vmatprep.subr.mxu0 0.0
        %3491 = vmatpush1.msra.mxu0 0.0
        %3492 = vmatprep.subr.mxu0 0.0
        %3493 = vmatpush1.msra.mxu0 0.0
        %3494 = vmatprep.subr.mxu0 0.0
        %3495 = vmatpush1.msra.mxu0 0.0
        %3496 = vmatprep.subr.mxu0 0.0
        %3497 = vmatpush1.msra.mxu0 0.0
        %3498 = vmatprep.subr.mxu0 0.0
        %3499 = vmatpush1.msra.mxu0 0.0
        %3500 = vmatprep.subr.mxu0 0.0
        %3501 = vmatpush1.msra.mxu0 0.0
        %3502 = vmatprep.subr.mxu0 0.0
        %3503 = vmatpush1.msra.mxu0 0.0
        %3504 = vmatprep.subr.mxu0 0.0
        %3505 = vmatpush1.msra.mxu0 0.0
        %3506 = vmatprep.subr.mxu0 0.0
        %3507 = vmatpush1.msra.mxu0 0.0
        %3508 = vmatprep.subr.mxu0 0.0
        %3509 = vmatpush1.msra.mxu0 0.0
        %3510 = vmatprep.subr.mxu0 0.0
        %3511 = vmatpush1.msra.mxu0 0.0
        %3512 = vmatprep.subr.mxu0 0.0
        %3513 = vmatpush1.msra.mxu0 0.0
        %3514 = vmatprep.subr.mxu0 0.0
        %3515 = vmatpush1.msra.mxu0 0.0
        %3516 = vmatprep.subr.mxu0 0.0
        %3517 = vmatpush1.msra.mxu0 0.0
        %3518 = vmatprep.subr.mxu0 0.0
        %3519 = vmatpush1.msra.mxu0 0.0
        %3520 = vmatprep.subr.mxu0 0.0
        %3521 = vmatpush1.msra.mxu0 0.0
        %3522 = vmatprep.subr.mxu0 0.0
        %3523 = vmatpush1.msra.mxu0 0.0
        %3524 = vmatprep.mubr.f32.mxu0 0.0
        %3525 = vmatmul.mubr.f32.gmra.mrb[0].mxu0 %v2944
        %v3526 = vpop.f32.mrb[0].mxu0
        %v3527 = vadd.f32 %v3245, %v3526
        %v3528 = vpop.f32.mrb[0].mxu0
        %3529 = vdwg.mxu0
        %v3531 = vsel %vm834, %v2706, 0
        %v3534 = vsel %vm834, %v3013, 0
        %3536 = vmatprep.subr.mxu0 0.0
        %3537 = vmatpush1.xpose.msra.mxu0 %v3534
        %3538 = vmatprep.subr.mxu0 0.0
        %3539 = vmatpush1.xpose.msra.mxu0 0.0
        %3540 = vmatprep.subr.mxu0 0.0
        %3541 = vmatpush1.xpose.msra.mxu0 0.0
        %3542 = vmatprep.subr.mxu0 0.0
        %3543 = vmatpush1.xpose.msra.mxu0 0.0
        %3544 = vmatprep.subr.mxu0 0.0
        %3545 = vmatpush1.xpose.msra.mxu0 0.0
        %3546 = vmatprep.subr.mxu0 0.0
        %3547 = vmatpush1.xpose.msra.mxu0 0.0
        %3548 = vmatprep.subr.mxu0 0.0
        %3549 = vmatpush1.xpose.msra.mxu0 0.0
        %3550 = vmatprep.subr.mxu0 0.0
        %3551 = vmatpush1.xpose.msra.mxu0 0.0
        %3552 = vmatprep.subr.mxu0 0.0
        %3553 = vmatpush1.xpose.msra.mxu0 0.0
        %3554 = vmatprep.subr.mxu0 0.0
        %3555 = vmatpush1.xpose.msra.mxu0 0.0
        %3556 = vmatprep.subr.mxu0 0.0
        %3557 = vmatpush1.xpose.msra.mxu0 0.0
        %3558 = vmatprep.subr.mxu0 0.0
        %3559 = vmatpush1.xpose.msra.mxu0 0.0
        %3560 = vmatprep.subr.mxu0 0.0
        %3561 = vmatpush1.xpose.msra.mxu0 0.0
        %3562 = vmatprep.subr.mxu0 0.0
        %3563 = vmatpush1.xpose.msra.mxu0 0.0
        %3564 = vmatprep.subr.mxu0 0.0
        %3565 = vmatpush1.xpose.msra.mxu0 0.0
        %3566 = vmatprep.subr.mxu0 0.0
        %3567 = vmatpush1.xpose.msra.mxu0 0.0
        %3568 = vmatprep.subr.mxu0 0.0
        %3569 = vmatpush1.xpose.msra.mxu0 0.0
        %3570 = vmatprep.subr.mxu0 0.0
        %3571 = vmatpush1.xpose.msra.mxu0 0.0
        %3572 = vmatprep.subr.mxu0 0.0
        %3573 = vmatpush1.xpose.msra.mxu0 0.0
        %3574 = vmatprep.subr.mxu0 0.0
        %3575 = vmatpush1.xpose.msra.mxu0 0.0
        %3576 = vmatprep.subr.mxu0 0.0
        %3577 = vmatpush1.xpose.msra.mxu0 0.0
        %3578 = vmatprep.subr.mxu0 0.0
        %3579 = vmatpush1.xpose.msra.mxu0 0.0
        %3580 = vmatprep.subr.mxu0 0.0
        %3581 = vmatpush1.xpose.msra.mxu0 0.0
        %3582 = vmatprep.subr.mxu0 0.0
        %3583 = vmatpush1.xpose.msra.mxu0 0.0
        %3584 = vmatprep.subr.mxu0 0.0
        %3585 = vmatpush1.xpose.msra.mxu0 0.0
        %3586 = vmatprep.subr.mxu0 0.0
        %3587 = vmatpush1.xpose.msra.mxu0 0.0
        %3588 = vmatprep.subr.mxu0 0.0
        %3589 = vmatpush1.xpose.msra.mxu0 0.0
        %3590 = vmatprep.subr.mxu0 0.0
        %3591 = vmatpush1.xpose.msra.mxu0 0.0
        %3592 = vmatprep.subr.mxu0 0.0
        %3593 = vmatpush1.xpose.msra.mxu0 0.0
        %3594 = vmatprep.subr.mxu0 0.0
        %3595 = vmatpush1.xpose.msra.mxu0 0.0
        %3596 = vmatprep.subr.mxu0 0.0
        %3597 = vmatpush1.xpose.msra.mxu0 0.0
        %3598 = vmatprep.subr.mxu0 0.0
        %3599 = vmatpush1.xpose.msra.mxu0 0.0
        %3600 = vmatprep.mubr.f32.mxu0 0.0
        %3601 = vmatmul.mubr.f32.gmra.mrb[0].mxu0 %v3531
        %v3602 = vpop.f32.mrb[0].mxu0
        %v3603 = vadd.f32 0.0, %v3602
        %v3604 = vpop.f32.mrb[0].mxu0
        %3605 = vdwg.mxu0
        %v3607 = vsel %vm834, %v2776, 0
        %v3610 = vsel %vm834, %v3083, 0
        %3612 = vmatprep.subr.mxu0 0.0
        %3613 = vmatpush1.xpose.msra.mxu0 %v3610
        %3614 = vmatprep.subr.mxu0 0.0
        %3615 = vmatpush1.xpose.msra.mxu0 0.0
        %3616 = vmatprep.subr.mxu0 0.0
        %3617 = vmatpush1.xpose.msra.mxu0 0.0
        %3618 = vmatprep.subr.mxu0 0.0
        %3619 = vmatpush1.xpose.msra.mxu0 0.0
        %3620 = vmatprep.subr.mxu0 0.0
        %3621 = vmatpush1.xpose.msra.mxu0 0.0
        %3622 = vmatprep.subr.mxu0 0.0
        %3623 = vmatpush1.xpose.msra.mxu0 0.0
        %3624 = vmatprep.subr.mxu0 0.0
        %3625 = vmatpush1.xpose.msra.mxu0 0.0
        %3626 = vmatprep.subr.mxu0 0.0
        %3627 = vmatpush1.xpose.msra.mxu0 0.0
        %3628 = vmatprep.subr.mxu0 0.0
        %3629 = vmatpush1.xpose.msra.mxu0 0.0
        %3630 = vmatprep.subr.mxu0 0.0
        %3631 = vmatpush1.xpose.msra.mxu0 0.0
        %3632 = vmatprep.subr.mxu0 0.0
        %3633 = vmatpush1.xpose.msra.mxu0 0.0
        %3634 = vmatprep.subr.mxu0 0.0
        %3635 = vmatpush1.xpose.msra.mxu0 0.0
        %3636 = vmatprep.subr.mxu0 0.0
        %3637 = vmatpush1.xpose.msra.mxu0 0.0
        %3638 = vmatprep.subr.mxu0 0.0
        %3639 = vmatpush1.xpose.msra.mxu0 0.0
        %3640 = vmatprep.subr.mxu0 0.0
        %3641 = vmatpush1.xpose.msra.mxu0 0.0
        %3642 = vmatprep.subr.mxu0 0.0
        %3643 = vmatpush1.xpose.msra.mxu0 0.0
        %3644 = vmatprep.subr.mxu0 0.0
        %3645 = vmatpush1.xpose.msra.mxu0 0.0
        %3646 = vmatprep.subr.mxu0 0.0
        %3647 = vmatpush1.xpose.msra.mxu0 0.0
        %3648 = vmatprep.subr.mxu0 0.0
        %3649 = vmatpush1.xpose.msra.mxu0 0.0
        %3650 = vmatprep.subr.mxu0 0.0
        %3651 = vmatpush1.xpose.msra.mxu0 0.0
        %3652 = vmatprep.subr.mxu0 0.0
        %3653 = vmatpush1.xpose.msra.mxu0 0.0
        %3654 = vmatprep.subr.mxu0 0.0
        %3655 = vmatpush1.xpose.msra.mxu0 0.0
        %3656 = vmatprep.subr.mxu0 0.0
        %3657 = vmatpush1.xpose.msra.mxu0 0.0
        %3658 = vmatprep.subr.mxu0 0.0
        %3659 = vmatpush1.xpose.msra.mxu0 0.0
        %3660 = vmatprep.subr.mxu0 0.0
        %3661 = vmatpush1.xpose.msra.mxu0 0.0
        %3662 = vmatprep.subr.mxu0 0.0
        %3663 = vmatpush1.xpose.msra.mxu0 0.0
        %3664 = vmatprep.subr.mxu0 0.0
        %3665 = vmatpush1.xpose.msra.mxu0 0.0
        %3666 = vmatprep.subr.mxu0 0.0
        %3667 = vmatpush1.xpose.msra.mxu0 0.0
        %3668 = vmatprep.subr.mxu0 0.0
        %3669 = vmatpush1.xpose.msra.mxu0 0.0
        %3670 = vmatprep.subr.mxu0 0.0
        %3671 = vmatpush1.xpose.msra.mxu0 0.0
        %3672 = vmatprep.subr.mxu0 0.0
        %3673 = vmatpush1.xpose.msra.mxu0 0.0
        %3674 = vmatprep.subr.mxu0 0.0
        %3675 = vmatpush1.xpose.msra.mxu0 0.0
        %3676 = vmatprep.mubr.f32.mxu0 0.0
        %3677 = vmatmul.mubr.f32.gmra.mrb[0].mxu0 %v3607
        %v3678 = vpop.f32.mrb[0].mxu0
        %v3679 = vadd.f32 0.0, %v3678
        %v3680 = vpop.f32.mrb[0].mxu0
        %3681 = vdwg.mxu0
        %v3683 = vsel %vm834, %v2846, 0
        %v3686 = vsel %vm834, %v3153, 0
        %3688 = vmatprep.subr.mxu0 0.0
        %3689 = vmatpush1.xpose.msra.mxu0 %v3686
        %3690 = vmatprep.subr.mxu0 0.0
        %3691 = vmatpush1.xpose.msra.mxu0 0.0
        %3692 = vmatprep.subr.mxu0 0.0
        %3693 = vmatpush1.xpose.msra.mxu0 0.0
        %3694 = vmatprep.subr.mxu0 0.0
        %3695 = vmatpush1.xpose.msra.mxu0 0.0
        %3696 = vmatprep.subr.mxu0 0.0
        %3697 = vmatpush1.xpose.msra.mxu0 0.0
        %3698 = vmatprep.subr.mxu0 0.0
        %3699 = vmatpush1.xpose.msra.mxu0 0.0
        %3700 = vmatprep.subr.mxu0 0.0
        %3701 = vmatpush1.xpose.msra.mxu0 0.0
        %3702 = vmatprep.subr.mxu0 0.0
        %3703 = vmatpush1.xpose.msra.mxu0 0.0
        %3704 = vmatprep.subr.mxu0 0.0
        %3705 = vmatpush1.xpose.msra.mxu0 0.0
        %3706 = vmatprep.subr.mxu0 0.0
        %3707 = vmatpush1.xpose.msra.mxu0 0.0
        %3708 = vmatprep.subr.mxu0 0.0
        %3709 = vmatpush1.xpose.msra.mxu0 0.0
        %3710 = vmatprep.subr.mxu0 0.0
        %3711 = vmatpush1.xpose.msra.mxu0 0.0
        %3712 = vmatprep.subr.mxu0 0.0
        %3713 = vmatpush1.xpose.msra.mxu0 0.0
        %3714 = vmatprep.subr.mxu0 0.0
        %3715 = vmatpush1.xpose.msra.mxu0 0.0
        %3716 = vmatprep.subr.mxu0 0.0
        %3717 = vmatpush1.xpose.msra.mxu0 0.0
        %3718 = vmatprep.subr.mxu0 0.0
        %3719 = vmatpush1.xpose.msra.mxu0 0.0
        %3720 = vmatprep.subr.mxu0 0.0
        %3721 = vmatpush1.xpose.msra.mxu0 0.0
        %3722 = vmatprep.subr.mxu0 0.0
        %3723 = vmatpush1.xpose.msra.mxu0 0.0
        %3724 = vmatprep.subr.mxu0 0.0
        %3725 = vmatpush1.xpose.msra.mxu0 0.0
        %3726 = vmatprep.subr.mxu0 0.0
        %3727 = vmatpush1.xpose.msra.mxu0 0.0
        %3728 = vmatprep.subr.mxu0 0.0
        %3729 = vmatpush1.xpose.msra.mxu0 0.0
        %3730 = vmatprep.subr.mxu0 0.0
        %3731 = vmatpush1.xpose.msra.mxu0 0.0
        %3732 = vmatprep.subr.mxu0 0.0
        %3733 = vmatpush1.xpose.msra.mxu0 0.0
        %3734 = vmatprep.subr.mxu0 0.0
        %3735 = vmatpush1.xpose.msra.mxu0 0.0
        %3736 = vmatprep.subr.mxu0 0.0
        %3737 = vmatpush1.xpose.msra.mxu0 0.0
        %3738 = vmatprep.subr.mxu0 0.0
        %3739 = vmatpush1.xpose.msra.mxu0 0.0
        %3740 = vmatprep.subr.mxu0 0.0
        %3741 = vmatpush1.xpose.msra.mxu0 0.0
        %3742 = vmatprep.subr.mxu0 0.0
        %3743 = vmatpush1.xpose.msra.mxu0 0.0
        %3744 = vmatprep.subr.mxu0 0.0
        %3745 = vmatpush1.xpose.msra.mxu0 0.0
        %3746 = vmatprep.subr.mxu0 0.0
        %3747 = vmatpush1.xpose.msra.mxu0 0.0
        %3748 = vmatprep.subr.mxu0 0.0
        %3749 = vmatpush1.xpose.msra.mxu0 0.0
        %3750 = vmatprep.subr.mxu0 0.0
        %3751 = vmatpush1.xpose.msra.mxu0 0.0
        %3752 = vmatprep.mubr.f32.mxu0 0.0
        %3753 = vmatmul.mubr.f32.gmra.mrb[0].mxu0 %v3683
        %v3754 = vpop.f32.mrb[0].mxu0
        %v3755 = vadd.f32 0.0, %v3754
        %v3756 = vpop.f32.mrb[0].mxu0
        %3757 = vdwg.mxu0
        %v3759 = vsel %vm834, %v2916, 0
        %v3762 = vsel %vm834, %v3223, 0
        %3764 = vmatprep.subr.mxu0 0.0
        %3765 = vmatpush1.xpose.msra.mxu0 %v3762
        %3766 = vmatprep.subr.mxu0 0.0
        %3767 = vmatpush1.xpose.msra.mxu0 0.0
        %3768 = vmatprep.subr.mxu0 0.0
        %3769 = vmatpush1.xpose.msra.mxu0 0.0
        %3770 = vmatprep.subr.mxu0 0.0
        %3771 = vmatpush1.xpose.msra.mxu0 0.0
        %3772 = vmatprep.subr.mxu0 0.0
        %3773 = vmatpush1.xpose.msra.mxu0 0.0
        %3774 = vmatprep.subr.mxu0 0.0
        %3775 = vmatpush1.xpose.msra.mxu0 0.0
        %3776 = vmatprep.subr.mxu0 0.0
        %3777 = vmatpush1.xpose.msra.mxu0 0.0
        %3778 = vmatprep.subr.mxu0 0.0
        %3779 = vmatpush1.xpose.msra.mxu0 0.0
        %3780 = vmatprep.subr.mxu0 0.0
        %3781 = vmatpush1.xpose.msra.mxu0 0.0
        %3782 = vmatprep.subr.mxu0 0.0
        %3783 = vmatpush1.xpose.msra.mxu0 0.0
        %3784 = vmatprep.subr.mxu0 0.0
        %3785 = vmatpush1.xpose.msra.mxu0 0.0
        %3786 = vmatprep.subr.mxu0 0.0
        %3787 = vmatpush1.xpose.msra.mxu0 0.0
        %3788 = vmatprep.subr.mxu0 0.0
        %3789 = vmatpush1.xpose.msra.mxu0 0.0
        %3790 = vmatprep.subr.mxu0 0.0
        %3791 = vmatpush1.xpose.msra.mxu0 0.0
        %3792 = vmatprep.subr.mxu0 0.0
        %3793 = vmatpush1.xpose.msra.mxu0 0.0
        %3794 = vmatprep.subr.mxu0 0.0
        %3795 = vmatpush1.xpose.msra.mxu0 0.0
        %3796 = vmatprep.subr.mxu0 0.0
        %3797 = vmatpush1.xpose.msra.mxu0 0.0
        %3798 = vmatprep.subr.mxu0 0.0
        %3799 = vmatpush1.xpose.msra.mxu0 0.0
        %3800 = vmatprep.subr.mxu0 0.0
        %3801 = vmatpush1.xpose.msra.mxu0 0.0
        %3802 = vmatprep.subr.mxu0 0.0
        %3803 = vmatpush1.xpose.msra.mxu0 0.0
        %3804 = vmatprep.subr.mxu0 0.0
        %3805 = vmatpush1.xpose.msra.mxu0 0.0
        %3806 = vmatprep.subr.mxu0 0.0
        %3807 = vmatpush1.xpose.msra.mxu0 0.0
        %3808 = vmatprep.subr.mxu0 0.0
        %3809 = vmatpush1.xpose.msra.mxu0 0.0
        %3810 = vmatprep.subr.mxu0 0.0
        %3811 = vmatpush1.xpose.msra.mxu0 0.0
        %3812 = vmatprep.subr.mxu0 0.0
        %3813 = vmatpush1.xpose.msra.mxu0 0.0
        %3814 = vmatprep.subr.mxu0 0.0
        %3815 = vmatpush1.xpose.msra.mxu0 0.0
        %3816 = vmatprep.subr.mxu0 0.0
        %3817 = vmatpush1.xpose.msra.mxu0 0.0
        %3818 = vmatprep.subr.mxu0 0.0
        %3819 = vmatpush1.xpose.msra.mxu0 0.0
        %3820 = vmatprep.subr.mxu0 0.0
        %3821 = vmatpush1.xpose.msra.mxu0 0.0
        %3822 = vmatprep.subr.mxu0 0.0
        %3823 = vmatpush1.xpose.msra.mxu0 0.0
        %3824 = vmatprep.subr.mxu0 0.0
        %3825 = vmatpush1.xpose.msra.mxu0 0.0
        %3826 = vmatprep.subr.mxu0 0.0
        %3827 = vmatpush1.xpose.msra.mxu0 0.0
        %3828 = vmatprep.mubr.f32.mxu0 0.0
        %3829 = vmatmul.mubr.f32.gmra.mrb[0].mxu0 %v3759
        %v3830 = vpop.f32.mrb[0].mxu0
        %v3831 = vadd.f32 0.0, %v3830
        %v3832 = vpop.f32.mrb[0].mxu0
        %3833 = vdwg.mxu0
        %v3834 = vmul.f32 %v3603, 0.35355338
        %v3835 = vmul.f32 %v3679, 0.35355338
        %v3836 = vmul.f32 %v3755, 0.35355338
        %v3837 = vmul.f32 %v3831, 0.35355338
        %v3838 = vsel %vm2176, -1e+32, %v3834
        %v3839 = vsel %vm2176, -1e+32, %v3835
        %v3840 = vsel %vm2176, -1e+32, %v3836
        %v3841 = vsel %vm2176, -1e+32, %v3837
        %v3842 = vsel %vm834, %v3838, -inf
        %3843 = vmax.xlane.f32.xlu0 %v3842
        %v3844 = vpop.xlane.xlu0 %3843
        %v3845 = vsel %vm834, %v3839, -inf
        %3846 = vmax.xlane.f32.xlu0 %v3845
        %v3847 = vpop.xlane.xlu0 %3846
        %v3848 = vsel %vm834, %v3840, -inf
        %3849 = vmax.xlane.f32.xlu0 %v3848
        %v3850 = vpop.xlane.xlu0 %3849
        %v3851 = vsel %vm834, %v3841, -inf
        %3852 = vmax.xlane.f32.xlu0 %v3851
        %v3853 = vpop.xlane.xlu0 %3852
        %v3854 = vsub.f32 %v3838, %v3844
        %v3855 = vsub.f32 %v3839, %v3847
        %v3856 = vsub.f32 %v3840, %v3850
        %v3857 = vsub.f32 %v3841, %v3853
        %v3858 = vmul.f32 %v3854, 1.442695
        %v3859 = vpow.pop %v3858
        %v3860 = vmul.f32 %v3855, 1.442695
        %v3861 = vpow.pop %v3860
        %v3862 = vmul.f32 %v3856, 1.442695
        %v3863 = vpow.pop %v3862
        %v3864 = vmul.f32 %v3857, 1.442695
        %v3865 = vpow.pop %v3864
        %v3866 = vsel %vm834, %v3859, 0.0
        %3867 = vadd.xlane.f32.xlu0 %v3866
        %v3868 = vpop.xlane.xlu0 %3867
        %v3869 = vsel %vm834, %v3861, 0.0
        %3870 = vadd.xlane.f32.xlu0 %v3869
        %v3871 = vpop.xlane.xlu0 %3870
        %v3872 = vsel %vm834, %v3863, 0.0
        %3873 = vadd.xlane.f32.xlu0 %v3872
        %v3874 = vpop.xlane.xlu0 %3873
        %v3875 = vsel %vm834, %v3865, 0.0
        %3876 = vadd.xlane.f32.xlu0 %v3875
        %v3877 = vpop.xlane.xlu0 %3876
        %v3878 = vrcp.pop %v3868
        %v3879 = vmul.f32 %v3859, %v3878
        %v3880 = vrcp.pop %v3871
        %v3881 = vmul.f32 %v3861, %v3880
        %v3882 = vrcp.pop %v3874
        %v3883 = vmul.f32 %v3863, %v3882
        %v3884 = vrcp.pop %v3877
        %v3885 = vmul.f32 %v3865, %v3884
        %v3886 = vsel %vm2226, 0.0, %v3879
        %v3887 = vsel %vm2226, 0.0, %v3881
        %v3888 = vsel %vm2226, 0.0, %v3883
        %v3889 = vsel %vm2226, 0.0, %v3885
        %v3890 = vmul.f32 %v2231, %v3886
        %v3891 = vmul.f32 %v2231, %v3887
        %v3892 = vmul.f32 %v2231, %v3888
        %v3893 = vmul.f32 %v2231, %v3889
        %v3894 = vadd.f32 %v3890, %v888
        %v3895 = vadd.f32 %v3891, %v888
        %v3896 = vadd.f32 %v3892, %v888
        %v3897 = vadd.f32 %v3893, %v888
        %v3899 = vsel %vm834, %v3894, 0
        %3901 = vmatprep.subr.mxu0 0.0
        %3902 = vmatpush1.msra.mxu0 %v3317
        %3903 = vmatprep.subr.mxu0 0.0
        %3904 = vmatpush1.msra.mxu0 0.0
        %3905 = vmatprep.subr.mxu0 0.0
        %3906 = vmatpush1.msra.mxu0 0.0
        %3907 = vmatprep.subr.mxu0 0.0
        %3908 = vmatpush1.msra.mxu0 0.0
        %3909 = vmatprep.subr.mxu0 0.0
        %3910 = vmatpush1.msra.mxu0 0.0
        %3911 = vmatprep.subr.mxu0 0.0
        %3912 = vmatpush1.msra.mxu0 0.0
        %3913 = vmatprep.subr.mxu0 0.0
        %3914 = vmatpush1.msra.mxu0 0.0
        %3915 = vmatprep.subr.mxu0 0.0
        %3916 = vmatpush1.msra.mxu0 0.0
        %3917 = vmatprep.subr.mxu0 0.0
        %3918 = vmatpush1.msra.mxu0 0.0
        %3919 = vmatprep.subr.mxu0 0.0
        %3920 = vmatpush1.msra.mxu0 0.0
        %3921 = vmatprep.subr.mxu0 0.0
        %3922 = vmatpush1.msra.mxu0 0.0
        %3923 = vmatprep.subr.mxu0 0.0
        %3924 = vmatpush1.msra.mxu0 0.0
        %3925 = vmatprep.subr.mxu0 0.0
        %3926 = vmatpush1.msra.mxu0 0.0
        %3927 = vmatprep.subr.mxu0 0.0
        %3928 = vmatpush1.msra.mxu0 0.0
        %3929 = vmatprep.subr.mxu0 0.0
        %3930 = vmatpush1.msra.mxu0 0.0
        %3931 = vmatprep.subr.mxu0 0.0
        %3932 = vmatpush1.msra.mxu0 0.0
        %3933 = vmatprep.subr.mxu0 0.0
        %3934 = vmatpush1.msra.mxu0 0.0
        %3935 = vmatprep.subr.mxu0 0.0
        %3936 = vmatpush1.msra.mxu0 0.0
        %3937 = vmatprep.subr.mxu0 0.0
        %3938 = vmatpush1.msra.mxu0 0.0
        %3939 = vmatprep.subr.mxu0 0.0
        %3940 = vmatpush1.msra.mxu0 0.0
        %3941 = vmatprep.subr.mxu0 0.0
        %3942 = vmatpush1.msra.mxu0 0.0
        %3943 = vmatprep.subr.mxu0 0.0
        %3944 = vmatpush1.msra.mxu0 0.0
        %3945 = vmatprep.subr.mxu0 0.0
        %3946 = vmatpush1.msra.mxu0 0.0
        %3947 = vmatprep.subr.mxu0 0.0
        %3948 = vmatpush1.msra.mxu0 0.0
        %3949 = vmatprep.subr.mxu0 0.0
        %3950 = vmatpush1.msra.mxu0 0.0
        %3951 = vmatprep.subr.mxu0 0.0
        %3952 = vmatpush1.msra.mxu0 0.0
        %3953 = vmatprep.subr.mxu0 0.0
        %3954 = vmatpush1.msra.mxu0 0.0
        %3955 = vmatprep.subr.mxu0 0.0
        %3956 = vmatpush1.msra.mxu0 0.0
        %3957 = vmatprep.subr.mxu0 0.0
        %3958 = vmatpush1.msra.mxu0 0.0
        %3959 = vmatprep.subr.mxu0 0.0
        %3960 = vmatpush1.msra.mxu0 0.0
        %3961 = vmatprep.subr.mxu0 0.0
        %3962 = vmatpush1.msra.mxu0 0.0
        %3963 = vmatprep.subr.mxu0 0.0
        %3964 = vmatpush1.msra.mxu0 0.0
        %3965 = vmatprep.mubr.f32.mxu0 0.0
        %3966 = vmatmul.mubr.f32.gmra.mrb[0].mxu0 %v3899
        %v3967 = vpop.f32.mrb[0].mxu0
        %v3968 = vadd.f32 0.0, %v3967
        %v3969 = vpop.f32.mrb[0].mxu0
        %3970 = vdwg.mxu0
        %v3972 = vsel %vm834, %v3895, 0
        %3974 = vmatprep.subr.mxu0 0.0
        %3975 = vmatpush1.msra.mxu0 %v3387
        %3976 = vmatprep.subr.mxu0 0.0
        %3977 = vmatpush1.msra.mxu0 0.0
        %3978 = vmatprep.subr.mxu0 0.0
        %3979 = vmatpush1.msra.mxu0 0.0
        %3980 = vmatprep.subr.mxu0 0.0
        %3981 = vmatpush1.msra.mxu0 0.0
        %3982 = vmatprep.subr.mxu0 0.0
        %3983 = vmatpush1.msra.mxu0 0.0
        %3984 = vmatprep.subr.mxu0 0.0
        %3985 = vmatpush1.msra.mxu0 0.0
        %3986 = vmatprep.subr.mxu0 0.0
        %3987 = vmatpush1.msra.mxu0 0.0
        %3988 = vmatprep.subr.mxu0 0.0
        %3989 = vmatpush1.msra.mxu0 0.0
        %3990 = vmatprep.subr.mxu0 0.0
        %3991 = vmatpush1.msra.mxu0 0.0
        %3992 = vmatprep.subr.mxu0 0.0
        %3993 = vmatpush1.msra.mxu0 0.0
        %3994 = vmatprep.subr.mxu0 0.0
        %3995 = vmatpush1.msra.mxu0 0.0
        %3996 = vmatprep.subr.mxu0 0.0
        %3997 = vmatpush1.msra.mxu0 0.0
        %3998 = vmatprep.subr.mxu0 0.0
        %3999 = vmatpush1.msra.mxu0 0.0
        %4000 = vmatprep.subr.mxu0 0.0
        %4001 = vmatpush1.msra.mxu0 0.0
        %4002 = vmatprep.subr.mxu0 0.0
        %4003 = vmatpush1.msra.mxu0 0.0
        %4004 = vmatprep.subr.mxu0 0.0
        %4005 = vmatpush1.msra.mxu0 0.0
        %4006 = vmatprep.subr.mxu0 0.0
        %4007 = vmatpush1.msra.mxu0 0.0
        %4008 = vmatprep.subr.mxu0 0.0
        %4009 = vmatpush1.msra.mxu0 0.0
        %4010 = vmatprep.subr.mxu0 0.0
        %4011 = vmatpush1.msra.mxu0 0.0
        %4012 = vmatprep.subr.mxu0 0.0
        %4013 = vmatpush1.msra.mxu0 0.0
        %4014 = vmatprep.subr.mxu0 0.0
        %4015 = vmatpush1.msra.mxu0 0.0
        %4016 = vmatprep.subr.mxu0 0.0
        %4017 = vmatpush1.msra.mxu0 0.0
        %4018 = vmatprep.subr.mxu0 0.0
        %4019 = vmatpush1.msra.mxu0 0.0
        %4020 = vmatprep.subr.mxu0 0.0
        %4021 = vmatpush1.msra.mxu0 0.0
        %4022 = vmatprep.subr.mxu0 0.0
        %4023 = vmatpush1.msra.mxu0 0.0
        %4024 = vmatprep.subr.mxu0 0.0
        %4025 = vmatpush1.msra.mxu0 0.0
        %4026 = vmatprep.subr.mxu0 0.0
        %4027 = vmatpush1.msra.mxu0 0.0
        %4028 = vmatprep.subr.mxu0 0.0
        %4029 = vmatpush1.msra.mxu0 0.0
        %4030 = vmatprep.subr.mxu0 0.0
        %4031 = vmatpush1.msra.mxu0 0.0
        %4032 = vmatprep.subr.mxu0 0.0
        %4033 = vmatpush1.msra.mxu0 0.0
        %4034 = vmatprep.subr.mxu0 0.0
        %4035 = vmatpush1.msra.mxu0 0.0
        %4036 = vmatprep.subr.mxu0 0.0
        %4037 = vmatpush1.msra.mxu0 0.0
        %4038 = vmatprep.mubr.f32.mxu0 0.0
        %4039 = vmatmul.mubr.f32.gmra.mrb[0].mxu0 %v3972
        %v4040 = vpop.f32.mrb[0].mxu0
        %v4041 = vadd.f32 0.0, %v4040
        %v4042 = vpop.f32.mrb[0].mxu0
        %4043 = vdwg.mxu0
        %v4045 = vsel %vm834, %v3896, 0
        %4047 = vmatprep.subr.mxu0 0.0
        %4048 = vmatpush1.msra.mxu0 %v3457
        %4049 = vmatprep.subr.mxu0 0.0
        %4050 = vmatpush1.msra.mxu0 0.0
        %4051 = vmatprep.subr.mxu0 0.0
        %4052 = vmatpush1.msra.mxu0 0.0
        %4053 = vmatprep.subr.mxu0 0.0
        %4054 = vmatpush1.msra.mxu0 0.0
        %4055 = vmatprep.subr.mxu0 0.0
        %4056 = vmatpush1.msra.mxu0 0.0
        %4057 = vmatprep.subr.mxu0 0.0
        %4058 = vmatpush1.msra.mxu0 0.0
        %4059 = vmatprep.subr.mxu0 0.0
        %4060 = vmatpush1.msra.mxu0 0.0
        %4061 = vmatprep.subr.mxu0 0.0
        %4062 = vmatpush1.msra.mxu0 0.0
        %4063 = vmatprep.subr.mxu0 0.0
        %4064 = vmatpush1.msra.mxu0 0.0
        %4065 = vmatprep.subr.mxu0 0.0
        %4066 = vmatpush1.msra.mxu0 0.0
        %4067 = vmatprep.subr.mxu0 0.0
        %4068 = vmatpush1.msra.mxu0 0.0
        %4069 = vmatprep.subr.mxu0 0.0
        %4070 = vmatpush1.msra.mxu0 0.0
        %4071 = vmatprep.subr.mxu0 0.0
        %4072 = vmatpush1.msra.mxu0 0.0
        %4073 = vmatprep.subr.mxu0 0.0
        %4074 = vmatpush1.msra.mxu0 0.0
        %4075 = vmatprep.subr.mxu0 0.0
        %4076 = vmatpush1.msra.mxu0 0.0
        %4077 = vmatprep.subr.mxu0 0.0
        %4078 = vmatpush1.msra.mxu0 0.0
        %4079 = vmatprep.subr.mxu0 0.0
        %4080 = vmatpush1.msra.mxu0 0.0
        %4081 = vmatprep.subr.mxu0 0.0
        %4082 = vmatpush1.msra.mxu0 0.0
        %4083 = vmatprep.subr.mxu0 0.0
        %4084 = vmatpush1.msra.mxu0 0.0
        %4085 = vmatprep.subr.mxu0 0.0
        %4086 = vmatpush1.msra.mxu0 0.0
        %4087 = vmatprep.subr.mxu0 0.0
        %4088 = vmatpush1.msra.mxu0 0.0
        %4089 = vmatprep.subr.mxu0 0.0
        %4090 = vmatpush1.msra.mxu0 0.0
        %4091 = vmatprep.subr.mxu0 0.0
        %4092 = vmatpush1.msra.mxu0 0.0
        %4093 = vmatprep.subr.mxu0 0.0
        %4094 = vmatpush1.msra.mxu0 0.0
        %4095 = vmatprep.subr.mxu0 0.0
        %4096 = vmatpush1.msra.mxu0 0.0
        %4097 = vmatprep.subr.mxu0 0.0
        %4098 = vmatpush1.msra.mxu0 0.0
        %4099 = vmatprep.subr.mxu0 0.0
        %4100 = vmatpush1.msra.mxu0 0.0
        %4101 = vmatprep.subr.mxu0 0.0
        %4102 = vmatpush1.msra.mxu0 0.0
        %4103 = vmatprep.subr.mxu0 0.0
        %4104 = vmatpush1.msra.mxu0 0.0
        %4105 = vmatprep.subr.mxu0 0.0
        %4106 = vmatpush1.msra.mxu0 0.0
        %4107 = vmatprep.subr.mxu0 0.0
        %4108 = vmatpush1.msra.mxu0 0.0
        %4109 = vmatprep.subr.mxu0 0.0
        %4110 = vmatpush1.msra.mxu0 0.0
        %4111 = vmatprep.mubr.f32.mxu0 0.0
        %4112 = vmatmul.mubr.f32.gmra.mrb[0].mxu0 %v4045
        %v4113 = vpop.f32.mrb[0].mxu0
        %v4114 = vadd.f32 0.0, %v4113
        %v4115 = vpop.f32.mrb[0].mxu0
        %4116 = vdwg.mxu0
        %v4118 = vsel %vm834, %v3897, 0
        %4120 = vmatprep.subr.mxu0 0.0
        %4121 = vmatpush1.msra.mxu0 %v3527
        %4122 = vmatprep.subr.mxu0 0.0
        %4123 = vmatpush1.msra.mxu0 0.0
        %4124 = vmatprep.subr.mxu0 0.0
        %4125 = vmatpush1.msra.mxu0 0.0
        %4126 = vmatprep.subr.mxu0 0.0
        %4127 = vmatpush1.msra.mxu0 0.0
        %4128 = vmatprep.subr.mxu0 0.0
        %4129 = vmatpush1.msra.mxu0 0.0
        %4130 = vmatprep.subr.mxu0 0.0
        %4131 = vmatpush1.msra.mxu0 0.0
        %4132 = vmatprep.subr.mxu0 0.0
        %4133 = vmatpush1.msra.mxu0 0.0
        %4134 = vmatprep.subr.mxu0 0.0
        %4135 = vmatpush1.msra.mxu0 0.0
        %4136 = vmatprep.subr.mxu0 0.0
        %4137 = vmatpush1.msra.mxu0 0.0
        %4138 = vmatprep.subr.mxu0 0.0
        %4139 = vmatpush1.msra.mxu0 0.0
        %4140 = vmatprep.subr.mxu0 0.0
        %4141 = vmatpush1.msra.mxu0 0.0
        %4142 = vmatprep.subr.mxu0 0.0
        %4143 = vmatpush1.msra.mxu0 0.0
        %4144 = vmatprep.subr.mxu0 0.0
        %4145 = vmatpush1.msra.mxu0 0.0
        %4146 = vmatprep.subr.mxu0 0.0
        %4147 = vmatpush1.msra.mxu0 0.0
        %4148 = vmatprep.subr.mxu0 0.0
        %4149 = vmatpush1.msra.mxu0 0.0
        %4150 = vmatprep.subr.mxu0 0.0
        %4151 = vmatpush1.msra.mxu0 0.0
        %4152 = vmatprep.subr.mxu0 0.0
        %4153 = vmatpush1.msra.mxu0 0.0
        %4154 = vmatprep.subr.mxu0 0.0
        %4155 = vmatpush1.msra.mxu0 0.0
        %4156 = vmatprep.subr.mxu0 0.0
        %4157 = vmatpush1.msra.mxu0 0.0
        %4158 = vmatprep.subr.mxu0 0.0
        %4159 = vmatpush1.msra.mxu0 0.0
        %4160 = vmatprep.subr.mxu0 0.0
        %4161 = vmatpush1.msra.mxu0 0.0
        %4162 = vmatprep.subr.mxu0 0.0
        %4163 = vmatpush1.msra.mxu0 0.0
        %4164 = vmatprep.subr.mxu0 0.0
        %4165 = vmatpush1.msra.mxu0 0.0
        %4166 = vmatprep.subr.mxu0 0.0
        %4167 = vmatpush1.msra.mxu0 0.0
        %4168 = vmatprep.subr.mxu0 0.0
        %4169 = vmatpush1.msra.mxu0 0.0
        %4170 = vmatprep.subr.mxu0 0.0
        %4171 = vmatpush1.msra.mxu0 0.0
        %4172 = vmatprep.subr.mxu0 0.0
        %4173 = vmatpush1.msra.mxu0 0.0
        %4174 = vmatprep.subr.mxu0 0.0
        %4175 = vmatpush1.msra.mxu0 0.0
        %4176 = vmatprep.subr.mxu0 0.0
        %4177 = vmatpush1.msra.mxu0 0.0
        %4178 = vmatprep.subr.mxu0 0.0
        %4179 = vmatpush1.msra.mxu0 0.0
        %4180 = vmatprep.subr.mxu0 0.0
        %4181 = vmatpush1.msra.mxu0 0.0
        %4182 = vmatprep.subr.mxu0 0.0
        %4183 = vmatpush1.msra.mxu0 0.0
        %4184 = vmatprep.mubr.f32.mxu0 0.0
        %4185 = vmatmul.mubr.f32.gmra.mrb[0].mxu0 %v4118
        %v4186 = vpop.f32.mrb[0].mxu0
        %v4187 = vadd.f32 0.0, %v4186
        %v4188 = vpop.f32.mrb[0].mxu0
        %4189 = vdwg.mxu0
        %4191 = vrot.lane.b32.xlu0 %v4041, 8
        %v4192 = vpop.permute.xlu0 %4191
        %4195 = vrot.lane.b32.xlu0 %v4114, 16
        %v4196 = vpop.permute.xlu0 %4195
        %4199 = vrot.lane.b32.xlu0 %v4187, 24
        %v4200 = vpop.permute.xlu0 %4199
        %v4202 = vsel %vm834, %v3968, %v4192
        %v4203 = vsel %vm2545, %v4202, %v4196
        %v4204 = vsel %vm2547, %v4203, %v4200
        %v4205 = vmax.f32 %v4204, 0.0
        %v4206 = vadd.f32 %v2548, %v4205
        %v4207 = vld [vmem:[%s17] sm:$0x1]
        %v4209 = vlaneseq
        %v4210 = vshrl.u32 %v4209, 7
        %v4211 = vsub.s32 0, %v4210
        %v4212 = vrot.slane %v4207, %v4211
        %v4214 = vmul.f32 %v4206, %v4212
        %v4215 = vsel %vm668, %v4214, 0.0
        %4216 = vadd.xlane.f32.xlu0 %v4215
        %v4217 = vpop.xlane.xlu0 %4216
        %s4218 = sld [smem:[#allocation2]]
        %v4219 = vstv %s4218
        %v4220 = vadd.f32 %v4217, %v4219
        %v4221 = vsub.f32 0.0, %v4220
        %v4222 = vmul.f32 %v4221, 1.442695
        %v4223 = vpow.pop %v4222
        %v4224 = vadd.f32 %v4223, 1.0
        %v4225 = vrcp.pop %v4224
        %v4226 = vmul.f32 1.0, %v4225
        %vm4227 = vcmask 7168
        %4228 = vst.msk [vmem:[%s650] sm:$0xff] %vm4227, %v4226
        %p4229 = scmp.lt.s32.totalorder %s31, 1
        %s4230 = scalar_select %p4229, %s31, 1
        %s4231 = smul.addr %s4230, 8
        %s4232 = scalar_lea.vmem %s18, %s4231
        // Predicated region
        $region97: #{rkt_forward.1} parent=91 // pred_check
          %p4233 = pneg %p452
        $region98: #{rkt_forward.1} parent=91 // pred_check_branch
          %4235 = sbr.rel (%p4233) target = $region100
        $region99: #{rkt_forward.1} parent=91 // pred_region
          _
        $region100: #{rkt_forward.1} parent=91 // pred_fallthru
          _
      $region92: #{rkt_forward.1} parent=5 // pred_fallthru
        _
      %p4236 = scmp.le.s32.totalorder 2, %s26
      // Predicated region
      $region101: #{rkt_forward.1} parent=5 // pred_check
        %p4237 = pneg %p4236
      $region102: #{rkt_forward.1} parent=5 // pred_check_branch
        %4239 = sbr.rel (%p4237) target = $region104
      $region103: #{rkt_forward.1} parent=5 // pred_region
        %s4240 = ssub.s32 %s26, 2
        // Predicated region
        $region105: #{rkt_forward.1} parent=103 // pred_check
          %p4241 = pneg %p458
        $region106: #{rkt_forward.1} parent=103 // pred_check_branch
          %4243 = sbr.rel (%p4241) target = $region108
        $region107: #{rkt_forward.1} parent=103 // pred_region
          %p4244 = scmp.lt.s32.totalorder %s32, 1
          %s4245 = scalar_select %p4244, %s32, 1
          %s4246 = smul.addr %s4245, 8
          %s4247 = scalar_lea.vmem %s18, %s4246
        $region108: #{rkt_forward.1} parent=103 // pred_fallthru
          _
      $region104: #{rkt_forward.1} parent=5 // pred_fallthru
        _
    $region6: #{rkt_forward.1} parent=1 // loop_footer
      %s30 = sadd.s32 1, %s26
    $region7: #{rkt_forward.1} parent=1 // loop_footer_branch
      %25 = sbr.rel target = $region3
    $region8: #{rkt_forward.1} parent=1 // loop_exit
      _
    %4248 = vsyncpa [#allocation4], 1
    %s4249 = scalar_lea.sflag [#allocation4], 1
    %4250 = vsyncpa %s4249, 1

</llo_original>
